<compile_context>
chip_gen: v5e
topology: v5e:2x2
jax: 0.10.0
libtpu: 0.0.40
codegen_flags: <defaults>
</compile_context>

<pallas_src>
import functools

import numpy as np
import jax
import jax.numpy as jnp
from jax import lax
from jax.experimental import pallas as pl
from jax.experimental.pallas import tpu as pltpu


def _cca_kernel(x_ref, wqkv_ref, bqkv_ref, gamma_ref, o_ref, *, C, H, W):
    f32 = jnp.float32
    HW = H * W
    x_cm = x_ref[0]                                            # (C, HW) channel-major

    # Fused q|k|v 1x1 convs: one lane-dense channel-major matmul + bias.
    qkv = jnp.dot(wqkv_ref[...], x_cm, preferred_element_type=f32) + bqkv_ref[...]

    # One 2-D transpose to pixel-major, then cheap leading-dim reshapes/views.
    qkv_pm = qkv.T                                             # (HW, 3C)
    q_r = qkv_pm[:, 0 * C:1 * C].reshape(H, W, C)              # row-major views
    k_r = qkv_pm[:, 1 * C:2 * C].reshape(H, W, C)
    v_r = qkv_pm[:, 2 * C:3 * C].reshape(H, W, C)
    q_c = jnp.transpose(q_r, (1, 0, 2))                        # column-major views
    k_c = jnp.transpose(k_r, (1, 0, 2))
    v_c = jnp.transpose(v_r, (1, 0, 2))

    # ---- Row branch: per image row, (W x W) energies (center included). ---
    e_r = jnp.einsum('hqc,hkc->hqk', q_r, k_r, preferred_element_type=f32)
    m_r = jnp.max(e_r, axis=-1, keepdims=True)                 # (H, W, 1)
    p_r = jnp.exp(e_r - m_r)
    s_r = jnp.sum(p_r, axis=-1, keepdims=True)
    o_r = jnp.einsum('hqk,hkc->hqc', p_r, v_r, preferred_element_type=f32)

    # ---- Column branch: per image column, (H x H) energies; the center key
    # is masked out here since the row branch already contains it. ----------
    e_c = jnp.einsum('wqc,wkc->wqk', q_c, k_c, preferred_element_type=f32)
    diag = (lax.broadcasted_iota(jnp.int32, (W, H, H), 1) ==
            lax.broadcasted_iota(jnp.int32, (W, H, H), 2))
    e_c = jnp.where(diag, f32(-1e30), e_c)
    m_c = jnp.max(e_c, axis=-1, keepdims=True)                 # (W, H, 1)
    p_c = jnp.exp(e_c - m_c)
    s_c = jnp.sum(p_c, axis=-1, keepdims=True)
    o_c = jnp.einsum('wqk,wkc->wqc', p_c, v_c, preferred_element_type=f32)

    # ---- Flash-style merge of the two branches' softmax partials. ---------
    m_r2 = m_r[..., 0]                                         # (H, W)
    s_r2 = s_r[..., 0]
    m_c2 = m_c[..., 0].T                                       # (W, H) -> (H, W)
    s_c2 = s_c[..., 0].T
    m = jnp.maximum(m_r2, m_c2)
    a_r = jnp.exp(m_r2 - m)
    a_c = jnp.exp(m_c2 - m)
    # Exact normalizer (approx reciprocal broke parity with the reference);
    # gamma folded into the tiny (H, W) scale vector.
    scale = gamma_ref[0] / (a_r * s_r2 + a_c * s_c2)           # (H, W)
    coef_r = (a_r * scale)[:, :, None]                         # (H, W, 1)
    coef_c = (a_c * scale)[:, :, None]
    out_hwc = coef_r * o_r + coef_c * jnp.transpose(o_c, (1, 0, 2))   # (H, W, C)

    # ---- Epilogue: residual add, lane-dense channel-major store. ----------
    o_ref[0] = (out_hwc.reshape(HW, C).T + x_cm).astype(o_ref.dtype)


def criss_cross_attention(x_nchw, wq, bq, wk, bk, wv, bv, gamma=0.6):
    """Pallas forward of CrissCrossAttention (NCHW in / NCHW out)."""
    N, C, H, W = x_nchw.shape
    HW = H * W

    x_r = x_nchw.reshape(N, C, HW).astype(jnp.float32)

    # Conv2d 1x1 weights (Cout, Cin, 1, 1) fused into one (3C, C) matrix
    # acting on channel-major pixels; biases fused into a (3C, 1) column.
    w_qkv = jnp.concatenate([wq.reshape(C, C), wk.reshape(C, C),
                             wv.reshape(C, C)], axis=0).astype(jnp.float32)
    b_qkv = jnp.concatenate([bq, bk, bv], axis=0).reshape(3 * C, 1).astype(jnp.float32)
    gamma_arr = jnp.full((1,), gamma, jnp.float32)

    kern = functools.partial(_cca_kernel, C=C, H=H, W=W)

    flops = int(N * (2 * HW * C * 3 * C             # fused qkv projection
                     + 4 * HW * C * (H + W)))       # energies + AV, both branches
    transcendentals = int(N * (HW * (H + W) + 2 * HW))
    bytes_accessed = int(4 * (2 * N * C * HW + 3 * C * C + 3 * C + 1))

    out = pl.pallas_call(
        kern,
        out_shape=jax.ShapeDtypeStruct((N, C, HW), jnp.float32),
        grid=(N,),
        in_specs=[
            pl.BlockSpec((1, C, HW), lambda n: (n, 0, 0)),      # x (per batch)
            pl.BlockSpec((3 * C, C), lambda n: (0, 0)),         # fused Wqkv
            pl.BlockSpec((3 * C, 1), lambda n: (0, 0)),         # fused bias
            pl.BlockSpec(memory_space=pltpu.MemorySpace.SMEM),  # gamma scalar
        ],
        out_specs=pl.BlockSpec((1, C, HW), lambda n: (n, 0, 0)),
        input_output_aliases={0: 0},            # x is consumed by the residual
        compiler_params=pltpu.CompilerParams(
            dimension_semantics=("parallel",),
            vmem_limit_bytes=32 * 1024 * 1024),
        cost_estimate=pl.CostEstimate(flops=flops,
                                      transcendentals=transcendentals,
                                      bytes_accessed=bytes_accessed),
    )(x_r, w_qkv, b_qkv, gamma_arr)

    return out.reshape(N, C, H, W)


def reference_numpy(x, wq, bq, wk, bk, wv, bv, gamma):
    """Loop reference mirroring the CUDA ca_forward / ca_map kernels exactly."""
    x = np.asarray(x, np.float64)
    N, C, H, W = x.shape

    def conv1x1(w, b):
        return (np.einsum('oi,nihw->nohw', np.asarray(w, np.float64).reshape(C, C), x)
                + np.asarray(b, np.float64)[None, :, None, None])

    q, k, v = conv1x1(wq, bq), conv1x1(wk, bk), conv1x1(wv, bv)
    L = H + W - 1
    energy = np.zeros((N, L, H, W), np.float64)
    for n in range(N):
        for y in range(H):
            for xx in range(W):
                t = q[n, :, y, xx]
                for i in range(W):                       # row branch (includes center)
                    energy[n, i, y, xx] = np.dot(t, k[n, :, y, i])
                for idx in range(H - 1):                 # column branch (skips row y)
                    j = idx if idx < y else idx + 1
                    energy[n, W + idx, y, xx] = np.dot(t, k[n, :, j, xx])

    a = np.exp(energy - energy.max(axis=1, keepdims=True))
    a = a / a.sum(axis=1, keepdims=True)

    out = np.zeros((N, C, H, W), np.float64)
    for n in range(N):
        for y in range(H):
            for xx in range(W):
                acc = np.zeros(C, np.float64)
                for i in range(W):
                    acc += a[n, i, y, xx] * v[n, :, y, i]
                for i in range(H):
                    if i == y:
                        continue
                    j = i if i < y else i - 1
                    acc += a[n, W + j, y, xx] * v[n, :, i, xx]
                out[n, :, y, xx] = acc
    return gamma * out + x


if __name__ == "__main__":
    N, C, H, W = 2, 8, 16, 16
    gamma = 0.6

    key = jax.random.PRNGKey(0)
    ks = jax.random.split(key, 7)
    x = jax.random.normal(ks[0], (N, C, H, W), jnp.float32)

    def init_conv(kw, kb):
        w = jax.random.normal(kw, (C, C, 1, 1), jnp.float32) * (1.0 / np.sqrt(C))
        b = jax.random.normal(kb, (C,), jnp.float32) * 0.1
        return w, b

    wq, bq = init_conv(ks[1], ks[2])
    wk, bk = init_conv(ks[3], ks[4])
    wv, bv = init_conv(ks[5], ks[6])

    # Host copies taken before the pallas_call (its input_output_aliases may
    # donate the kernel input buffer).
    host = [np.asarray(a) for a in (x, wq, bq, wk, bk, wv, bv)]

    out = criss_cross_attention(x, wq, bq, wk, bk, wv, bv, gamma=gamma)
    out = jax.block_until_ready(out)

    ref = reference_numpy(*host, gamma)
    np.testing.assert_allclose(np.asarray(out), ref.astype(np.float32),
                               rtol=2e-3, atol=2e-3)
    print("KERNEL_OK")
</pallas_src>

<mosaic_0001>
module attributes {stable_mosaic.version = 11 : i64} {
  func.func @_cca_kernel(%arg0: i32, %arg1: memref<1x8x256xf32, #tpu.memory_space<vmem>>, %arg2: memref<24x8xf32, #tpu.memory_space<vmem>>, %arg3: memref<24x1xf32, #tpu.memory_space<vmem>>, %arg4: memref<1xf32, #tpu.memory_space<smem>>, %arg5: memref<1x8x256xf32, #tpu.memory_space<vmem>>) attributes {dimension_semantics = [#tpu.dimension_semantics<parallel>], iteration_bounds = array<i64: 2>, scalar_prefetch = 0 : i64, scratch_operands = 0 : i64, tpu.core_type = #tpu.core_type<tc>, window_params = [{transform_indices = @transform_0, window_bounds = array<i64: 1, 8, 256>}, {pipeline_mode = #tpu.pipeline_mode<synchronous>, transform_indices = @transform_1, window_bounds = array<i64: 24, 8>}, {pipeline_mode = #tpu.pipeline_mode<synchronous>, transform_indices = @transform_2, window_bounds = array<i64: 24, 1>}, {transform_indices = @transform_3, window_bounds = array<i64: 1>}, {transform_indices = @transform_4, window_bounds = array<i64: 1, 8, 256>}]} {
    %c0 = arith.constant 0 : index
    %c0_0 = arith.constant 0 : index
    %c0_1 = arith.constant 0 : index
    %0 = vector.load %arg1[%c0, %c0_0, %c0_1] : memref<1x8x256xf32, #tpu.memory_space<vmem>>, vector<1x8x256xf32>
    %1 = vector.shape_cast %0 : vector<1x8x256xf32> to vector<8x256xf32>
    %c0_2 = arith.constant 0 : index
    %c0_3 = arith.constant 0 : index
    %2 = vector.load %arg2[%c0_2, %c0_3] : memref<24x8xf32, #tpu.memory_space<vmem>>, vector<24x8xf32>
    %cst = arith.constant dense<0.000000e+00> : vector<24x256xf32>
    %3 = tpu.matmul %2, %1, %cst {dimension_numbers = #tpu.dot_dimension_numbers<[1], [0], [0], [1], [0, 0, 1, 1], [], []>} : vector<24x8xf32>, vector<8x256xf32>, vector<24x256xf32> -> vector<24x256xf32>
    %c0_4 = arith.constant 0 : index
    %c0_5 = arith.constant 0 : index
    %4 = vector.load %arg3[%c0_4, %c0_5] : memref<24x1xf32, #tpu.memory_space<vmem>>, vector<24x1xf32>
    %5 = vector.broadcast %4 : vector<24x1xf32> to vector<24x256xf32>
    %6 = arith.addf %3, %5 : vector<24x256xf32>
    %7 = tpu.transpose %6, [1, 0] : vector<24x256xf32> -> vector<256x24xf32>
    %8 = vector.extract_strided_slice %7 {offsets = [0, 0], sizes = [256, 8], strides = [1, 1]} : vector<256x24xf32> to vector<256x8xf32>
    %9 = vector.shape_cast %8 : vector<256x8xf32> to vector<16x16x8xf32>
    %10 = vector.extract_strided_slice %7 {offsets = [0, 8], sizes = [256, 8], strides = [1, 1]} : vector<256x24xf32> to vector<256x8xf32>
    %11 = vector.shape_cast %10 : vector<256x8xf32> to vector<16x16x8xf32>
    %12 = vector.extract_strided_slice %7 {offsets = [0, 16], sizes = [256, 8], strides = [1, 1]} : vector<256x24xf32> to vector<256x8xf32>
    %13 = vector.shape_cast %12 : vector<256x8xf32> to vector<16x16x8xf32>
    %14 = tpu.transpose %9, [1, 0, 2] : vector<16x16x8xf32> -> vector<16x16x8xf32>
    %15 = tpu.transpose %11, [1, 0, 2] : vector<16x16x8xf32> -> vector<16x16x8xf32>
    %16 = tpu.transpose %13, [1, 0, 2] : vector<16x16x8xf32> -> vector<16x16x8xf32>
    "tpu.trace_start"() <{level = 10 : i32, message = "hqc,hkc->hqk"}> : () -> ()
    %cst_6 = arith.constant dense<0.000000e+00> : vector<16x16x16xf32>
    %17 = tpu.matmul %9, %11, %cst_6 {dimension_numbers = #tpu.dot_dimension_numbers<[2], [2], [1], [1], [0, 0, 0, 1, 1, 1], [0], [0]>} : vector<16x16x8xf32>, vector<16x16x8xf32>, vector<16x16x16xf32> -> vector<16x16x16xf32>
    "tpu.trace_stop"() : () -> ()
    %cst_7 = arith.constant dense<0xFF800000> : vector<16x16xf32>
    %18 = vector.multi_reduction <maximumf>, %17, %cst_7 [2] : vector<16x16x16xf32> to vector<16x16xf32>
    %19 = vector.shape_cast %18 : vector<16x16xf32> to vector<16x16x1xf32>
    %20 = vector.broadcast %19 : vector<16x16x1xf32> to vector<16x16x16xf32>
    %21 = arith.subf %17, %20 : vector<16x16x16xf32>
    %22 = math.exp %21 : vector<16x16x16xf32>
    %cst_8 = arith.constant dense<0.000000e+00> : vector<16x16xf32>
    %23 = vector.multi_reduction <add>, %22, %cst_8 [2] : vector<16x16x16xf32> to vector<16x16xf32>
    %24 = vector.shape_cast %23 : vector<16x16xf32> to vector<16x16x1xf32>
    "tpu.trace_start"() <{level = 10 : i32, message = "hqk,hkc->hqc"}> : () -> ()
    %cst_9 = arith.constant dense<0.000000e+00> : vector<16x16x8xf32>
    %25 = tpu.matmul %22, %13, %cst_9 {dimension_numbers = #tpu.dot_dimension_numbers<[2], [1], [1], [2], [0, 0, 0, 1, 1, 2], [0], [0]>} : vector<16x16x16xf32>, vector<16x16x8xf32>, vector<16x16x8xf32> -> vector<16x16x8xf32>
    "tpu.trace_stop"() : () -> ()
    "tpu.trace_start"() <{level = 10 : i32, message = "wqc,wkc->wqk"}> : () -> ()
    %cst_10 = arith.constant dense<0.000000e+00> : vector<16x16x16xf32>
    %26 = tpu.matmul %14, %15, %cst_10 {dimension_numbers = #tpu.dot_dimension_numbers<[2], [2], [1], [1], [0, 0, 0, 1, 1, 1], [0], [0]>} : vector<16x16x8xf32>, vector<16x16x8xf32>, vector<16x16x16xf32> -> vector<16x16x16xf32>
    "tpu.trace_stop"() : () -> ()
    %27 = tpu.iota {dimensions = array<i32: 1>} : vector<16x16x16xi32>
    %28 = tpu.iota {dimensions = array<i32: 2>} : vector<16x16x16xi32>
    %29 = arith.cmpi eq, %27, %28 : vector<16x16x16xi32>
    %cst_11 = arith.constant -1.000000e+30 : f32
    %30 = vector.broadcast %cst_11 : f32 to vector<16x16x16xf32>
    %31 = arith.select %29, %30, %26 : vector<16x16x16xi1>, vector<16x16x16xf32>
    %cst_12 = arith.constant dense<0xFF800000> : vector<16x16xf32>
    %32 = vector.multi_reduction <maximumf>, %31, %cst_12 [2] : vector<16x16x16xf32> to vector<16x16xf32>
    %33 = vector.shape_cast %32 : vector<16x16xf32> to vector<16x16x1xf32>
    %34 = vector.broadcast %33 : vector<16x16x1xf32> to vector<16x16x16xf32>
    %35 = arith.subf %31, %34 : vector<16x16x16xf32>
    %36 = math.exp %35 : vector<16x16x16xf32>
    %cst_13 = arith.constant dense<0.000000e+00> : vector<16x16xf32>
    %37 = vector.multi_reduction <add>, %36, %cst_13 [2] : vector<16x16x16xf32> to vector<16x16xf32>
    %38 = vector.shape_cast %37 : vector<16x16xf32> to vector<16x16x1xf32>
    "tpu.trace_start"() <{level = 10 : i32, message = "wqk,wkc->wqc"}> : () -> ()
    %cst_14 = arith.constant dense<0.000000e+00> : vector<16x16x8xf32>
    %39 = tpu.matmul %36, %16, %cst_14 {dimension_numbers = #tpu.dot_dimension_numbers<[2], [1], [1], [2], [0, 0, 0, 1, 1, 2], [0], [0]>} : vector<16x16x16xf32>, vector<16x16x8xf32>, vector<16x16x8xf32> -> vector<16x16x8xf32>
    "tpu.trace_stop"() : () -> ()
    %40 = vector.shape_cast %19 : vector<16x16x1xf32> to vector<16x16xf32>
    %41 = vector.shape_cast %24 : vector<16x16x1xf32> to vector<16x16xf32>
    %42 = vector.shape_cast %33 : vector<16x16x1xf32> to vector<16x16xf32>
    %43 = tpu.transpose %42, [1, 0] : vector<16x16xf32> -> vector<16x16xf32>
    %44 = vector.shape_cast %38 : vector<16x16x1xf32> to vector<16x16xf32>
    %45 = tpu.transpose %44, [1, 0] : vector<16x16xf32> -> vector<16x16xf32>
    %46 = arith.maximumf %40, %43 : vector<16x16xf32>
    %47 = arith.subf %40, %46 : vector<16x16xf32>
    %48 = math.exp %47 : vector<16x16xf32>
    %49 = arith.subf %43, %46 : vector<16x16xf32>
    %50 = math.exp %49 : vector<16x16xf32>
    %c0_15 = arith.constant 0 : index
    %51 = memref.load %arg4[%c0_15] : memref<1xf32, #tpu.memory_space<smem>>
    %52 = arith.mulf %48, %41 : vector<16x16xf32>
    %53 = arith.mulf %50, %45 : vector<16x16xf32>
    %54 = arith.addf %52, %53 : vector<16x16xf32>
    %55 = vector.broadcast %51 : f32 to vector<16x16xf32>
    %56 = arith.divf %55, %54 : vector<16x16xf32>
    %57 = arith.mulf %48, %56 : vector<16x16xf32>
    %58 = vector.shape_cast %57 : vector<16x16xf32> to vector<16x16x1xf32>
    %59 = arith.mulf %50, %56 : vector<16x16xf32>
    %60 = vector.shape_cast %59 : vector<16x16xf32> to vector<16x16x1xf32>
    %61 = vector.broadcast %58 : vector<16x16x1xf32> to vector<16x16x8xf32>
    %62 = arith.mulf %61, %25 : vector<16x16x8xf32>
    %63 = tpu.transpose %39, [1, 0, 2] : vector<16x16x8xf32> -> vector<16x16x8xf32>
    %64 = vector.broadcast %60 : vector<16x16x1xf32> to vector<16x16x8xf32>
    %65 = arith.mulf %64, %63 : vector<16x16x8xf32>
    %66 = arith.addf %62, %65 : vector<16x16x8xf32>
    %67 = vector.shape_cast %66 : vector<16x16x8xf32> to vector<256x8xf32>
    %68 = tpu.transpose %67, [1, 0] : vector<256x8xf32> -> vector<8x256xf32>
    %69 = arith.addf %68, %1 : vector<8x256xf32>
    %c0_16 = arith.constant 0 : index
    %c0_17 = arith.constant 0 : index
    %c0_18 = arith.constant 0 : index
    %70 = vector.load %arg5[%c0_16, %c0_17, %c0_18] : memref<1x8x256xf32, #tpu.memory_space<vmem>>, vector<1x8x256xf32>
    %71 = vector.shape_cast %70 : vector<1x8x256xf32> to vector<8x256xf32>
    %72 = vector.shape_cast %69 : vector<8x256xf32> to vector<1x8x256xf32>
    tpu.vector_store %arg5[%c0_16, %c0_17, %c0_18], %72 {strides = array<i32>} : memref<1x8x256xf32, #tpu.memory_space<vmem>>, vector<1x8x256xf32>,
    return
  }
  func.func @transform_0(%arg0: i32) -> (i32, i32, i32) {
    %c0_i32 = arith.constant 0 : i32
    %c0_i32_0 = arith.constant 0 : i32
    %c0_i32_1 = arith.constant 0 : i32
    return %arg0, %c0_i32, %c0_i32_0 : i32, i32, i32
  }
  func.func @transform_1(%arg0: i32) -> (i32, i32) {
    %c0_i32 = arith.constant 0 : i32
    %c0_i32_0 = arith.constant 0 : i32
    %c0_i32_1 = arith.constant 0 : i32
    return %c0_i32, %c0_i32_0 : i32, i32
  }
  func.func @transform_2(%arg0: i32) -> (i32, i32) {
    %c0_i32 = arith.constant 0 : i32
    %c0_i32_0 = arith.constant 0 : i32
    %c0_i32_1 = arith.constant 0 : i32
    return %c0_i32, %c0_i32_0 : i32, i32
  }
  func.func @transform_3(%arg0: i32) -> i32 {
    %c0_i32 = arith.constant 0 : i32
    %c0_i32_0 = arith.constant 0 : i32
    return %c0_i32 : i32
  }
  func.func @transform_4(%arg0: i32) -> (i32, i32, i32) {
    %c0_i32 = arith.constant 0 : i32
    %c0_i32_0 = arith.constant 0 : i32
    %c0_i32_1 = arith.constant 0 : i32
    return %arg0, %c0_i32, %c0_i32_0 : i32, i32, i32
  }
}

</mosaic_0001>

<llo_original>
// kernel: tpu_custom_call.1
$region0: #{tpu_custom_call.1}
  #allocation0 [shape = 'u32[]', space=smem, size = 0x4, offset = 0x4, fixed_abs, tag = 'smem constant byte address 0x4 - core index']
  #allocation1 [shape = 'u32[72,128]{1,0:T(1,128)}', space=vmem, size = 0x9000, scoped, tag = 'internal scratch']
  #allocation2 [shape = 'f32[1]{0:T(128)S(6)}', space=smem, size = 0x200, scoped, tag = 'scoped memory for tpu_custom_call.1']
  %s0 = inlined_call_operand.hbm [shape: f32[2,8,256], index: 0, kind: input, shape index: {}, may-alias: {0,4}]
  %s1 = inlined_call_operand.vmem [shape: f32[24,8], index: 1, kind: input, shape index: {}]
  %s2 = inlined_call_operand.vmem [shape: f32[24,1], index: 2, kind: input, shape index: {}]
  %s3 = inlined_call_operand.<no memory space> [shape: f32[1], index: 3, kind: input, shape index: {}]
  %s4 = inlined_call_operand.hbm [shape: f32[2,8,256], index: 4, kind: output, shape index: {}, may-alias: {0,4}]
  %s5 = sld [smem:[#allocation0]]
  $region53: #{tpu_custom_call.1} parent=0
    _
  %s7 = ssub.s32 1, %s5
  %s8 = scalar_select 0, %s7, %s5
  %9 = sst [smem:[#allocation2]] %s3
  $region1: #{tpu_custom_call.1} parent=0
    #allocation3 [shape = 'u8[16384]{0}', space=vmem, size = 0x4000, scoped, tag = 'input window, operand 0']
    #allocation4 [shape = 's32[2]{0}', space=sflag, size = 0x8, scoped, tag = 'scoped memory for tpu_custom_call.1']
    #allocation5 [shape = 's32[2]{0}', space=sflag, size = 0x8, scoped, tag = 'scoped memory for tpu_custom_call.1']
    #allocation6 [shape = 'u8[16384]{0}', space=vmem, size = 0x4000, scoped, tag = 'output window, operand 0']
    %10 = vsyncpa [#allocation4], 0
    %s11 = scalar_lea.sflag [#allocation4], 1
    %12 = vsyncpa %s11, 0
    %13 = vsyncpa [#allocation5], 0
    %s14 = scalar_lea.sflag [#allocation5], 1
    %15 = vsyncpa %s14, 0
    loop: start=0, step=1, limit=4
    $region2: #{tpu_custom_call.1} parent=1 // loop_pre_header
      _
    $region3: #{tpu_custom_call.1} parent=1 // loop_header
      %s17 = sphi 0, %s21
      %p18 = scmp.ge.s32.totalorder %s17, 4
      %s27 = sphi 0, %s29
      %s30 = sphi 0, %s27
      %s31 = sphi 0, %s30
      %s47 = sphi 0, %s31
      %s51 = sphi 0, %s51
      %s53 = sphi 0, %s51
      %s54 = sphi 0, %s53
      %s68 = sphi 0, %s54
      %s72 = sphi 0, %s72
      %s74 = sphi 0, %s72
      %s75 = sphi 0, %s74
      %s89 = sphi 0, %s75
      %s93 = sphi 0, %s93
      %s95 = sphi 0, %s93
      %s96 = sphi 0, %s95
      %s110 = sphi 0, %s96
      %s116 = sphi 0, %s118
      %s119 = sphi 0, %s116
      %s120 = sphi 0, %s119
      %s136 = sphi 0, %s120
    $region4: #{tpu_custom_call.1} parent=1 // loop_header_branch
      %20 = sbr.rel (%p18) target = $region8
    $region5: #{tpu_custom_call.1} parent=1 // loop_body
      %s22 = ssub.s32 %s17, 1
      %s23 = ssub.s32 %s17, 2
      %s24 = sadd.s32 %s17, 1
      %s25 = ssub.s32 %s17, %s24
      %p26 = scmp.eq.s32.totalorder %s25, 0
      %s28 = sadd.s32 %s27, 1
      %s29 = scalar_select %p26, %s27, %s28
      %p32 = pneg %p26
      %p33 = scmp.eq.s32.totalorder %s17, 1
      %p34 = por %p32, %p33
      %p35 = scmp.ne.s32.totalorder %s27, %s30
      %p36 = scmp.eq.s32.totalorder %s17, 0
      %p37 = por %p35, %p36
      %p38 = scmp.ne.s32.totalorder %s27, %s30
      %p39 = scmp.eq.s32.totalorder %s22, 1
      %p40 = por %p38, %p39
      %p41 = scmp.ne.s32.totalorder %s30, %s31
      %p42 = scmp.eq.s32.totalorder %s22, 0
      %p43 = por %p41, %p42
      %p44 = scmp.ne.s32.totalorder %s30, %s31
      %p45 = scmp.eq.s32.totalorder %s23, 1
      %p46 = por %p44, %p45
      %p48 = scmp.ne.s32.totalorder %s31, %s47
      %p49 = scmp.eq.s32.totalorder %s23, 0
      %p50 = por %p48, %p49
      %s52 = sadd.s32 %s51, 1
      %p55 = scmp.eq.s32.totalorder %s17, 1
      %p56 = scmp.ne.s32.totalorder %s51, %s53
      %p57 = scmp.eq.s32.totalorder %s17, 0
      %p58 = por %p56, %p57
      %p59 = scmp.ne.s32.totalorder %s51, %s53
      %p60 = scmp.eq.s32.totalorder %s22, 1
      %p61 = por %p59, %p60
      %p62 = scmp.ne.s32.totalorder %s53, %s54
      %p63 = scmp.eq.s32.totalorder %s22, 0
      %p64 = por %p62, %p63
      %p65 = scmp.ne.s32.totalorder %s53, %s54
      %p66 = scmp.eq.s32.totalorder %s23, 1
      %p67 = por %p65, %p66
      %p69 = scmp.ne.s32.totalorder %s54, %s68
      %p70 = scmp.eq.s32.totalorder %s23, 0
      %p71 = por %p69, %p70
      %s73 = sadd.s32 %s72, 1
      %p76 = scmp.eq.s32.totalorder %s17, 1
      %p77 = scmp.ne.s32.totalorder %s72, %s74
      %p78 = scmp.eq.s32.totalorder %s17, 0
      %p79 = por %p77, %p78
      %p80 = scmp.ne.s32.totalorder %s72, %s74
      %p81 = scmp.eq.s32.totalorder %s22, 1
      %p82 = por %p80, %p81
      %p83 = scmp.ne.s32.totalorder %s74, %s75
      %p84 = scmp.eq.s32.totalorder %s22, 0
      %p85 = por %p83, %p84
      %p86 = scmp.ne.s32.totalorder %s74, %s75
      %p87 = scmp.eq.s32.totalorder %s23, 1
      %p88 = por %p86, %p87
      %p90 = scmp.ne.s32.totalorder %s75, %s89
      %p91 = scmp.eq.s32.totalorder %s23, 0
      %p92 = por %p90, %p91
      %s94 = sadd.s32 %s93, 1
      %p97 = scmp.eq.s32.totalorder %s17, 1
      %p98 = scmp.ne.s32.totalorder %s93, %s95
      %p99 = scmp.eq.s32.totalorder %s17, 0
      %p100 = por %p98, %p99
      %p101 = scmp.ne.s32.totalorder %s93, %s95
      %p102 = scmp.eq.s32.totalorder %s22, 1
      %p103 = por %p101, %p102
      %p104 = scmp.ne.s32.totalorder %s95, %s96
      %p105 = scmp.eq.s32.totalorder %s22, 0
      %p106 = por %p104, %p105
      %p107 = scmp.ne.s32.totalorder %s95, %s96
      %p108 = scmp.eq.s32.totalorder %s23, 1
      %p109 = por %p107, %p108
      %p111 = scmp.ne.s32.totalorder %s96, %s110
      %p112 = scmp.eq.s32.totalorder %s23, 0
      %p113 = por %p111, %p112
      %s114 = ssub.s32 %s17, %s24
      %p115 = scmp.eq.s32.totalorder %s114, 0
      %s117 = sadd.s32 %s116, 1
      %s118 = scalar_select %p115, %s116, %s117
      %p121 = pneg %p115
      %p122 = scmp.eq.s32.totalorder %s17, 1
      %p123 = por %p121, %p122
      %p124 = scmp.ne.s32.totalorder %s116, %s119
      %p125 = scmp.eq.s32.totalorder %s17, 0
      %p126 = por %p124, %p125
      %p127 = scmp.ne.s32.totalorder %s116, %s119
      %p128 = scmp.eq.s32.totalorder %s22, 1
      %p129 = por %p127, %p128
      %p130 = scmp.ne.s32.totalorder %s119, %s120
      %p131 = scmp.eq.s32.totalorder %s22, 0
      %p132 = por %p130, %p131
      %p133 = scmp.ne.s32.totalorder %s119, %s120
      %p134 = scmp.eq.s32.totalorder %s23, 1
      %p135 = por %p133, %p134
      %p137 = scmp.ne.s32.totalorder %s120, %s136
      %p138 = scmp.eq.s32.totalorder %s23, 0
      %p139 = por %p137, %p138
      %p140 = scmp.le.s32.totalorder 1, %s17
      %p141 = scmp.lt.s32.totalorder %s17, 3
      %p142 = pnand %p140, %p141
      %p143 = pneg %p142
      // Predicated region
      $region9: #{tpu_custom_call.1} parent=5 // pred_check
        _
      $region10: #{tpu_custom_call.1} parent=5 // pred_check_branch
        %145 = sbr.rel (%p142) target = $region12
      $region11: #{tpu_custom_call.1} parent=5 // pred_region
        %s146 = ssub.s32 %s17, 1
        // Predicated region
        $region13: #{tpu_custom_call.1} parent=11 // pred_check
          %p147 = pneg %p64
        $region14: #{tpu_custom_call.1} parent=11 // pred_check_branch
          %149 = sbr.rel (%p147) target = $region16
        $region15: #{tpu_custom_call.1} parent=11 // pred_region
          _
        $region16: #{tpu_custom_call.1} parent=11 // pred_fallthru
          _
        // Predicated region
        $region17: #{tpu_custom_call.1} parent=11 // pred_check
          %p150 = pneg %p85
        $region18: #{tpu_custom_call.1} parent=11 // pred_check_branch
          %152 = sbr.rel (%p150) target = $region20
        $region19: #{tpu_custom_call.1} parent=11 // pred_region
          _
        $region20: #{tpu_custom_call.1} parent=11 // pred_fallthru
          _
        // Predicated region
        $region21: #{tpu_custom_call.1} parent=11 // pred_check
          %p153 = pneg %p106
        $region22: #{tpu_custom_call.1} parent=11 // pred_check_branch
          %155 = sbr.rel (%p153) target = $region24
        $region23: #{tpu_custom_call.1} parent=11 // pred_region
          _
        $region24: #{tpu_custom_call.1} parent=11 // pred_fallthru
          _
      $region12: #{tpu_custom_call.1} parent=5 // pred_fallthru
        _
      %p156 = scmp.lt.s32.totalorder %s17, 2
      // Predicated region
      $region25: #{tpu_custom_call.1} parent=5 // pred_check
        %p157 = pneg %p156
      $region26: #{tpu_custom_call.1} parent=5 // pred_check_branch
        %159 = sbr.rel (%p157) target = $region28
      $region27: #{tpu_custom_call.1} parent=5 // pred_region
        // Predicated region
        $region29: #{tpu_custom_call.1} parent=27 // pred_check
          %p160 = pneg %p37
        $region30: #{tpu_custom_call.1} parent=27 // pred_check_branch
          %162 = sbr.rel (%p160) target = $region32
        $region31: #{tpu_custom_call.1} parent=27 // pred_region
          %s163 = sand.u32 %s27, 1
          %s164 = scalar_lea.sflag [#allocation4], %s163
          %s165 = sand.u32 %s27, 1
          %s166 = smul.addr %s165, 16
          %s167 = scalar_lea.vmem [#allocation3], %s166
          %169 = vsyncadd %s164, 0
          %s170 = smul.addr %s17, 2
          %s171 = smul.addr %s170, 8
          %s172 = scalar_lea.hbm %s0, %s171
          %s174 = sshll.u32 %s172, 4
          %s175 = int_to_ptr.hbm [resolvable:$true] %s174
          %s176 = sshll.u32 %s167, 4
          %s177 = int_to_ptr.vmem [resolvable:$true] %s176
          %179 = dma.hbm_to_vmem [thread:$0]  %s175, 256, %s177, %s164
        $region32: #{tpu_custom_call.1} parent=27 // pred_fallthru
          _
      $region28: #{tpu_custom_call.1} parent=5 // pred_fallthru
        _
      %p180 = scmp.le.s32.totalorder 1, %s17
      %p181 = scmp.lt.s32.totalorder %s17, 3
      %p182 = pnand %p180, %p181
      %p183 = pneg %p182
      // Predicated region
      $region33: #{tpu_custom_call.1} parent=5 // pred_check
        _
      $region34: #{tpu_custom_call.1} parent=5 // pred_check_branch
        %185 = sbr.rel (%p182) target = $region36
      $region35: #{tpu_custom_call.1} parent=5 // pred_region
        %s186 = ssub.s32 %s17, 1
        %s187 = sand.u32 %s30, 1
        %s188 = scalar_lea.sflag [#allocation4], %s187
        %s189 = sand.u32 %s30, 1
        %s190 = smul.addr %s189, 16
        %s191 = scalar_lea.vmem [#allocation3], %s190
        // Predicated region
        $region37: #{tpu_custom_call.1} parent=35 // pred_check
          %p192 = pneg %p43
        $region38: #{tpu_custom_call.1} parent=35 // pred_check_branch
          %194 = sbr.rel (%p192) target = $region40
        $region39: #{tpu_custom_call.1} parent=35 // pred_region
          %196 = dma.done %s188, 256
        $region40: #{tpu_custom_call.1} parent=35 // pred_fallthru
          _
        %s197 = sand.u32 %s30, 1
        %s198 = scalar_lea.sflag [#allocation4], %s197
        %s199 = sand.u32 %s30, 1
        %s200 = smul.addr %s199, 16
        %s201 = scalar_lea.vmem [#allocation3], %s200
        %p202 = pneg %p43
        %p203 = pneg %p40
        %p204 = pneg %p64
        %p205 = pneg %p61
        %p206 = pneg %p85
        %p207 = pneg %p82
        %p208 = pneg %p106
        %p209 = pneg %p103
        %p210 = pneg %p132
        %p211 = pneg %p129
        %s212 = sand.u32 %s119, 1
        %s213 = scalar_lea.sflag [#allocation5], %s212
        %s214 = sand.u32 %s119, 1
        %s215 = smul.addr %s214, 16
        %s216 = scalar_lea.vmem [#allocation6], %s215
        %v217 = vld [vmem:[%s191] sm:$0xff]
        %v218 = vld [vmem:[%s191 + $0x8] sm:$0xff]
        %v219 = vld [vmem:[%s1] sm:$0xff]
        %v220 = vld [vmem:[%s1 + $0x8] sm:$0xff]
        %v221 = vld [vmem:[%s1 + $0x10] sm:$0xff]
        %v222 = vld [vmem:[%s2] sm:$0xff]
        %v223 = vld [vmem:[%s2 + $0x8] sm:$0xff]
        %v224 = vld [vmem:[%s2 + $0x10] sm:$0xff]
        %226 = vset.pattern.permute.xlu0 0
        %227 = vperm.xlu0 %226, %v222
        %v228 = vpop.permute.xlu0 %227
        %231 = vset.pattern.permute.xlu0 0
        %232 = vperm.xlu0 %231, %v223
        %v233 = vpop.permute.xlu0 %232
        %236 = vset.pattern.permute.xlu0 0
        %237 = vperm.xlu0 %236, %v224
        %v238 = vpop.permute.xlu0 %237
        %vm240 = vcmask 64512
        %v242 = vsel %vm240, %v219, 0
        %v245 = vsel %vm240, %v220, 0
        %v248 = vsel %vm240, %v221, 0
        %250 = vmatpush.msra.mxu0 0.0
        %251 = vmatpush.msra.mxu0 0.0
        %252 = vmatpush.msra.mxu0 0.0
        %253 = vmatpush.msra.mxu0 0.0
        %254 = vmatpush.msra.mxu0 0.0
        %255 = vmatpush.msra.mxu0 0.0
        %256 = vmatpush.msra.mxu0 0.0
        %257 = vmatpush.msra.mxu0 0.0
        %258 = vmatpush.msra.mxu0 0.0
        %259 = vmatpush.msra.mxu0 0.0
        %260 = vmatpush.msra.mxu0 0.0
        %261 = vmatpush.msra.mxu0 0.0
        %262 = vmatpush.msra.mxu0 0.0
        %263 = vmatpush.msra.mxu0 0.0
        %264 = vmatpush.msra.mxu0 0.0
        %265 = vmatpush.msra.mxu0 %v217
        %266 = vmatmul.f32.gmra.mxu0 %v242
        %v267 = vpop.f32.mrf.mxu0
        %v268 = vadd.f32 %v228, %v267
        %269 = vmatmul.f32.gmra.mxu0 %v245
        %v270 = vpop.f32.mrf.mxu0
        %v271 = vadd.f32 %v233, %v270
        %272 = vmatmul.f32.gmra.mxu0 %v248
        %v273 = vpop.f32.mrf.mxu0
        %v274 = vadd.f32 %v238, %v273
        %275 = vdwg.mxu0
        %276 = vmatpush.msra.mxu0 0.0
        %277 = vmatpush.msra.mxu0 0.0
        %278 = vmatpush.msra.mxu0 0.0
        %279 = vmatpush.msra.mxu0 0.0
        %280 = vmatpush.msra.mxu0 0.0
        %281 = vmatpush.msra.mxu0 0.0
        %282 = vmatpush.msra.mxu0 0.0
        %283 = vmatpush.msra.mxu0 0.0
        %284 = vmatpush.msra.mxu0 0.0
        %285 = vmatpush.msra.mxu0 0.0
        %286 = vmatpush.msra.mxu0 0.0
        %287 = vmatpush.msra.mxu0 0.0
        %288 = vmatpush.msra.mxu0 0.0
        %289 = vmatpush.msra.mxu0 0.0
        %290 = vmatpush.msra.mxu0 0.0
        %291 = vmatpush.msra.mxu0 %v218
        %292 = vmatmul.f32.gmra.mxu0 %v242
        %v293 = vpop.f32.mrf.mxu0
        %v294 = vadd.f32 %v228, %v293
        %295 = vmatmul.f32.gmra.mxu0 %v245
        %v296 = vpop.f32.mrf.mxu0
        %v297 = vadd.f32 %v233, %v296
        %298 = vmatmul.f32.gmra.mxu0 %v248
        %v299 = vpop.f32.mrf.mxu0
        %v300 = vadd.f32 %v238, %v299
        %301 = vdwg.mxu0
        %302 = vxpose.xlu0.b32.start [1/16] %v268, 128
        %303 = vxpose.xlu0.b32.cont [2/16] %v271, 128
        %304 = vxpose.xlu0.b32.cont [3/16] %v274, 128
        %305 = vxpose.xlu0.b32.cont [4/16] 0.0, 128
        %306 = vxpose.xlu0.b32.cont [5/16] 0.0, 128
        %307 = vxpose.xlu0.b32.cont [6/16] 0.0, 128
        %308 = vxpose.xlu0.b32.cont [7/16] 0.0, 128
        %309 = vxpose.xlu0.b32.cont [8/16] 0.0, 128
        %310 = vxpose.xlu0.b32.cont [9/16] 0.0, 128
        %311 = vxpose.xlu0.b32.cont [10/16] 0.0, 128
        %312 = vxpose.xlu0.b32.cont [11/16] 0.0, 128
        %313 = vxpose.xlu0.b32.cont [12/16] 0.0, 128
        %314 = vxpose.xlu0.b32.cont [13/16] 0.0, 128
        %315 = vxpose.xlu0.b32.cont [14/16] 0.0, 128
        %316 = vxpose.xlu0.b32.cont [15/16] 0.0, 128
        %317 = vxpose.xlu0.b32.end [16/16] 0.0, 128
        %v318 = vpop.trf.xlu0
        %v319 = vpop.trf.xlu0
        %v320 = vpop.trf.xlu0
        %v321 = vpop.trf.xlu0
        %v322 = vpop.trf.xlu0
        %v323 = vpop.trf.xlu0
        %v324 = vpop.trf.xlu0
        %v325 = vpop.trf.xlu0
        %v326 = vpop.trf.xlu0
        %v327 = vpop.trf.xlu0
        %v328 = vpop.trf.xlu0
        %v329 = vpop.trf.xlu0
        %v330 = vpop.trf.xlu0
        %v331 = vpop.trf.xlu0
        %v332 = vpop.trf.xlu0
        %v333 = vpop.trf.xlu0
        %334 = vxpose.xlu0.b32.start [1/16] %v294, 128
        %335 = vxpose.xlu0.b32.cont [2/16] %v297, 128
        %336 = vxpose.xlu0.b32.cont [3/16] %v300, 128
        %337 = vxpose.xlu0.b32.cont [4/16] 0.0, 128
        %338 = vxpose.xlu0.b32.cont [5/16] 0.0, 128
        %339 = vxpose.xlu0.b32.cont [6/16] 0.0, 128
        %340 = vxpose.xlu0.b32.cont [7/16] 0.0, 128
        %341 = vxpose.xlu0.b32.cont [8/16] 0.0, 128
        %342 = vxpose.xlu0.b32.cont [9/16] 0.0, 128
        %343 = vxpose.xlu0.b32.cont [10/16] 0.0, 128
        %344 = vxpose.xlu0.b32.cont [11/16] 0.0, 128
        %345 = vxpose.xlu0.b32.cont [12/16] 0.0, 128
        %346 = vxpose.xlu0.b32.cont [13/16] 0.0, 128
        %347 = vxpose.xlu0.b32.cont [14/16] 0.0, 128
        %348 = vxpose.xlu0.b32.cont [15/16] 0.0, 128
        %349 = vxpose.xlu0.b32.end [16/16] 0.0, 128
        %v350 = vpop.trf.xlu0
        %v351 = vpop.trf.xlu0
        %v352 = vpop.trf.xlu0
        %v353 = vpop.trf.xlu0
        %v354 = vpop.trf.xlu0
        %v355 = vpop.trf.xlu0
        %v356 = vpop.trf.xlu0
        %v357 = vpop.trf.xlu0
        %v358 = vpop.trf.xlu0
        %v359 = vpop.trf.xlu0
        %v360 = vpop.trf.xlu0
        %v361 = vpop.trf.xlu0
        %v362 = vpop.trf.xlu0
        %v363 = vpop.trf.xlu0
        %v364 = vpop.trf.xlu0
        %v365 = vpop.trf.xlu0
        %v366 = vrot.slane %v322, 4
        %vm367 = vcmask 1047556
        %v368 = vsel %vm367, %v366, %v318
        %v369 = vrot.slane %v318, 4
        %v370 = vsel %vm367, %v322, %v369
        %v372 = vunpack.c.l.s4 1983009808
        %v373 = vunpack.c.0.s8 %v372
        %v374 = vperm.slane %v368, %v373
        %v376 = vunpack.c.l.s4 1983009808
        %v377 = vunpack.c.0.s8 %v376
        %v378 = vperm.slane %v370, %v377
        %v379 = vrot.slane %v324, 4
        %v380 = vsel %vm367, %v379, %v320
        %v381 = vrot.slane %v320, 4
        %v382 = vsel %vm367, %v324, %v381
        %v384 = vunpack.c.l.s4 1983009808
        %v385 = vunpack.c.0.s8 %v384
        %v386 = vperm.slane %v380, %v385
        %v388 = vunpack.c.l.s4 1983009808
        %v389 = vunpack.c.0.s8 %v388
        %v390 = vperm.slane %v382, %v389
        %v391 = vrot.slane %v330, 4
        %v392 = vsel %vm367, %v391, %v326
        %v393 = vrot.slane %v326, 4
        %v394 = vsel %vm367, %v330, %v393
        %v396 = vunpack.c.l.s4 1983009808
        %v397 = vunpack.c.0.s8 %v396
        %v398 = vperm.slane %v392, %v397
        %v400 = vunpack.c.l.s4 1983009808
        %v401 = vunpack.c.0.s8 %v400
        %v402 = vperm.slane %v394, %v401
        %v403 = vrot.slane %v332, 4
        %v404 = vsel %vm367, %v403, %v328
        %v405 = vrot.slane %v328, 4
        %v406 = vsel %vm367, %v332, %v405
        %v408 = vunpack.c.l.s4 1983009808
        %v409 = vunpack.c.0.s8 %v408
        %v410 = vperm.slane %v404, %v409
        %v412 = vunpack.c.l.s4 1983009808
        %v413 = vunpack.c.0.s8 %v412
        %v414 = vperm.slane %v406, %v413
        %v415 = vrot.slane %v386, 4
        %v416 = vsel %vm367, %v415, %v374
        %v417 = vrot.slane %v374, 4
        %v418 = vsel %vm367, %v386, %v417
        %v420 = vunpack.c.l.s4 1934713408
        %v421 = vunpack.c.0.s8 %v420
        %v422 = vperm.slane %v416, %v421
        %v424 = vunpack.c.l.s4 1934713408
        %v425 = vunpack.c.0.s8 %v424
        %v426 = vperm.slane %v418, %v425
        %v427 = vrot.slane %v390, 4
        %v428 = vsel %vm367, %v427, %v378
        %v429 = vrot.slane %v378, 4
        %v430 = vsel %vm367, %v390, %v429
        %v432 = vunpack.c.l.s4 1934713408
        %v433 = vunpack.c.0.s8 %v432
        %v434 = vperm.slane %v428, %v433
        %v436 = vunpack.c.l.s4 1934713408
        %v437 = vunpack.c.0.s8 %v436
        %v438 = vperm.slane %v430, %v437
        %v439 = vrot.slane %v410, 4
        %v440 = vsel %vm367, %v439, %v398
        %v441 = vrot.slane %v398, 4
        %v442 = vsel %vm367, %v410, %v441
        %v444 = vunpack.c.l.s4 1934713408
        %v445 = vunpack.c.0.s8 %v444
        %v446 = vperm.slane %v440, %v445
        %v448 = vunpack.c.l.s4 1934713408
        %v449 = vunpack.c.0.s8 %v448
        %v450 = vperm.slane %v442, %v449
        %v451 = vrot.slane %v414, 4
        %v452 = vsel %vm367, %v451, %v402
        %v453 = vrot.slane %v402, 4
        %v454 = vsel %vm367, %v414, %v453
        %v456 = vunpack.c.l.s4 1934713408
        %v457 = vunpack.c.0.s8 %v456
        %v458 = vperm.slane %v452, %v457
        %v460 = vunpack.c.l.s4 1934713408
        %v461 = vunpack.c.0.s8 %v460
        %v462 = vperm.slane %v454, %v461
        %v463 = vrot.slane %v446, 4
        %v464 = vsel %vm367, %v463, %v422
        %v465 = vrot.slane %v422, 4
        %v466 = vsel %vm367, %v446, %v465
        %v467 = vrot.slane %v450, 4
        %v468 = vsel %vm367, %v467, %v426
        %v469 = vrot.slane %v426, 4
        %v470 = vsel %vm367, %v450, %v469
        %v471 = vrot.slane %v458, 4
        %v472 = vsel %vm367, %v471, %v434
        %v473 = vrot.slane %v434, 4
        %v474 = vsel %vm367, %v458, %v473
        %v475 = vrot.slane %v462, 4
        %v476 = vsel %vm367, %v475, %v438
        %v477 = vrot.slane %v438, 4
        %v478 = vsel %vm367, %v462, %v477
        %v479 = vrot.slane %v354, 4
        %v480 = vsel %vm367, %v479, %v350
        %v481 = vrot.slane %v350, 4
        %v482 = vsel %vm367, %v354, %v481
        %v484 = vunpack.c.l.s4 1983009808
        %v485 = vunpack.c.0.s8 %v484
        %v486 = vperm.slane %v480, %v485
        %v488 = vunpack.c.l.s4 1983009808
        %v489 = vunpack.c.0.s8 %v488
        %v490 = vperm.slane %v482, %v489
        %v491 = vrot.slane %v356, 4
        %v492 = vsel %vm367, %v491, %v352
        %v493 = vrot.slane %v352, 4
        %v494 = vsel %vm367, %v356, %v493
        %v496 = vunpack.c.l.s4 1983009808
        %v497 = vunpack.c.0.s8 %v496
        %v498 = vperm.slane %v492, %v497
        %v500 = vunpack.c.l.s4 1983009808
        %v501 = vunpack.c.0.s8 %v500
        %v502 = vperm.slane %v494, %v501
        %v503 = vrot.slane %v362, 4
        %v504 = vsel %vm367, %v503, %v358
        %v505 = vrot.slane %v358, 4
        %v506 = vsel %vm367, %v362, %v505
        %v508 = vunpack.c.l.s4 1983009808
        %v509 = vunpack.c.0.s8 %v508
        %v510 = vperm.slane %v504, %v509
        %v512 = vunpack.c.l.s4 1983009808
        %v513 = vunpack.c.0.s8 %v512
        %v514 = vperm.slane %v506, %v513
        %v515 = vrot.slane %v364, 4
        %v516 = vsel %vm367, %v515, %v360
        %v517 = vrot.slane %v360, 4
        %v518 = vsel %vm367, %v364, %v517
        %v520 = vunpack.c.l.s4 1983009808
        %v521 = vunpack.c.0.s8 %v520
        %v522 = vperm.slane %v516, %v521
        %v524 = vunpack.c.l.s4 1983009808
        %v525 = vunpack.c.0.s8 %v524
        %v526 = vperm.slane %v518, %v525
        %v527 = vrot.slane %v498, 4
        %v528 = vsel %vm367, %v527, %v486
        %v529 = vrot.slane %v486, 4
        %v530 = vsel %vm367, %v498, %v529
        %v532 = vunpack.c.l.s4 1934713408
        %v533 = vunpack.c.0.s8 %v532
        %v534 = vperm.slane %v528, %v533
        %v536 = vunpack.c.l.s4 1934713408
        %v537 = vunpack.c.0.s8 %v536
        %v538 = vperm.slane %v530, %v537
        %v539 = vrot.slane %v502, 4
        %v540 = vsel %vm367, %v539, %v490
        %v541 = vrot.slane %v490, 4
        %v542 = vsel %vm367, %v502, %v541
        %v544 = vunpack.c.l.s4 1934713408
        %v545 = vunpack.c.0.s8 %v544
        %v546 = vperm.slane %v540, %v545
        %v548 = vunpack.c.l.s4 1934713408
        %v549 = vunpack.c.0.s8 %v548
        %v550 = vperm.slane %v542, %v549
        %v551 = vrot.slane %v522, 4
        %v552 = vsel %vm367, %v551, %v510
        %v553 = vrot.slane %v510, 4
        %v554 = vsel %vm367, %v522, %v553
        %v556 = vunpack.c.l.s4 1934713408
        %v557 = vunpack.c.0.s8 %v556
        %v558 = vperm.slane %v552, %v557
        %v560 = vunpack.c.l.s4 1934713408
        %v561 = vunpack.c.0.s8 %v560
        %v562 = vperm.slane %v554, %v561
        %v563 = vrot.slane %v526, 4
        %v564 = vsel %vm367, %v563, %v514
        %v565 = vrot.slane %v514, 4
        %v566 = vsel %vm367, %v526, %v565
        %v568 = vunpack.c.l.s4 1934713408
        %v569 = vunpack.c.0.s8 %v568
        %v570 = vperm.slane %v564, %v569
        %v572 = vunpack.c.l.s4 1934713408
        %v573 = vunpack.c.0.s8 %v572
        %v574 = vperm.slane %v566, %v573
        %v575 = vrot.slane %v558, 4
        %v576 = vsel %vm367, %v575, %v534
        %v577 = vrot.slane %v534, 4
        %v578 = vsel %vm367, %v558, %v577
        %v579 = vrot.slane %v562, 4
        %v580 = vsel %vm367, %v579, %v538
        %v581 = vrot.slane %v538, 4
        %v582 = vsel %vm367, %v562, %v581
        %v583 = vrot.slane %v570, 4
        %v584 = vsel %vm367, %v583, %v546
        %v585 = vrot.slane %v546, 4
        %v586 = vsel %vm367, %v570, %v585
        %v587 = vrot.slane %v574, 4
        %v588 = vsel %vm367, %v587, %v550
        %v589 = vrot.slane %v550, 4
        %v590 = vsel %vm367, %v574, %v589
        %v591 = vrot.slane %v323, 4
        %v592 = vsel %vm367, %v591, %v319
        %v593 = vrot.slane %v319, 4
        %v594 = vsel %vm367, %v323, %v593
        %v596 = vunpack.c.l.s4 1983009808
        %v597 = vunpack.c.0.s8 %v596
        %v598 = vperm.slane %v592, %v597
        %v600 = vunpack.c.l.s4 1983009808
        %v601 = vunpack.c.0.s8 %v600
        %v602 = vperm.slane %v594, %v601
        %v603 = vrot.slane %v325, 4
        %v604 = vsel %vm367, %v603, %v321
        %v605 = vrot.slane %v321, 4
        %v606 = vsel %vm367, %v325, %v605
        %v608 = vunpack.c.l.s4 1983009808
        %v609 = vunpack.c.0.s8 %v608
        %v610 = vperm.slane %v604, %v609
        %v612 = vunpack.c.l.s4 1983009808
        %v613 = vunpack.c.0.s8 %v612
        %v614 = vperm.slane %v606, %v613
        %v615 = vrot.slane %v331, 4
        %v616 = vsel %vm367, %v615, %v327
        %v617 = vrot.slane %v327, 4
        %v618 = vsel %vm367, %v331, %v617
        %v620 = vunpack.c.l.s4 1983009808
        %v621 = vunpack.c.0.s8 %v620
        %v622 = vperm.slane %v616, %v621
        %v624 = vunpack.c.l.s4 1983009808
        %v625 = vunpack.c.0.s8 %v624
        %v626 = vperm.slane %v618, %v625
        %v627 = vrot.slane %v333, 4
        %v628 = vsel %vm367, %v627, %v329
        %v629 = vrot.slane %v329, 4
        %v630 = vsel %vm367, %v333, %v629
        %v632 = vunpack.c.l.s4 1983009808
        %v633 = vunpack.c.0.s8 %v632
        %v634 = vperm.slane %v628, %v633
        %v636 = vunpack.c.l.s4 1983009808
        %v637 = vunpack.c.0.s8 %v636
        %v638 = vperm.slane %v630, %v637
        %v639 = vrot.slane %v610, 4
        %v640 = vsel %vm367, %v639, %v598
        %v641 = vrot.slane %v598, 4
        %v642 = vsel %vm367, %v610, %v641
        %v644 = vunpack.c.l.s4 1934713408
        %v645 = vunpack.c.0.s8 %v644
        %v646 = vperm.slane %v640, %v645
        %v648 = vunpack.c.l.s4 1934713408
        %v649 = vunpack.c.0.s8 %v648
        %v650 = vperm.slane %v642, %v649
        %v651 = vrot.slane %v614, 4
        %v652 = vsel %vm367, %v651, %v602
        %v653 = vrot.slane %v602, 4
        %v654 = vsel %vm367, %v614, %v653
        %v656 = vunpack.c.l.s4 1934713408
        %v657 = vunpack.c.0.s8 %v656
        %v658 = vperm.slane %v652, %v657
        %v660 = vunpack.c.l.s4 1934713408
        %v661 = vunpack.c.0.s8 %v660
        %v662 = vperm.slane %v654, %v661
        %v663 = vrot.slane %v634, 4
        %v664 = vsel %vm367, %v663, %v622
        %v665 = vrot.slane %v622, 4
        %v666 = vsel %vm367, %v634, %v665
        %v668 = vunpack.c.l.s4 1934713408
        %v669 = vunpack.c.0.s8 %v668
        %v670 = vperm.slane %v664, %v669
        %v672 = vunpack.c.l.s4 1934713408
        %v673 = vunpack.c.0.s8 %v672
        %v674 = vperm.slane %v666, %v673
        %v675 = vrot.slane %v638, 4
        %v676 = vsel %vm367, %v675, %v626
        %v677 = vrot.slane %v626, 4
        %v678 = vsel %vm367, %v638, %v677
        %v680 = vunpack.c.l.s4 1934713408
        %v681 = vunpack.c.0.s8 %v680
        %v682 = vperm.slane %v676, %v681
        %v684 = vunpack.c.l.s4 1934713408
        %v685 = vunpack.c.0.s8 %v684
        %v686 = vperm.slane %v678, %v685
        %v687 = vrot.slane %v670, 4
        %v688 = vsel %vm367, %v687, %v646
        %v689 = vrot.slane %v646, 4
        %v690 = vsel %vm367, %v670, %v689
        %v691 = vrot.slane %v674, 4
        %v692 = vsel %vm367, %v691, %v650
        %v693 = vrot.slane %v650, 4
        %v694 = vsel %vm367, %v674, %v693
        %v695 = vrot.slane %v682, 4
        %v696 = vsel %vm367, %v695, %v658
        %v697 = vrot.slane %v658, 4
        %v698 = vsel %vm367, %v682, %v697
        %v699 = vrot.slane %v686, 4
        %v700 = vsel %vm367, %v699, %v662
        %v701 = vrot.slane %v662, 4
        %v702 = vsel %vm367, %v686, %v701
        %v703 = vrot.slane %v355, 4
        %v704 = vsel %vm367, %v703, %v351
        %v705 = vrot.slane %v351, 4
        %v706 = vsel %vm367, %v355, %v705
        %v708 = vunpack.c.l.s4 1983009808
        %v709 = vunpack.c.0.s8 %v708
        %v710 = vperm.slane %v704, %v709
        %v712 = vunpack.c.l.s4 1983009808
        %v713 = vunpack.c.0.s8 %v712
        %v714 = vperm.slane %v706, %v713
        %v715 = vrot.slane %v357, 4
        %v716 = vsel %vm367, %v715, %v353
        %v717 = vrot.slane %v353, 4
        %v718 = vsel %vm367, %v357, %v717
        %v720 = vunpack.c.l.s4 1983009808
        %v721 = vunpack.c.0.s8 %v720
        %v722 = vperm.slane %v716, %v721
        %v724 = vunpack.c.l.s4 1983009808
        %v725 = vunpack.c.0.s8 %v724
        %v726 = vperm.slane %v718, %v725
        %v727 = vrot.slane %v363, 4
        %v728 = vsel %vm367, %v727, %v359
        %v729 = vrot.slane %v359, 4
        %v730 = vsel %vm367, %v363, %v729
        %v732 = vunpack.c.l.s4 1983009808
        %v733 = vunpack.c.0.s8 %v732
        %v734 = vperm.slane %v728, %v733
        %v736 = vunpack.c.l.s4 1983009808
        %v737 = vunpack.c.0.s8 %v736
        %v738 = vperm.slane %v730, %v737
        %v739 = vrot.slane %v365, 4
        %v740 = vsel %vm367, %v739, %v361
        %v741 = vrot.slane %v361, 4
        %v742 = vsel %vm367, %v365, %v741
        %v744 = vunpack.c.l.s4 1983009808
        %v745 = vunpack.c.0.s8 %v744
        %v746 = vperm.slane %v740, %v745
        %v748 = vunpack.c.l.s4 1983009808
        %v749 = vunpack.c.0.s8 %v748
        %v750 = vperm.slane %v742, %v749
        %v751 = vrot.slane %v722, 4
        %v752 = vsel %vm367, %v751, %v710
        %v753 = vrot.slane %v710, 4
        %v754 = vsel %vm367, %v722, %v753
        %v756 = vunpack.c.l.s4 1934713408
        %v757 = vunpack.c.0.s8 %v756
        %v758 = vperm.slane %v752, %v757
        %v760 = vunpack.c.l.s4 1934713408
        %v761 = vunpack.c.0.s8 %v760
        %v762 = vperm.slane %v754, %v761
        %v763 = vrot.slane %v726, 4
        %v764 = vsel %vm367, %v763, %v714
        %v765 = vrot.slane %v714, 4
        %v766 = vsel %vm367, %v726, %v765
        %v768 = vunpack.c.l.s4 1934713408
        %v769 = vunpack.c.0.s8 %v768
        %v770 = vperm.slane %v764, %v769
        %v772 = vunpack.c.l.s4 1934713408
        %v773 = vunpack.c.0.s8 %v772
        %v774 = vperm.slane %v766, %v773
        %v775 = vrot.slane %v746, 4
        %v776 = vsel %vm367, %v775, %v734
        %v777 = vrot.slane %v734, 4
        %v778 = vsel %vm367, %v746, %v777
        %v780 = vunpack.c.l.s4 1934713408
        %v781 = vunpack.c.0.s8 %v780
        %v782 = vperm.slane %v776, %v781
        %v784 = vunpack.c.l.s4 1934713408
        %v785 = vunpack.c.0.s8 %v784
        %v786 = vperm.slane %v778, %v785
        %v787 = vrot.slane %v750, 4
        %v788 = vsel %vm367, %v787, %v738
        %v789 = vrot.slane %v738, 4
        %v790 = vsel %vm367, %v750, %v789
        %v792 = vunpack.c.l.s4 1934713408
        %v793 = vunpack.c.0.s8 %v792
        %v794 = vperm.slane %v788, %v793
        %v796 = vunpack.c.l.s4 1934713408
        %v797 = vunpack.c.0.s8 %v796
        %v798 = vperm.slane %v790, %v797
        %v799 = vrot.slane %v782, 4
        %v800 = vsel %vm367, %v799, %v758
        %v801 = vrot.slane %v758, 4
        %v802 = vsel %vm367, %v782, %v801
        %v803 = vrot.slane %v786, 4
        %v804 = vsel %vm367, %v803, %v762
        %v805 = vrot.slane %v762, 4
        %v806 = vsel %vm367, %v786, %v805
        %v807 = vrot.slane %v794, 4
        %v808 = vsel %vm367, %v807, %v770
        %v809 = vrot.slane %v770, 4
        %v810 = vsel %vm367, %v794, %v809
        %v811 = vrot.slane %v798, 4
        %v812 = vsel %vm367, %v811, %v774
        %v813 = vrot.slane %v774, 4
        %v814 = vsel %vm367, %v798, %v813
        %847 = vrot.lane.b32.xlu0 %v318, 120
        %v848 = vpop.permute.xlu0 %847
        %849 = vrot.lane.b32.xlu0 %v319, 120
        %v850 = vpop.permute.xlu0 %849
        %851 = vrot.lane.b32.xlu0 %v320, 120
        %v852 = vpop.permute.xlu0 %851
        %853 = vrot.lane.b32.xlu0 %v321, 120
        %v854 = vpop.permute.xlu0 %853
        %855 = vrot.lane.b32.xlu0 %v322, 120
        %v856 = vpop.permute.xlu0 %855
        %857 = vrot.lane.b32.xlu0 %v323, 120
        %v858 = vpop.permute.xlu0 %857
        %859 = vrot.lane.b32.xlu0 %v324, 120
        %v860 = vpop.permute.xlu0 %859
        %861 = vrot.lane.b32.xlu0 %v325, 120
        %v862 = vpop.permute.xlu0 %861
        %863 = vrot.lane.b32.xlu0 %v326, 120
        %v864 = vpop.permute.xlu0 %863
        %865 = vrot.lane.b32.xlu0 %v327, 120
        %v866 = vpop.permute.xlu0 %865
        %867 = vrot.lane.b32.xlu0 %v328, 120
        %v868 = vpop.permute.xlu0 %867
        %869 = vrot.lane.b32.xlu0 %v329, 120
        %v870 = vpop.permute.xlu0 %869
        %871 = vrot.lane.b32.xlu0 %v330, 120
        %v872 = vpop.permute.xlu0 %871
        %873 = vrot.lane.b32.xlu0 %v331, 120
        %v874 = vpop.permute.xlu0 %873
        %875 = vrot.lane.b32.xlu0 %v332, 120
        %v876 = vpop.permute.xlu0 %875
        %877 = vrot.lane.b32.xlu0 %v333, 120
        %v878 = vpop.permute.xlu0 %877
        %879 = vrot.lane.b32.xlu0 %v350, 120
        %v880 = vpop.permute.xlu0 %879
        %881 = vrot.lane.b32.xlu0 %v351, 120
        %v882 = vpop.permute.xlu0 %881
        %883 = vrot.lane.b32.xlu0 %v352, 120
        %v884 = vpop.permute.xlu0 %883
        %885 = vrot.lane.b32.xlu0 %v353, 120
        %v886 = vpop.permute.xlu0 %885
        %887 = vrot.lane.b32.xlu0 %v354, 120
        %v888 = vpop.permute.xlu0 %887
        %889 = vrot.lane.b32.xlu0 %v355, 120
        %v890 = vpop.permute.xlu0 %889
        %891 = vrot.lane.b32.xlu0 %v356, 120
        %v892 = vpop.permute.xlu0 %891
        %893 = vrot.lane.b32.xlu0 %v357, 120
        %v894 = vpop.permute.xlu0 %893
        %895 = vrot.lane.b32.xlu0 %v358, 120
        %v896 = vpop.permute.xlu0 %895
        %897 = vrot.lane.b32.xlu0 %v359, 120
        %v898 = vpop.permute.xlu0 %897
        %899 = vrot.lane.b32.xlu0 %v360, 120
        %v900 = vpop.permute.xlu0 %899
        %901 = vrot.lane.b32.xlu0 %v361, 120
        %v902 = vpop.permute.xlu0 %901
        %903 = vrot.lane.b32.xlu0 %v362, 120
        %v904 = vpop.permute.xlu0 %903
        %905 = vrot.lane.b32.xlu0 %v363, 120
        %v906 = vpop.permute.xlu0 %905
        %907 = vrot.lane.b32.xlu0 %v364, 120
        %v908 = vpop.permute.xlu0 %907
        %909 = vrot.lane.b32.xlu0 %v365, 120
        %v910 = vpop.permute.xlu0 %909
        %v943 = vrot.slane %v856, 4
        %v944 = vsel %vm367, %v943, %v848
        %v945 = vrot.slane %v848, 4
        %v946 = vsel %vm367, %v856, %v945
        %v948 = vunpack.c.l.s4 1983009808
        %v949 = vunpack.c.0.s8 %v948
        %v950 = vperm.slane %v944, %v949
        %v952 = vunpack.c.l.s4 1983009808
        %v953 = vunpack.c.0.s8 %v952
        %v954 = vperm.slane %v946, %v953
        %v955 = vrot.slane %v860, 4
        %v956 = vsel %vm367, %v955, %v852
        %v957 = vrot.slane %v852, 4
        %v958 = vsel %vm367, %v860, %v957
        %v960 = vunpack.c.l.s4 1983009808
        %v961 = vunpack.c.0.s8 %v960
        %v962 = vperm.slane %v956, %v961
        %v964 = vunpack.c.l.s4 1983009808
        %v965 = vunpack.c.0.s8 %v964
        %v966 = vperm.slane %v958, %v965
        %v967 = vrot.slane %v872, 4
        %v968 = vsel %vm367, %v967, %v864
        %v969 = vrot.slane %v864, 4
        %v970 = vsel %vm367, %v872, %v969
        %v972 = vunpack.c.l.s4 1983009808
        %v973 = vunpack.c.0.s8 %v972
        %v974 = vperm.slane %v968, %v973
        %v976 = vunpack.c.l.s4 1983009808
        %v977 = vunpack.c.0.s8 %v976
        %v978 = vperm.slane %v970, %v977
        %v979 = vrot.slane %v876, 4
        %v980 = vsel %vm367, %v979, %v868
        %v981 = vrot.slane %v868, 4
        %v982 = vsel %vm367, %v876, %v981
        %v984 = vunpack.c.l.s4 1983009808
        %v985 = vunpack.c.0.s8 %v984
        %v986 = vperm.slane %v980, %v985
        %v988 = vunpack.c.l.s4 1983009808
        %v989 = vunpack.c.0.s8 %v988
        %v990 = vperm.slane %v982, %v989
        %v991 = vrot.slane %v962, 4
        %v992 = vsel %vm367, %v991, %v950
        %v993 = vrot.slane %v950, 4
        %v994 = vsel %vm367, %v962, %v993
        %v996 = vunpack.c.l.s4 1934713408
        %v997 = vunpack.c.0.s8 %v996
        %v998 = vperm.slane %v992, %v997
        %v1000 = vunpack.c.l.s4 1934713408
        %v1001 = vunpack.c.0.s8 %v1000
        %v1002 = vperm.slane %v994, %v1001
        %v1003 = vrot.slane %v966, 4
        %v1004 = vsel %vm367, %v1003, %v954
        %v1005 = vrot.slane %v954, 4
        %v1006 = vsel %vm367, %v966, %v1005
        %v1008 = vunpack.c.l.s4 1934713408
        %v1009 = vunpack.c.0.s8 %v1008
        %v1010 = vperm.slane %v1004, %v1009
        %v1012 = vunpack.c.l.s4 1934713408
        %v1013 = vunpack.c.0.s8 %v1012
        %v1014 = vperm.slane %v1006, %v1013
        %v1015 = vrot.slane %v986, 4
        %v1016 = vsel %vm367, %v1015, %v974
        %v1017 = vrot.slane %v974, 4
        %v1018 = vsel %vm367, %v986, %v1017
        %v1020 = vunpack.c.l.s4 1934713408
        %v1021 = vunpack.c.0.s8 %v1020
        %v1022 = vperm.slane %v1016, %v1021
        %v1024 = vunpack.c.l.s4 1934713408
        %v1025 = vunpack.c.0.s8 %v1024
        %v1026 = vperm.slane %v1018, %v1025
        %v1027 = vrot.slane %v990, 4
        %v1028 = vsel %vm367, %v1027, %v978
        %v1029 = vrot.slane %v978, 4
        %v1030 = vsel %vm367, %v990, %v1029
        %v1032 = vunpack.c.l.s4 1934713408
        %v1033 = vunpack.c.0.s8 %v1032
        %v1034 = vperm.slane %v1028, %v1033
        %v1036 = vunpack.c.l.s4 1934713408
        %v1037 = vunpack.c.0.s8 %v1036
        %v1038 = vperm.slane %v1030, %v1037
        %v1039 = vrot.slane %v1022, 4
        %v1040 = vsel %vm367, %v1039, %v998
        %v1041 = vrot.slane %v998, 4
        %v1042 = vsel %vm367, %v1022, %v1041
        %v1043 = vrot.slane %v1026, 4
        %v1044 = vsel %vm367, %v1043, %v1002
        %v1045 = vrot.slane %v1002, 4
        %v1046 = vsel %vm367, %v1026, %v1045
        %v1047 = vrot.slane %v1034, 4
        %v1048 = vsel %vm367, %v1047, %v1010
        %v1049 = vrot.slane %v1010, 4
        %v1050 = vsel %vm367, %v1034, %v1049
        %v1051 = vrot.slane %v1038, 4
        %v1052 = vsel %vm367, %v1051, %v1014
        %v1053 = vrot.slane %v1014, 4
        %v1054 = vsel %vm367, %v1038, %v1053
        %v1055 = vrot.slane %v888, 4
        %v1056 = vsel %vm367, %v1055, %v880
        %v1057 = vrot.slane %v880, 4
        %v1058 = vsel %vm367, %v888, %v1057
        %v1060 = vunpack.c.l.s4 1983009808
        %v1061 = vunpack.c.0.s8 %v1060
        %v1062 = vperm.slane %v1056, %v1061
        %v1064 = vunpack.c.l.s4 1983009808
        %v1065 = vunpack.c.0.s8 %v1064
        %v1066 = vperm.slane %v1058, %v1065
        %v1067 = vrot.slane %v892, 4
        %v1068 = vsel %vm367, %v1067, %v884
        %v1069 = vrot.slane %v884, 4
        %v1070 = vsel %vm367, %v892, %v1069
        %v1072 = vunpack.c.l.s4 1983009808
        %v1073 = vunpack.c.0.s8 %v1072
        %v1074 = vperm.slane %v1068, %v1073
        %v1076 = vunpack.c.l.s4 1983009808
        %v1077 = vunpack.c.0.s8 %v1076
        %v1078 = vperm.slane %v1070, %v1077
        %v1079 = vrot.slane %v904, 4
        %v1080 = vsel %vm367, %v1079, %v896
        %v1081 = vrot.slane %v896, 4
        %v1082 = vsel %vm367, %v904, %v1081
        %v1084 = vunpack.c.l.s4 1983009808
        %v1085 = vunpack.c.0.s8 %v1084
        %v1086 = vperm.slane %v1080, %v1085
        %v1088 = vunpack.c.l.s4 1983009808
        %v1089 = vunpack.c.0.s8 %v1088
        %v1090 = vperm.slane %v1082, %v1089
        %v1091 = vrot.slane %v908, 4
        %v1092 = vsel %vm367, %v1091, %v900
        %v1093 = vrot.slane %v900, 4
        %v1094 = vsel %vm367, %v908, %v1093
        %v1096 = vunpack.c.l.s4 1983009808
        %v1097 = vunpack.c.0.s8 %v1096
        %v1098 = vperm.slane %v1092, %v1097
        %v1100 = vunpack.c.l.s4 1983009808
        %v1101 = vunpack.c.0.s8 %v1100
        %v1102 = vperm.slane %v1094, %v1101
        %v1103 = vrot.slane %v1074, 4
        %v1104 = vsel %vm367, %v1103, %v1062
        %v1105 = vrot.slane %v1062, 4
        %v1106 = vsel %vm367, %v1074, %v1105
        %v1108 = vunpack.c.l.s4 1934713408
        %v1109 = vunpack.c.0.s8 %v1108
        %v1110 = vperm.slane %v1104, %v1109
        %v1112 = vunpack.c.l.s4 1934713408
        %v1113 = vunpack.c.0.s8 %v1112
        %v1114 = vperm.slane %v1106, %v1113
        %v1115 = vrot.slane %v1078, 4
        %v1116 = vsel %vm367, %v1115, %v1066
        %v1117 = vrot.slane %v1066, 4
        %v1118 = vsel %vm367, %v1078, %v1117
        %v1120 = vunpack.c.l.s4 1934713408
        %v1121 = vunpack.c.0.s8 %v1120
        %v1122 = vperm.slane %v1116, %v1121
        %v1124 = vunpack.c.l.s4 1934713408
        %v1125 = vunpack.c.0.s8 %v1124
        %v1126 = vperm.slane %v1118, %v1125
        %v1127 = vrot.slane %v1098, 4
        %v1128 = vsel %vm367, %v1127, %v1086
        %v1129 = vrot.slane %v1086, 4
        %v1130 = vsel %vm367, %v1098, %v1129
        %v1132 = vunpack.c.l.s4 1934713408
        %v1133 = vunpack.c.0.s8 %v1132
        %v1134 = vperm.slane %v1128, %v1133
        %v1136 = vunpack.c.l.s4 1934713408
        %v1137 = vunpack.c.0.s8 %v1136
        %v1138 = vperm.slane %v1130, %v1137
        %v1139 = vrot.slane %v1102, 4
        %v1140 = vsel %vm367, %v1139, %v1090
        %v1141 = vrot.slane %v1090, 4
        %v1142 = vsel %vm367, %v1102, %v1141
        %v1144 = vunpack.c.l.s4 1934713408
        %v1145 = vunpack.c.0.s8 %v1144
        %v1146 = vperm.slane %v1140, %v1145
        %v1148 = vunpack.c.l.s4 1934713408
        %v1149 = vunpack.c.0.s8 %v1148
        %v1150 = vperm.slane %v1142, %v1149
        %v1151 = vrot.slane %v1134, 4
        %v1152 = vsel %vm367, %v1151, %v1110
        %v1153 = vrot.slane %v1110, 4
        %v1154 = vsel %vm367, %v1134, %v1153
        %v1155 = vrot.slane %v1138, 4
        %v1156 = vsel %vm367, %v1155, %v1114
        %v1157 = vrot.slane %v1114, 4
        %v1158 = vsel %vm367, %v1138, %v1157
        %v1159 = vrot.slane %v1146, 4
        %v1160 = vsel %vm367, %v1159, %v1122
        %v1161 = vrot.slane %v1122, 4
        %v1162 = vsel %vm367, %v1146, %v1161
        %v1163 = vrot.slane %v1150, 4
        %v1164 = vsel %vm367, %v1163, %v1126
        %v1165 = vrot.slane %v1126, 4
        %v1166 = vsel %vm367, %v1150, %v1165
        %v1167 = vrot.slane %v858, 4
        %v1168 = vsel %vm367, %v1167, %v850
        %v1169 = vrot.slane %v850, 4
        %v1170 = vsel %vm367, %v858, %v1169
        %v1172 = vunpack.c.l.s4 1983009808
        %v1173 = vunpack.c.0.s8 %v1172
        %v1174 = vperm.slane %v1168, %v1173
        %v1176 = vunpack.c.l.s4 1983009808
        %v1177 = vunpack.c.0.s8 %v1176
        %v1178 = vperm.slane %v1170, %v1177
        %v1179 = vrot.slane %v862, 4
        %v1180 = vsel %vm367, %v1179, %v854
        %v1181 = vrot.slane %v854, 4
        %v1182 = vsel %vm367, %v862, %v1181
        %v1184 = vunpack.c.l.s4 1983009808
        %v1185 = vunpack.c.0.s8 %v1184
        %v1186 = vperm.slane %v1180, %v1185
        %v1188 = vunpack.c.l.s4 1983009808
        %v1189 = vunpack.c.0.s8 %v1188
        %v1190 = vperm.slane %v1182, %v1189
        %v1191 = vrot.slane %v874, 4
        %v1192 = vsel %vm367, %v1191, %v866
        %v1193 = vrot.slane %v866, 4
        %v1194 = vsel %vm367, %v874, %v1193
        %v1196 = vunpack.c.l.s4 1983009808
        %v1197 = vunpack.c.0.s8 %v1196
        %v1198 = vperm.slane %v1192, %v1197
        %v1200 = vunpack.c.l.s4 1983009808
        %v1201 = vunpack.c.0.s8 %v1200
        %v1202 = vperm.slane %v1194, %v1201
        %v1203 = vrot.slane %v878, 4
        %v1204 = vsel %vm367, %v1203, %v870
        %v1205 = vrot.slane %v870, 4
        %v1206 = vsel %vm367, %v878, %v1205
        %v1208 = vunpack.c.l.s4 1983009808
        %v1209 = vunpack.c.0.s8 %v1208
        %v1210 = vperm.slane %v1204, %v1209
        %v1212 = vunpack.c.l.s4 1983009808
        %v1213 = vunpack.c.0.s8 %v1212
        %v1214 = vperm.slane %v1206, %v1213
        %v1215 = vrot.slane %v1186, 4
        %v1216 = vsel %vm367, %v1215, %v1174
        %v1217 = vrot.slane %v1174, 4
        %v1218 = vsel %vm367, %v1186, %v1217
        %v1220 = vunpack.c.l.s4 1934713408
        %v1221 = vunpack.c.0.s8 %v1220
        %v1222 = vperm.slane %v1216, %v1221
        %v1224 = vunpack.c.l.s4 1934713408
        %v1225 = vunpack.c.0.s8 %v1224
        %v1226 = vperm.slane %v1218, %v1225
        %v1227 = vrot.slane %v1190, 4
        %v1228 = vsel %vm367, %v1227, %v1178
        %v1229 = vrot.slane %v1178, 4
        %v1230 = vsel %vm367, %v1190, %v1229
        %v1232 = vunpack.c.l.s4 1934713408
        %v1233 = vunpack.c.0.s8 %v1232
        %v1234 = vperm.slane %v1228, %v1233
        %v1236 = vunpack.c.l.s4 1934713408
        %v1237 = vunpack.c.0.s8 %v1236
        %v1238 = vperm.slane %v1230, %v1237
        %v1239 = vrot.slane %v1210, 4
        %v1240 = vsel %vm367, %v1239, %v1198
        %v1241 = vrot.slane %v1198, 4
        %v1242 = vsel %vm367, %v1210, %v1241
        %v1244 = vunpack.c.l.s4 1934713408
        %v1245 = vunpack.c.0.s8 %v1244
        %v1246 = vperm.slane %v1240, %v1245
        %v1248 = vunpack.c.l.s4 1934713408
        %v1249 = vunpack.c.0.s8 %v1248
        %v1250 = vperm.slane %v1242, %v1249
        %v1251 = vrot.slane %v1214, 4
        %v1252 = vsel %vm367, %v1251, %v1202
        %v1253 = vrot.slane %v1202, 4
        %v1254 = vsel %vm367, %v1214, %v1253
        %v1256 = vunpack.c.l.s4 1934713408
        %v1257 = vunpack.c.0.s8 %v1256
        %v1258 = vperm.slane %v1252, %v1257
        %v1260 = vunpack.c.l.s4 1934713408
        %v1261 = vunpack.c.0.s8 %v1260
        %v1262 = vperm.slane %v1254, %v1261
        %v1263 = vrot.slane %v1246, 4
        %v1264 = vsel %vm367, %v1263, %v1222
        %v1265 = vrot.slane %v1222, 4
        %v1266 = vsel %vm367, %v1246, %v1265
        %v1267 = vrot.slane %v1250, 4
        %v1268 = vsel %vm367, %v1267, %v1226
        %v1269 = vrot.slane %v1226, 4
        %v1270 = vsel %vm367, %v1250, %v1269
        %v1271 = vrot.slane %v1258, 4
        %v1272 = vsel %vm367, %v1271, %v1234
        %v1273 = vrot.slane %v1234, 4
        %v1274 = vsel %vm367, %v1258, %v1273
        %v1275 = vrot.slane %v1262, 4
        %v1276 = vsel %vm367, %v1275, %v1238
        %v1277 = vrot.slane %v1238, 4
        %v1278 = vsel %vm367, %v1262, %v1277
        %v1279 = vrot.slane %v890, 4
        %v1280 = vsel %vm367, %v1279, %v882
        %v1281 = vrot.slane %v882, 4
        %v1282 = vsel %vm367, %v890, %v1281
        %v1284 = vunpack.c.l.s4 1983009808
        %v1285 = vunpack.c.0.s8 %v1284
        %v1286 = vperm.slane %v1280, %v1285
        %v1288 = vunpack.c.l.s4 1983009808
        %v1289 = vunpack.c.0.s8 %v1288
        %v1290 = vperm.slane %v1282, %v1289
        %v1291 = vrot.slane %v894, 4
        %v1292 = vsel %vm367, %v1291, %v886
        %v1293 = vrot.slane %v886, 4
        %v1294 = vsel %vm367, %v894, %v1293
        %v1296 = vunpack.c.l.s4 1983009808
        %v1297 = vunpack.c.0.s8 %v1296
        %v1298 = vperm.slane %v1292, %v1297
        %v1300 = vunpack.c.l.s4 1983009808
        %v1301 = vunpack.c.0.s8 %v1300
        %v1302 = vperm.slane %v1294, %v1301
        %v1303 = vrot.slane %v906, 4
        %v1304 = vsel %vm367, %v1303, %v898
        %v1305 = vrot.slane %v898, 4
        %v1306 = vsel %vm367, %v906, %v1305
        %v1308 = vunpack.c.l.s4 1983009808
        %v1309 = vunpack.c.0.s8 %v1308
        %v1310 = vperm.slane %v1304, %v1309
        %v1312 = vunpack.c.l.s4 1983009808
        %v1313 = vunpack.c.0.s8 %v1312
        %v1314 = vperm.slane %v1306, %v1313
        %v1315 = vrot.slane %v910, 4
        %v1316 = vsel %vm367, %v1315, %v902
        %v1317 = vrot.slane %v902, 4
        %v1318 = vsel %vm367, %v910, %v1317
        %v1320 = vunpack.c.l.s4 1983009808
        %v1321 = vunpack.c.0.s8 %v1320
        %v1322 = vperm.slane %v1316, %v1321
        %v1324 = vunpack.c.l.s4 1983009808
        %v1325 = vunpack.c.0.s8 %v1324
        %v1326 = vperm.slane %v1318, %v1325
        %v1327 = vrot.slane %v1298, 4
        %v1328 = vsel %vm367, %v1327, %v1286
        %v1329 = vrot.slane %v1286, 4
        %v1330 = vsel %vm367, %v1298, %v1329
        %v1332 = vunpack.c.l.s4 1934713408
        %v1333 = vunpack.c.0.s8 %v1332
        %v1334 = vperm.slane %v1328, %v1333
        %v1336 = vunpack.c.l.s4 1934713408
        %v1337 = vunpack.c.0.s8 %v1336
        %v1338 = vperm.slane %v1330, %v1337
        %v1339 = vrot.slane %v1302, 4
        %v1340 = vsel %vm367, %v1339, %v1290
        %v1341 = vrot.slane %v1290, 4
        %v1342 = vsel %vm367, %v1302, %v1341
        %v1344 = vunpack.c.l.s4 1934713408
        %v1345 = vunpack.c.0.s8 %v1344
        %v1346 = vperm.slane %v1340, %v1345
        %v1348 = vunpack.c.l.s4 1934713408
        %v1349 = vunpack.c.0.s8 %v1348
        %v1350 = vperm.slane %v1342, %v1349
        %v1351 = vrot.slane %v1322, 4
        %v1352 = vsel %vm367, %v1351, %v1310
        %v1353 = vrot.slane %v1310, 4
        %v1354 = vsel %vm367, %v1322, %v1353
        %v1356 = vunpack.c.l.s4 1934713408
        %v1357 = vunpack.c.0.s8 %v1356
        %v1358 = vperm.slane %v1352, %v1357
        %v1360 = vunpack.c.l.s4 1934713408
        %v1361 = vunpack.c.0.s8 %v1360
        %v1362 = vperm.slane %v1354, %v1361
        %v1363 = vrot.slane %v1326, 4
        %v1364 = vsel %vm367, %v1363, %v1314
        %v1365 = vrot.slane %v1314, 4
        %v1366 = vsel %vm367, %v1326, %v1365
        %v1368 = vunpack.c.l.s4 1934713408
        %v1369 = vunpack.c.0.s8 %v1368
        %v1370 = vperm.slane %v1364, %v1369
        %v1372 = vunpack.c.l.s4 1934713408
        %v1373 = vunpack.c.0.s8 %v1372
        %v1374 = vperm.slane %v1366, %v1373
        %v1375 = vrot.slane %v1358, 4
        %v1376 = vsel %vm367, %v1375, %v1334
        %v1377 = vrot.slane %v1334, 4
        %v1378 = vsel %vm367, %v1358, %v1377
        %v1379 = vrot.slane %v1362, 4
        %v1380 = vsel %vm367, %v1379, %v1338
        %v1381 = vrot.slane %v1338, 4
        %v1382 = vsel %vm367, %v1362, %v1381
        %v1383 = vrot.slane %v1370, 4
        %v1384 = vsel %vm367, %v1383, %v1346
        %v1385 = vrot.slane %v1346, 4
        %v1386 = vsel %vm367, %v1370, %v1385
        %v1387 = vrot.slane %v1374, 4
        %v1388 = vsel %vm367, %v1387, %v1350
        %v1389 = vrot.slane %v1350, 4
        %v1390 = vsel %vm367, %v1374, %v1389
        %1391 = vrot.lane.b32.xlu0 %v318, 112
        %v1392 = vpop.permute.xlu0 %1391
        %1393 = vrot.lane.b32.xlu0 %v319, 112
        %v1394 = vpop.permute.xlu0 %1393
        %1395 = vrot.lane.b32.xlu0 %v320, 112
        %v1396 = vpop.permute.xlu0 %1395
        %1397 = vrot.lane.b32.xlu0 %v321, 112
        %v1398 = vpop.permute.xlu0 %1397
        %1399 = vrot.lane.b32.xlu0 %v322, 112
        %v1400 = vpop.permute.xlu0 %1399
        %1401 = vrot.lane.b32.xlu0 %v323, 112
        %v1402 = vpop.permute.xlu0 %1401
        %1403 = vrot.lane.b32.xlu0 %v324, 112
        %v1404 = vpop.permute.xlu0 %1403
        %1405 = vrot.lane.b32.xlu0 %v325, 112
        %v1406 = vpop.permute.xlu0 %1405
        %1407 = vrot.lane.b32.xlu0 %v326, 112
        %v1408 = vpop.permute.xlu0 %1407
        %1409 = vrot.lane.b32.xlu0 %v327, 112
        %v1410 = vpop.permute.xlu0 %1409
        %1411 = vrot.lane.b32.xlu0 %v328, 112
        %v1412 = vpop.permute.xlu0 %1411
        %1413 = vrot.lane.b32.xlu0 %v329, 112
        %v1414 = vpop.permute.xlu0 %1413
        %1415 = vrot.lane.b32.xlu0 %v330, 112
        %v1416 = vpop.permute.xlu0 %1415
        %1417 = vrot.lane.b32.xlu0 %v331, 112
        %v1418 = vpop.permute.xlu0 %1417
        %1419 = vrot.lane.b32.xlu0 %v332, 112
        %v1420 = vpop.permute.xlu0 %1419
        %1421 = vrot.lane.b32.xlu0 %v333, 112
        %v1422 = vpop.permute.xlu0 %1421
        %1423 = vrot.lane.b32.xlu0 %v350, 112
        %v1424 = vpop.permute.xlu0 %1423
        %1425 = vrot.lane.b32.xlu0 %v351, 112
        %v1426 = vpop.permute.xlu0 %1425
        %1427 = vrot.lane.b32.xlu0 %v352, 112
        %v1428 = vpop.permute.xlu0 %1427
        %1429 = vrot.lane.b32.xlu0 %v353, 112
        %v1430 = vpop.permute.xlu0 %1429
        %1431 = vrot.lane.b32.xlu0 %v354, 112
        %v1432 = vpop.permute.xlu0 %1431
        %1433 = vrot.lane.b32.xlu0 %v355, 112
        %v1434 = vpop.permute.xlu0 %1433
        %1435 = vrot.lane.b32.xlu0 %v356, 112
        %v1436 = vpop.permute.xlu0 %1435
        %1437 = vrot.lane.b32.xlu0 %v357, 112
        %v1438 = vpop.permute.xlu0 %1437
        %1439 = vrot.lane.b32.xlu0 %v358, 112
        %v1440 = vpop.permute.xlu0 %1439
        %1441 = vrot.lane.b32.xlu0 %v359, 112
        %v1442 = vpop.permute.xlu0 %1441
        %1443 = vrot.lane.b32.xlu0 %v360, 112
        %v1444 = vpop.permute.xlu0 %1443
        %1445 = vrot.lane.b32.xlu0 %v361, 112
        %v1446 = vpop.permute.xlu0 %1445
        %1447 = vrot.lane.b32.xlu0 %v362, 112
        %v1448 = vpop.permute.xlu0 %1447
        %1449 = vrot.lane.b32.xlu0 %v363, 112
        %v1450 = vpop.permute.xlu0 %1449
        %1451 = vrot.lane.b32.xlu0 %v364, 112
        %v1452 = vpop.permute.xlu0 %1451
        %1453 = vrot.lane.b32.xlu0 %v365, 112
        %v1454 = vpop.permute.xlu0 %1453
        %v1487 = vrot.slane %v1400, 4
        %v1488 = vsel %vm367, %v1487, %v1392
        %v1489 = vrot.slane %v1392, 4
        %v1490 = vsel %vm367, %v1400, %v1489
        %v1492 = vunpack.c.l.s4 1983009808
        %v1493 = vunpack.c.0.s8 %v1492
        %v1494 = vperm.slane %v1488, %v1493
        %v1496 = vunpack.c.l.s4 1983009808
        %v1497 = vunpack.c.0.s8 %v1496
        %v1498 = vperm.slane %v1490, %v1497
        %v1499 = vrot.slane %v1404, 4
        %v1500 = vsel %vm367, %v1499, %v1396
        %v1501 = vrot.slane %v1396, 4
        %v1502 = vsel %vm367, %v1404, %v1501
        %v1504 = vunpack.c.l.s4 1983009808
        %v1505 = vunpack.c.0.s8 %v1504
        %v1506 = vperm.slane %v1500, %v1505
        %v1508 = vunpack.c.l.s4 1983009808
        %v1509 = vunpack.c.0.s8 %v1508
        %v1510 = vperm.slane %v1502, %v1509
        %v1511 = vrot.slane %v1416, 4
        %v1512 = vsel %vm367, %v1511, %v1408
        %v1513 = vrot.slane %v1408, 4
        %v1514 = vsel %vm367, %v1416, %v1513
        %v1516 = vunpack.c.l.s4 1983009808
        %v1517 = vunpack.c.0.s8 %v1516
        %v1518 = vperm.slane %v1512, %v1517
        %v1520 = vunpack.c.l.s4 1983009808
        %v1521 = vunpack.c.0.s8 %v1520
        %v1522 = vperm.slane %v1514, %v1521
        %v1523 = vrot.slane %v1420, 4
        %v1524 = vsel %vm367, %v1523, %v1412
        %v1525 = vrot.slane %v1412, 4
        %v1526 = vsel %vm367, %v1420, %v1525
        %v1528 = vunpack.c.l.s4 1983009808
        %v1529 = vunpack.c.0.s8 %v1528
        %v1530 = vperm.slane %v1524, %v1529
        %v1532 = vunpack.c.l.s4 1983009808
        %v1533 = vunpack.c.0.s8 %v1532
        %v1534 = vperm.slane %v1526, %v1533
        %v1535 = vrot.slane %v1506, 4
        %v1536 = vsel %vm367, %v1535, %v1494
        %v1537 = vrot.slane %v1494, 4
        %v1538 = vsel %vm367, %v1506, %v1537
        %v1540 = vunpack.c.l.s4 1934713408
        %v1541 = vunpack.c.0.s8 %v1540
        %v1542 = vperm.slane %v1536, %v1541
        %v1544 = vunpack.c.l.s4 1934713408
        %v1545 = vunpack.c.0.s8 %v1544
        %v1546 = vperm.slane %v1538, %v1545
        %v1547 = vrot.slane %v1510, 4
        %v1548 = vsel %vm367, %v1547, %v1498
        %v1549 = vrot.slane %v1498, 4
        %v1550 = vsel %vm367, %v1510, %v1549
        %v1552 = vunpack.c.l.s4 1934713408
        %v1553 = vunpack.c.0.s8 %v1552
        %v1554 = vperm.slane %v1548, %v1553
        %v1556 = vunpack.c.l.s4 1934713408
        %v1557 = vunpack.c.0.s8 %v1556
        %v1558 = vperm.slane %v1550, %v1557
        %v1559 = vrot.slane %v1530, 4
        %v1560 = vsel %vm367, %v1559, %v1518
        %v1561 = vrot.slane %v1518, 4
        %v1562 = vsel %vm367, %v1530, %v1561
        %v1564 = vunpack.c.l.s4 1934713408
        %v1565 = vunpack.c.0.s8 %v1564
        %v1566 = vperm.slane %v1560, %v1565
        %v1568 = vunpack.c.l.s4 1934713408
        %v1569 = vunpack.c.0.s8 %v1568
        %v1570 = vperm.slane %v1562, %v1569
        %v1571 = vrot.slane %v1534, 4
        %v1572 = vsel %vm367, %v1571, %v1522
        %v1573 = vrot.slane %v1522, 4
        %v1574 = vsel %vm367, %v1534, %v1573
        %v1576 = vunpack.c.l.s4 1934713408
        %v1577 = vunpack.c.0.s8 %v1576
        %v1578 = vperm.slane %v1572, %v1577
        %v1580 = vunpack.c.l.s4 1934713408
        %v1581 = vunpack.c.0.s8 %v1580
        %v1582 = vperm.slane %v1574, %v1581
        %v1583 = vrot.slane %v1566, 4
        %v1584 = vsel %vm367, %v1583, %v1542
        %v1585 = vrot.slane %v1542, 4
        %v1586 = vsel %vm367, %v1566, %v1585
        %v1587 = vrot.slane %v1570, 4
        %v1588 = vsel %vm367, %v1587, %v1546
        %v1589 = vrot.slane %v1546, 4
        %v1590 = vsel %vm367, %v1570, %v1589
        %v1591 = vrot.slane %v1578, 4
        %v1592 = vsel %vm367, %v1591, %v1554
        %v1593 = vrot.slane %v1554, 4
        %v1594 = vsel %vm367, %v1578, %v1593
        %v1595 = vrot.slane %v1582, 4
        %v1596 = vsel %vm367, %v1595, %v1558
        %v1597 = vrot.slane %v1558, 4
        %v1598 = vsel %vm367, %v1582, %v1597
        %v1599 = vrot.slane %v1432, 4
        %v1600 = vsel %vm367, %v1599, %v1424
        %v1601 = vrot.slane %v1424, 4
        %v1602 = vsel %vm367, %v1432, %v1601
        %v1604 = vunpack.c.l.s4 1983009808
        %v1605 = vunpack.c.0.s8 %v1604
        %v1606 = vperm.slane %v1600, %v1605
        %v1608 = vunpack.c.l.s4 1983009808
        %v1609 = vunpack.c.0.s8 %v1608
        %v1610 = vperm.slane %v1602, %v1609
        %v1611 = vrot.slane %v1436, 4
        %v1612 = vsel %vm367, %v1611, %v1428
        %v1613 = vrot.slane %v1428, 4
        %v1614 = vsel %vm367, %v1436, %v1613
        %v1616 = vunpack.c.l.s4 1983009808
        %v1617 = vunpack.c.0.s8 %v1616
        %v1618 = vperm.slane %v1612, %v1617
        %v1620 = vunpack.c.l.s4 1983009808
        %v1621 = vunpack.c.0.s8 %v1620
        %v1622 = vperm.slane %v1614, %v1621
        %v1623 = vrot.slane %v1448, 4
        %v1624 = vsel %vm367, %v1623, %v1440
        %v1625 = vrot.slane %v1440, 4
        %v1626 = vsel %vm367, %v1448, %v1625
        %v1628 = vunpack.c.l.s4 1983009808
        %v1629 = vunpack.c.0.s8 %v1628
        %v1630 = vperm.slane %v1624, %v1629
        %v1632 = vunpack.c.l.s4 1983009808
        %v1633 = vunpack.c.0.s8 %v1632
        %v1634 = vperm.slane %v1626, %v1633
        %v1635 = vrot.slane %v1452, 4
        %v1636 = vsel %vm367, %v1635, %v1444
        %v1637 = vrot.slane %v1444, 4
        %v1638 = vsel %vm367, %v1452, %v1637
        %v1640 = vunpack.c.l.s4 1983009808
        %v1641 = vunpack.c.0.s8 %v1640
        %v1642 = vperm.slane %v1636, %v1641
        %v1644 = vunpack.c.l.s4 1983009808
        %v1645 = vunpack.c.0.s8 %v1644
        %v1646 = vperm.slane %v1638, %v1645
        %v1647 = vrot.slane %v1618, 4
        %v1648 = vsel %vm367, %v1647, %v1606
        %v1649 = vrot.slane %v1606, 4
        %v1650 = vsel %vm367, %v1618, %v1649
        %v1652 = vunpack.c.l.s4 1934713408
        %v1653 = vunpack.c.0.s8 %v1652
        %v1654 = vperm.slane %v1648, %v1653
        %v1656 = vunpack.c.l.s4 1934713408
        %v1657 = vunpack.c.0.s8 %v1656
        %v1658 = vperm.slane %v1650, %v1657
        %v1659 = vrot.slane %v1622, 4
        %v1660 = vsel %vm367, %v1659, %v1610
        %v1661 = vrot.slane %v1610, 4
        %v1662 = vsel %vm367, %v1622, %v1661
        %v1664 = vunpack.c.l.s4 1934713408
        %v1665 = vunpack.c.0.s8 %v1664
        %v1666 = vperm.slane %v1660, %v1665
        %v1668 = vunpack.c.l.s4 1934713408
        %v1669 = vunpack.c.0.s8 %v1668
        %v1670 = vperm.slane %v1662, %v1669
        %v1671 = vrot.slane %v1642, 4
        %v1672 = vsel %vm367, %v1671, %v1630
        %v1673 = vrot.slane %v1630, 4
        %v1674 = vsel %vm367, %v1642, %v1673
        %v1676 = vunpack.c.l.s4 1934713408
        %v1677 = vunpack.c.0.s8 %v1676
        %v1678 = vperm.slane %v1672, %v1677
        %v1680 = vunpack.c.l.s4 1934713408
        %v1681 = vunpack.c.0.s8 %v1680
        %v1682 = vperm.slane %v1674, %v1681
        %v1683 = vrot.slane %v1646, 4
        %v1684 = vsel %vm367, %v1683, %v1634
        %v1685 = vrot.slane %v1634, 4
        %v1686 = vsel %vm367, %v1646, %v1685
        %v1688 = vunpack.c.l.s4 1934713408
        %v1689 = vunpack.c.0.s8 %v1688
        %v1690 = vperm.slane %v1684, %v1689
        %v1692 = vunpack.c.l.s4 1934713408
        %v1693 = vunpack.c.0.s8 %v1692
        %v1694 = vperm.slane %v1686, %v1693
        %v1695 = vrot.slane %v1678, 4
        %v1696 = vsel %vm367, %v1695, %v1654
        %v1697 = vrot.slane %v1654, 4
        %v1698 = vsel %vm367, %v1678, %v1697
        %v1699 = vrot.slane %v1682, 4
        %v1700 = vsel %vm367, %v1699, %v1658
        %v1701 = vrot.slane %v1658, 4
        %v1702 = vsel %vm367, %v1682, %v1701
        %v1703 = vrot.slane %v1690, 4
        %v1704 = vsel %vm367, %v1703, %v1666
        %v1705 = vrot.slane %v1666, 4
        %v1706 = vsel %vm367, %v1690, %v1705
        %v1707 = vrot.slane %v1694, 4
        %v1708 = vsel %vm367, %v1707, %v1670
        %v1709 = vrot.slane %v1670, 4
        %v1710 = vsel %vm367, %v1694, %v1709
        %v1711 = vrot.slane %v1402, 4
        %v1712 = vsel %vm367, %v1711, %v1394
        %v1713 = vrot.slane %v1394, 4
        %v1714 = vsel %vm367, %v1402, %v1713
        %v1716 = vunpack.c.l.s4 1983009808
        %v1717 = vunpack.c.0.s8 %v1716
        %v1718 = vperm.slane %v1712, %v1717
        %v1720 = vunpack.c.l.s4 1983009808
        %v1721 = vunpack.c.0.s8 %v1720
        %v1722 = vperm.slane %v1714, %v1721
        %v1723 = vrot.slane %v1406, 4
        %v1724 = vsel %vm367, %v1723, %v1398
        %v1725 = vrot.slane %v1398, 4
        %v1726 = vsel %vm367, %v1406, %v1725
        %v1728 = vunpack.c.l.s4 1983009808
        %v1729 = vunpack.c.0.s8 %v1728
        %v1730 = vperm.slane %v1724, %v1729
        %v1732 = vunpack.c.l.s4 1983009808
        %v1733 = vunpack.c.0.s8 %v1732
        %v1734 = vperm.slane %v1726, %v1733
        %v1735 = vrot.slane %v1418, 4
        %v1736 = vsel %vm367, %v1735, %v1410
        %v1737 = vrot.slane %v1410, 4
        %v1738 = vsel %vm367, %v1418, %v1737
        %v1740 = vunpack.c.l.s4 1983009808
        %v1741 = vunpack.c.0.s8 %v1740
        %v1742 = vperm.slane %v1736, %v1741
        %v1744 = vunpack.c.l.s4 1983009808
        %v1745 = vunpack.c.0.s8 %v1744
        %v1746 = vperm.slane %v1738, %v1745
        %v1747 = vrot.slane %v1422, 4
        %v1748 = vsel %vm367, %v1747, %v1414
        %v1749 = vrot.slane %v1414, 4
        %v1750 = vsel %vm367, %v1422, %v1749
        %v1752 = vunpack.c.l.s4 1983009808
        %v1753 = vunpack.c.0.s8 %v1752
        %v1754 = vperm.slane %v1748, %v1753
        %v1756 = vunpack.c.l.s4 1983009808
        %v1757 = vunpack.c.0.s8 %v1756
        %v1758 = vperm.slane %v1750, %v1757
        %v1759 = vrot.slane %v1730, 4
        %v1760 = vsel %vm367, %v1759, %v1718
        %v1761 = vrot.slane %v1718, 4
        %v1762 = vsel %vm367, %v1730, %v1761
        %v1764 = vunpack.c.l.s4 1934713408
        %v1765 = vunpack.c.0.s8 %v1764
        %v1766 = vperm.slane %v1760, %v1765
        %v1768 = vunpack.c.l.s4 1934713408
        %v1769 = vunpack.c.0.s8 %v1768
        %v1770 = vperm.slane %v1762, %v1769
        %v1771 = vrot.slane %v1734, 4
        %v1772 = vsel %vm367, %v1771, %v1722
        %v1773 = vrot.slane %v1722, 4
        %v1774 = vsel %vm367, %v1734, %v1773
        %v1776 = vunpack.c.l.s4 1934713408
        %v1777 = vunpack.c.0.s8 %v1776
        %v1778 = vperm.slane %v1772, %v1777
        %v1780 = vunpack.c.l.s4 1934713408
        %v1781 = vunpack.c.0.s8 %v1780
        %v1782 = vperm.slane %v1774, %v1781
        %v1783 = vrot.slane %v1754, 4
        %v1784 = vsel %vm367, %v1783, %v1742
        %v1785 = vrot.slane %v1742, 4
        %v1786 = vsel %vm367, %v1754, %v1785
        %v1788 = vunpack.c.l.s4 1934713408
        %v1789 = vunpack.c.0.s8 %v1788
        %v1790 = vperm.slane %v1784, %v1789
        %v1792 = vunpack.c.l.s4 1934713408
        %v1793 = vunpack.c.0.s8 %v1792
        %v1794 = vperm.slane %v1786, %v1793
        %v1795 = vrot.slane %v1758, 4
        %v1796 = vsel %vm367, %v1795, %v1746
        %v1797 = vrot.slane %v1746, 4
        %v1798 = vsel %vm367, %v1758, %v1797
        %v1800 = vunpack.c.l.s4 1934713408
        %v1801 = vunpack.c.0.s8 %v1800
        %v1802 = vperm.slane %v1796, %v1801
        %v1804 = vunpack.c.l.s4 1934713408
        %v1805 = vunpack.c.0.s8 %v1804
        %v1806 = vperm.slane %v1798, %v1805
        %v1807 = vrot.slane %v1790, 4
        %v1808 = vsel %vm367, %v1807, %v1766
        %v1809 = vrot.slane %v1766, 4
        %v1810 = vsel %vm367, %v1790, %v1809
        %v1811 = vrot.slane %v1794, 4
        %v1812 = vsel %vm367, %v1811, %v1770
        %v1813 = vrot.slane %v1770, 4
        %v1814 = vsel %vm367, %v1794, %v1813
        %v1815 = vrot.slane %v1802, 4
        %v1816 = vsel %vm367, %v1815, %v1778
        %v1817 = vrot.slane %v1778, 4
        %v1818 = vsel %vm367, %v1802, %v1817
        %v1819 = vrot.slane %v1806, 4
        %v1820 = vsel %vm367, %v1819, %v1782
        %v1821 = vrot.slane %v1782, 4
        %v1822 = vsel %vm367, %v1806, %v1821
        %v1823 = vrot.slane %v1434, 4
        %v1824 = vsel %vm367, %v1823, %v1426
        %v1825 = vrot.slane %v1426, 4
        %v1826 = vsel %vm367, %v1434, %v1825
        %v1828 = vunpack.c.l.s4 1983009808
        %v1829 = vunpack.c.0.s8 %v1828
        %v1830 = vperm.slane %v1824, %v1829
        %v1832 = vunpack.c.l.s4 1983009808
        %v1833 = vunpack.c.0.s8 %v1832
        %v1834 = vperm.slane %v1826, %v1833
        %v1835 = vrot.slane %v1438, 4
        %v1836 = vsel %vm367, %v1835, %v1430
        %v1837 = vrot.slane %v1430, 4
        %v1838 = vsel %vm367, %v1438, %v1837
        %v1840 = vunpack.c.l.s4 1983009808
        %v1841 = vunpack.c.0.s8 %v1840
        %v1842 = vperm.slane %v1836, %v1841
        %v1844 = vunpack.c.l.s4 1983009808
        %v1845 = vunpack.c.0.s8 %v1844
        %v1846 = vperm.slane %v1838, %v1845
        %v1847 = vrot.slane %v1450, 4
        %v1848 = vsel %vm367, %v1847, %v1442
        %v1849 = vrot.slane %v1442, 4
        %v1850 = vsel %vm367, %v1450, %v1849
        %v1852 = vunpack.c.l.s4 1983009808
        %v1853 = vunpack.c.0.s8 %v1852
        %v1854 = vperm.slane %v1848, %v1853
        %v1856 = vunpack.c.l.s4 1983009808
        %v1857 = vunpack.c.0.s8 %v1856
        %v1858 = vperm.slane %v1850, %v1857
        %v1859 = vrot.slane %v1454, 4
        %v1860 = vsel %vm367, %v1859, %v1446
        %v1861 = vrot.slane %v1446, 4
        %v1862 = vsel %vm367, %v1454, %v1861
        %v1864 = vunpack.c.l.s4 1983009808
        %v1865 = vunpack.c.0.s8 %v1864
        %v1866 = vperm.slane %v1860, %v1865
        %v1868 = vunpack.c.l.s4 1983009808
        %v1869 = vunpack.c.0.s8 %v1868
        %v1870 = vperm.slane %v1862, %v1869
        %v1871 = vrot.slane %v1842, 4
        %v1872 = vsel %vm367, %v1871, %v1830
        %v1873 = vrot.slane %v1830, 4
        %v1874 = vsel %vm367, %v1842, %v1873
        %v1876 = vunpack.c.l.s4 1934713408
        %v1877 = vunpack.c.0.s8 %v1876
        %v1878 = vperm.slane %v1872, %v1877
        %v1880 = vunpack.c.l.s4 1934713408
        %v1881 = vunpack.c.0.s8 %v1880
        %v1882 = vperm.slane %v1874, %v1881
        %v1883 = vrot.slane %v1846, 4
        %v1884 = vsel %vm367, %v1883, %v1834
        %v1885 = vrot.slane %v1834, 4
        %v1886 = vsel %vm367, %v1846, %v1885
        %v1888 = vunpack.c.l.s4 1934713408
        %v1889 = vunpack.c.0.s8 %v1888
        %v1890 = vperm.slane %v1884, %v1889
        %v1892 = vunpack.c.l.s4 1934713408
        %v1893 = vunpack.c.0.s8 %v1892
        %v1894 = vperm.slane %v1886, %v1893
        %v1895 = vrot.slane %v1866, 4
        %v1896 = vsel %vm367, %v1895, %v1854
        %v1897 = vrot.slane %v1854, 4
        %v1898 = vsel %vm367, %v1866, %v1897
        %v1900 = vunpack.c.l.s4 1934713408
        %v1901 = vunpack.c.0.s8 %v1900
        %v1902 = vperm.slane %v1896, %v1901
        %v1904 = vunpack.c.l.s4 1934713408
        %v1905 = vunpack.c.0.s8 %v1904
        %v1906 = vperm.slane %v1898, %v1905
        %v1907 = vrot.slane %v1870, 4
        %v1908 = vsel %vm367, %v1907, %v1858
        %v1909 = vrot.slane %v1858, 4
        %v1910 = vsel %vm367, %v1870, %v1909
        %v1912 = vunpack.c.l.s4 1934713408
        %v1913 = vunpack.c.0.s8 %v1912
        %v1914 = vperm.slane %v1908, %v1913
        %v1916 = vunpack.c.l.s4 1934713408
        %v1917 = vunpack.c.0.s8 %v1916
        %v1918 = vperm.slane %v1910, %v1917
        %v1919 = vrot.slane %v1902, 4
        %v1920 = vsel %vm367, %v1919, %v1878
        %v1921 = vrot.slane %v1878, 4
        %v1922 = vsel %vm367, %v1902, %v1921
        %v1923 = vrot.slane %v1906, 4
        %v1924 = vsel %vm367, %v1923, %v1882
        %v1925 = vrot.slane %v1882, 4
        %v1926 = vsel %vm367, %v1906, %v1925
        %v1927 = vrot.slane %v1914, 4
        %v1928 = vsel %vm367, %v1927, %v1890
        %v1929 = vrot.slane %v1890, 4
        %v1930 = vsel %vm367, %v1914, %v1929
        %v1931 = vrot.slane %v1918, 4
        %v1932 = vsel %vm367, %v1931, %v1894
        %v1933 = vrot.slane %v1894, 4
        %v1934 = vsel %vm367, %v1918, %v1933
        %v1935 = vsel %vm240, %v318, 0
        %v1937 = vsel %vm240, %v319, 0
        %v1939 = vsel %vm240, %v848, 0
        %v1941 = vsel %vm240, %v850, 0
        %1943 = vmatpush.xpose.msra.mxu0 0.0
        %1944 = vmatpush.xpose.msra.mxu0 0.0
        %1945 = vmatpush.xpose.msra.mxu0 0.0
        %1946 = vmatpush.xpose.msra.mxu0 0.0
        %1947 = vmatpush.xpose.msra.mxu0 0.0
        %1948 = vmatpush.xpose.msra.mxu0 0.0
        %1949 = vmatpush.xpose.msra.mxu0 0.0
        %1950 = vmatpush.xpose.msra.mxu0 0.0
        %1951 = vmatpush.xpose.msra.mxu0 0.0
        %1952 = vmatpush.xpose.msra.mxu0 0.0
        %1953 = vmatpush.xpose.msra.mxu0 0.0
        %1954 = vmatpush.xpose.msra.mxu0 0.0
        %1955 = vmatpush.xpose.msra.mxu0 0.0
        %1956 = vmatpush.xpose.msra.mxu0 0.0
        %1957 = vmatpush.xpose.msra.mxu0 %v1941
        %1958 = vmatpush.xpose.msra.mxu0 %v1939
        %1959 = vmatmul.f32.gmra.mxu0 %v1935
        %v1960 = vpop.f32.mrf.mxu0
        %v1961 = vadd.f32 0.0, %v1960
        %1962 = vmatmul.f32.gmra.mxu0 %v1937
        %v1963 = vpop.f32.mrf.mxu0
        %v1964 = vadd.f32 0.0, %v1963
        %1965 = vdwg.mxu0
        %v1966 = vsel %vm240, %v320, 0
        %v1968 = vsel %vm240, %v321, 0
        %v1970 = vsel %vm240, %v852, 0
        %v1972 = vsel %vm240, %v854, 0
        %1974 = vmatpush.xpose.msra.mxu0 0.0
        %1975 = vmatpush.xpose.msra.mxu0 0.0
        %1976 = vmatpush.xpose.msra.mxu0 0.0
        %1977 = vmatpush.xpose.msra.mxu0 0.0
        %1978 = vmatpush.xpose.msra.mxu0 0.0
        %1979 = vmatpush.xpose.msra.mxu0 0.0
        %1980 = vmatpush.xpose.msra.mxu0 0.0
        %1981 = vmatpush.xpose.msra.mxu0 0.0
        %1982 = vmatpush.xpose.msra.mxu0 0.0
        %1983 = vmatpush.xpose.msra.mxu0 0.0
        %1984 = vmatpush.xpose.msra.mxu0 0.0
        %1985 = vmatpush.xpose.msra.mxu0 0.0
        %1986 = vmatpush.xpose.msra.mxu0 0.0
        %1987 = vmatpush.xpose.msra.mxu0 0.0
        %1988 = vmatpush.xpose.msra.mxu0 %v1972
        %1989 = vmatpush.xpose.msra.mxu0 %v1970
        %1990 = vmatmul.f32.gmra.mxu0 %v1966
        %v1991 = vpop.f32.mrf.mxu0
        %v1992 = vadd.f32 0.0, %v1991
        %1993 = vmatmul.f32.gmra.mxu0 %v1968
        %v1994 = vpop.f32.mrf.mxu0
        %v1995 = vadd.f32 0.0, %v1994
        %1996 = vdwg.mxu0
        %v1997 = vsel %vm240, %v322, 0
        %v1999 = vsel %vm240, %v323, 0
        %v2001 = vsel %vm240, %v856, 0
        %v2003 = vsel %vm240, %v858, 0
        %2005 = vmatpush.xpose.msra.mxu0 0.0
        %2006 = vmatpush.xpose.msra.mxu0 0.0
        %2007 = vmatpush.xpose.msra.mxu0 0.0
        %2008 = vmatpush.xpose.msra.mxu0 0.0
        %2009 = vmatpush.xpose.msra.mxu0 0.0
        %2010 = vmatpush.xpose.msra.mxu0 0.0
        %2011 = vmatpush.xpose.msra.mxu0 0.0
        %2012 = vmatpush.xpose.msra.mxu0 0.0
        %2013 = vmatpush.xpose.msra.mxu0 0.0
        %2014 = vmatpush.xpose.msra.mxu0 0.0
        %2015 = vmatpush.xpose.msra.mxu0 0.0
        %2016 = vmatpush.xpose.msra.mxu0 0.0
        %2017 = vmatpush.xpose.msra.mxu0 0.0
        %2018 = vmatpush.xpose.msra.mxu0 0.0
        %2019 = vmatpush.xpose.msra.mxu0 %v2003
        %2020 = vmatpush.xpose.msra.mxu0 %v2001
        %2021 = vmatmul.f32.gmra.mxu0 %v1997
        %v2022 = vpop.f32.mrf.mxu0
        %v2023 = vadd.f32 0.0, %v2022
        %2024 = vmatmul.f32.gmra.mxu0 %v1999
        %v2025 = vpop.f32.mrf.mxu0
        %v2026 = vadd.f32 0.0, %v2025
        %2027 = vdwg.mxu0
        %v2028 = vsel %vm240, %v324, 0
        %v2030 = vsel %vm240, %v325, 0
        %v2032 = vsel %vm240, %v860, 0
        %v2034 = vsel %vm240, %v862, 0
        %2036 = vmatpush.xpose.msra.mxu0 0.0
        %2037 = vmatpush.xpose.msra.mxu0 0.0
        %2038 = vmatpush.xpose.msra.mxu0 0.0
        %2039 = vmatpush.xpose.msra.mxu0 0.0
        %2040 = vmatpush.xpose.msra.mxu0 0.0
        %2041 = vmatpush.xpose.msra.mxu0 0.0
        %2042 = vmatpush.xpose.msra.mxu0 0.0
        %2043 = vmatpush.xpose.msra.mxu0 0.0
        %2044 = vmatpush.xpose.msra.mxu0 0.0
        %2045 = vmatpush.xpose.msra.mxu0 0.0
        %2046 = vmatpush.xpose.msra.mxu0 0.0
        %2047 = vmatpush.xpose.msra.mxu0 0.0
        %2048 = vmatpush.xpose.msra.mxu0 0.0
        %2049 = vmatpush.xpose.msra.mxu0 0.0
        %2050 = vmatpush.xpose.msra.mxu0 %v2034
        %2051 = vmatpush.xpose.msra.mxu0 %v2032
        %2052 = vmatmul.f32.gmra.mxu0 %v2028
        %v2053 = vpop.f32.mrf.mxu0
        %v2054 = vadd.f32 0.0, %v2053
        %2055 = vmatmul.f32.gmra.mxu0 %v2030
        %v2056 = vpop.f32.mrf.mxu0
        %v2057 = vadd.f32 0.0, %v2056
        %2058 = vdwg.mxu0
        %v2059 = vsel %vm240, %v326, 0
        %v2061 = vsel %vm240, %v327, 0
        %v2063 = vsel %vm240, %v864, 0
        %v2065 = vsel %vm240, %v866, 0
        %2067 = vmatpush.xpose.msra.mxu0 0.0
        %2068 = vmatpush.xpose.msra.mxu0 0.0
        %2069 = vmatpush.xpose.msra.mxu0 0.0
        %2070 = vmatpush.xpose.msra.mxu0 0.0
        %2071 = vmatpush.xpose.msra.mxu0 0.0
        %2072 = vmatpush.xpose.msra.mxu0 0.0
        %2073 = vmatpush.xpose.msra.mxu0 0.0
        %2074 = vmatpush.xpose.msra.mxu0 0.0
        %2075 = vmatpush.xpose.msra.mxu0 0.0
        %2076 = vmatpush.xpose.msra.mxu0 0.0
        %2077 = vmatpush.xpose.msra.mxu0 0.0
        %2078 = vmatpush.xpose.msra.mxu0 0.0
        %2079 = vmatpush.xpose.msra.mxu0 0.0
        %2080 = vmatpush.xpose.msra.mxu0 0.0
        %2081 = vmatpush.xpose.msra.mxu0 %v2065
        %2082 = vmatpush.xpose.msra.mxu0 %v2063
        %2083 = vmatmul.f32.gmra.mxu0 %v2059
        %v2084 = vpop.f32.mrf.mxu0
        %v2085 = vadd.f32 0.0, %v2084
        %2086 = vmatmul.f32.gmra.mxu0 %v2061
        %v2087 = vpop.f32.mrf.mxu0
        %v2088 = vadd.f32 0.0, %v2087
        %2089 = vdwg.mxu0
        %v2090 = vsel %vm240, %v328, 0
        %v2092 = vsel %vm240, %v329, 0
        %v2094 = vsel %vm240, %v868, 0
        %v2096 = vsel %vm240, %v870, 0
        %2098 = vmatpush.xpose.msra.mxu0 0.0
        %2099 = vmatpush.xpose.msra.mxu0 0.0
        %2100 = vmatpush.xpose.msra.mxu0 0.0
        %2101 = vmatpush.xpose.msra.mxu0 0.0
        %2102 = vmatpush.xpose.msra.mxu0 0.0
        %2103 = vmatpush.xpose.msra.mxu0 0.0
        %2104 = vmatpush.xpose.msra.mxu0 0.0
        %2105 = vmatpush.xpose.msra.mxu0 0.0
        %2106 = vmatpush.xpose.msra.mxu0 0.0
        %2107 = vmatpush.xpose.msra.mxu0 0.0
        %2108 = vmatpush.xpose.msra.mxu0 0.0
        %2109 = vmatpush.xpose.msra.mxu0 0.0
        %2110 = vmatpush.xpose.msra.mxu0 0.0
        %2111 = vmatpush.xpose.msra.mxu0 0.0
        %2112 = vmatpush.xpose.msra.mxu0 %v2096
        %2113 = vmatpush.xpose.msra.mxu0 %v2094
        %2114 = vmatmul.f32.gmra.mxu0 %v2090
        %v2115 = vpop.f32.mrf.mxu0
        %v2116 = vadd.f32 0.0, %v2115
        %2117 = vmatmul.f32.gmra.mxu0 %v2092
        %v2118 = vpop.f32.mrf.mxu0
        %v2119 = vadd.f32 0.0, %v2118
        %2120 = vdwg.mxu0
        %v2121 = vsel %vm240, %v330, 0
        %v2123 = vsel %vm240, %v331, 0
        %v2125 = vsel %vm240, %v872, 0
        %v2127 = vsel %vm240, %v874, 0
        %2129 = vmatpush.xpose.msra.mxu0 0.0
        %2130 = vmatpush.xpose.msra.mxu0 0.0
        %2131 = vmatpush.xpose.msra.mxu0 0.0
        %2132 = vmatpush.xpose.msra.mxu0 0.0
        %2133 = vmatpush.xpose.msra.mxu0 0.0
        %2134 = vmatpush.xpose.msra.mxu0 0.0
        %2135 = vmatpush.xpose.msra.mxu0 0.0
        %2136 = vmatpush.xpose.msra.mxu0 0.0
        %2137 = vmatpush.xpose.msra.mxu0 0.0
        %2138 = vmatpush.xpose.msra.mxu0 0.0
        %2139 = vmatpush.xpose.msra.mxu0 0.0
        %2140 = vmatpush.xpose.msra.mxu0 0.0
        %2141 = vmatpush.xpose.msra.mxu0 0.0
        %2142 = vmatpush.xpose.msra.mxu0 0.0
        %2143 = vmatpush.xpose.msra.mxu0 %v2127
        %2144 = vmatpush.xpose.msra.mxu0 %v2125
        %2145 = vmatmul.f32.gmra.mxu0 %v2121
        %v2146 = vpop.f32.mrf.mxu0
        %v2147 = vadd.f32 0.0, %v2146
        %2148 = vmatmul.f32.gmra.mxu0 %v2123
        %v2149 = vpop.f32.mrf.mxu0
        %v2150 = vadd.f32 0.0, %v2149
        %2151 = vdwg.mxu0
        %v2152 = vsel %vm240, %v332, 0
        %v2154 = vsel %vm240, %v333, 0
        %v2156 = vsel %vm240, %v876, 0
        %v2158 = vsel %vm240, %v878, 0
        %2160 = vmatpush.xpose.msra.mxu0 0.0
        %2161 = vmatpush.xpose.msra.mxu0 0.0
        %2162 = vmatpush.xpose.msra.mxu0 0.0
        %2163 = vmatpush.xpose.msra.mxu0 0.0
        %2164 = vmatpush.xpose.msra.mxu0 0.0
        %2165 = vmatpush.xpose.msra.mxu0 0.0
        %2166 = vmatpush.xpose.msra.mxu0 0.0
        %2167 = vmatpush.xpose.msra.mxu0 0.0
        %2168 = vmatpush.xpose.msra.mxu0 0.0
        %2169 = vmatpush.xpose.msra.mxu0 0.0
        %2170 = vmatpush.xpose.msra.mxu0 0.0
        %2171 = vmatpush.xpose.msra.mxu0 0.0
        %2172 = vmatpush.xpose.msra.mxu0 0.0
        %2173 = vmatpush.xpose.msra.mxu0 0.0
        %2174 = vmatpush.xpose.msra.mxu0 %v2158
        %2175 = vmatpush.xpose.msra.mxu0 %v2156
        %2176 = vmatmul.f32.gmra.mxu0 %v2152
        %v2177 = vpop.f32.mrf.mxu0
        %v2178 = vadd.f32 0.0, %v2177
        %2179 = vmatmul.f32.gmra.mxu0 %v2154
        %v2180 = vpop.f32.mrf.mxu0
        %v2181 = vadd.f32 0.0, %v2180
        %2182 = vdwg.mxu0
        %v2183 = vsel %vm240, %v350, 0
        %v2185 = vsel %vm240, %v351, 0
        %v2187 = vsel %vm240, %v880, 0
        %v2189 = vsel %vm240, %v882, 0
        %2191 = vmatpush.xpose.msra.mxu0 0.0
        %2192 = vmatpush.xpose.msra.mxu0 0.0
        %2193 = vmatpush.xpose.msra.mxu0 0.0
        %2194 = vmatpush.xpose.msra.mxu0 0.0
        %2195 = vmatpush.xpose.msra.mxu0 0.0
        %2196 = vmatpush.xpose.msra.mxu0 0.0
        %2197 = vmatpush.xpose.msra.mxu0 0.0
        %2198 = vmatpush.xpose.msra.mxu0 0.0
        %2199 = vmatpush.xpose.msra.mxu0 0.0
        %2200 = vmatpush.xpose.msra.mxu0 0.0
        %2201 = vmatpush.xpose.msra.mxu0 0.0
        %2202 = vmatpush.xpose.msra.mxu0 0.0
        %2203 = vmatpush.xpose.msra.mxu0 0.0
        %2204 = vmatpush.xpose.msra.mxu0 0.0
        %2205 = vmatpush.xpose.msra.mxu0 %v2189
        %2206 = vmatpush.xpose.msra.mxu0 %v2187
        %2207 = vmatmul.f32.gmra.mxu0 %v2183
        %v2208 = vpop.f32.mrf.mxu0
        %v2209 = vadd.f32 0.0, %v2208
        %2210 = vmatmul.f32.gmra.mxu0 %v2185
        %v2211 = vpop.f32.mrf.mxu0
        %v2212 = vadd.f32 0.0, %v2211
        %2213 = vdwg.mxu0
        %v2214 = vsel %vm240, %v352, 0
        %v2216 = vsel %vm240, %v353, 0
        %v2218 = vsel %vm240, %v884, 0
        %v2220 = vsel %vm240, %v886, 0
        %2222 = vmatpush.xpose.msra.mxu0 0.0
        %2223 = vmatpush.xpose.msra.mxu0 0.0
        %2224 = vmatpush.xpose.msra.mxu0 0.0
        %2225 = vmatpush.xpose.msra.mxu0 0.0
        %2226 = vmatpush.xpose.msra.mxu0 0.0
        %2227 = vmatpush.xpose.msra.mxu0 0.0
        %2228 = vmatpush.xpose.msra.mxu0 0.0
        %2229 = vmatpush.xpose.msra.mxu0 0.0
        %2230 = vmatpush.xpose.msra.mxu0 0.0
        %2231 = vmatpush.xpose.msra.mxu0 0.0
        %2232 = vmatpush.xpose.msra.mxu0 0.0
        %2233 = vmatpush.xpose.msra.mxu0 0.0
        %2234 = vmatpush.xpose.msra.mxu0 0.0
        %2235 = vmatpush.xpose.msra.mxu0 0.0
        %2236 = vmatpush.xpose.msra.mxu0 %v2220
        %2237 = vmatpush.xpose.msra.mxu0 %v2218
        %2238 = vmatmul.f32.gmra.mxu0 %v2214
        %v2239 = vpop.f32.mrf.mxu0
        %v2240 = vadd.f32 0.0, %v2239
        %2241 = vmatmul.f32.gmra.mxu0 %v2216
        %v2242 = vpop.f32.mrf.mxu0
        %v2243 = vadd.f32 0.0, %v2242
        %2244 = vdwg.mxu0
        %v2245 = vsel %vm240, %v354, 0
        %v2247 = vsel %vm240, %v355, 0
        %v2249 = vsel %vm240, %v888, 0
        %v2251 = vsel %vm240, %v890, 0
        %2253 = vmatpush.xpose.msra.mxu0 0.0
        %2254 = vmatpush.xpose.msra.mxu0 0.0
        %2255 = vmatpush.xpose.msra.mxu0 0.0
        %2256 = vmatpush.xpose.msra.mxu0 0.0
        %2257 = vmatpush.xpose.msra.mxu0 0.0
        %2258 = vmatpush.xpose.msra.mxu0 0.0
        %2259 = vmatpush.xpose.msra.mxu0 0.0
        %2260 = vmatpush.xpose.msra.mxu0 0.0
        %2261 = vmatpush.xpose.msra.mxu0 0.0
        %2262 = vmatpush.xpose.msra.mxu0 0.0
        %2263 = vmatpush.xpose.msra.mxu0 0.0
        %2264 = vmatpush.xpose.msra.mxu0 0.0
        %2265 = vmatpush.xpose.msra.mxu0 0.0
        %2266 = vmatpush.xpose.msra.mxu0 0.0
        %2267 = vmatpush.xpose.msra.mxu0 %v2251
        %2268 = vmatpush.xpose.msra.mxu0 %v2249
        %2269 = vmatmul.f32.gmra.mxu0 %v2245
        %v2270 = vpop.f32.mrf.mxu0
        %v2271 = vadd.f32 0.0, %v2270
        %2272 = vmatmul.f32.gmra.mxu0 %v2247
        %v2273 = vpop.f32.mrf.mxu0
        %v2274 = vadd.f32 0.0, %v2273
        %2275 = vdwg.mxu0
        %v2276 = vsel %vm240, %v356, 0
        %v2278 = vsel %vm240, %v357, 0
        %v2280 = vsel %vm240, %v892, 0
        %v2282 = vsel %vm240, %v894, 0
        %2284 = vmatpush.xpose.msra.mxu0 0.0
        %2285 = vmatpush.xpose.msra.mxu0 0.0
        %2286 = vmatpush.xpose.msra.mxu0 0.0
        %2287 = vmatpush.xpose.msra.mxu0 0.0
        %2288 = vmatpush.xpose.msra.mxu0 0.0
        %2289 = vmatpush.xpose.msra.mxu0 0.0
        %2290 = vmatpush.xpose.msra.mxu0 0.0
        %2291 = vmatpush.xpose.msra.mxu0 0.0
        %2292 = vmatpush.xpose.msra.mxu0 0.0
        %2293 = vmatpush.xpose.msra.mxu0 0.0
        %2294 = vmatpush.xpose.msra.mxu0 0.0
        %2295 = vmatpush.xpose.msra.mxu0 0.0
        %2296 = vmatpush.xpose.msra.mxu0 0.0
        %2297 = vmatpush.xpose.msra.mxu0 0.0
        %2298 = vmatpush.xpose.msra.mxu0 %v2282
        %2299 = vmatpush.xpose.msra.mxu0 %v2280
        %2300 = vmatmul.f32.gmra.mxu0 %v2276
        %v2301 = vpop.f32.mrf.mxu0
        %v2302 = vadd.f32 0.0, %v2301
        %2303 = vmatmul.f32.gmra.mxu0 %v2278
        %v2304 = vpop.f32.mrf.mxu0
        %v2305 = vadd.f32 0.0, %v2304
        %2306 = vdwg.mxu0
        %v2307 = vsel %vm240, %v358, 0
        %v2309 = vsel %vm240, %v359, 0
        %v2311 = vsel %vm240, %v896, 0
        %v2313 = vsel %vm240, %v898, 0
        %2315 = vmatpush.xpose.msra.mxu0 0.0
        %2316 = vmatpush.xpose.msra.mxu0 0.0
        %2317 = vmatpush.xpose.msra.mxu0 0.0
        %2318 = vmatpush.xpose.msra.mxu0 0.0
        %2319 = vmatpush.xpose.msra.mxu0 0.0
        %2320 = vmatpush.xpose.msra.mxu0 0.0
        %2321 = vmatpush.xpose.msra.mxu0 0.0
        %2322 = vmatpush.xpose.msra.mxu0 0.0
        %2323 = vmatpush.xpose.msra.mxu0 0.0
        %2324 = vmatpush.xpose.msra.mxu0 0.0
        %2325 = vmatpush.xpose.msra.mxu0 0.0
        %2326 = vmatpush.xpose.msra.mxu0 0.0
        %2327 = vmatpush.xpose.msra.mxu0 0.0
        %2328 = vmatpush.xpose.msra.mxu0 0.0
        %2329 = vmatpush.xpose.msra.mxu0 %v2313
        %2330 = vmatpush.xpose.msra.mxu0 %v2311
        %2331 = vmatmul.f32.gmra.mxu0 %v2307
        %v2332 = vpop.f32.mrf.mxu0
        %v2333 = vadd.f32 0.0, %v2332
        %2334 = vmatmul.f32.gmra.mxu0 %v2309
        %v2335 = vpop.f32.mrf.mxu0
        %v2336 = vadd.f32 0.0, %v2335
        %2337 = vdwg.mxu0
        %v2338 = vsel %vm240, %v360, 0
        %v2340 = vsel %vm240, %v361, 0
        %v2342 = vsel %vm240, %v900, 0
        %v2344 = vsel %vm240, %v902, 0
        %2346 = vmatpush.xpose.msra.mxu0 0.0
        %2347 = vmatpush.xpose.msra.mxu0 0.0
        %2348 = vmatpush.xpose.msra.mxu0 0.0
        %2349 = vmatpush.xpose.msra.mxu0 0.0
        %2350 = vmatpush.xpose.msra.mxu0 0.0
        %2351 = vmatpush.xpose.msra.mxu0 0.0
        %2352 = vmatpush.xpose.msra.mxu0 0.0
        %2353 = vmatpush.xpose.msra.mxu0 0.0
        %2354 = vmatpush.xpose.msra.mxu0 0.0
        %2355 = vmatpush.xpose.msra.mxu0 0.0
        %2356 = vmatpush.xpose.msra.mxu0 0.0
        %2357 = vmatpush.xpose.msra.mxu0 0.0
        %2358 = vmatpush.xpose.msra.mxu0 0.0
        %2359 = vmatpush.xpose.msra.mxu0 0.0
        %2360 = vmatpush.xpose.msra.mxu0 %v2344
        %2361 = vmatpush.xpose.msra.mxu0 %v2342
        %2362 = vmatmul.f32.gmra.mxu0 %v2338
        %v2363 = vpop.f32.mrf.mxu0
        %v2364 = vadd.f32 0.0, %v2363
        %2365 = vmatmul.f32.gmra.mxu0 %v2340
        %v2366 = vpop.f32.mrf.mxu0
        %v2367 = vadd.f32 0.0, %v2366
        %2368 = vdwg.mxu0
        %v2369 = vsel %vm240, %v362, 0
        %v2371 = vsel %vm240, %v363, 0
        %v2373 = vsel %vm240, %v904, 0
        %v2375 = vsel %vm240, %v906, 0
        %2377 = vmatpush.xpose.msra.mxu0 0.0
        %2378 = vmatpush.xpose.msra.mxu0 0.0
        %2379 = vmatpush.xpose.msra.mxu0 0.0
        %2380 = vmatpush.xpose.msra.mxu0 0.0
        %2381 = vmatpush.xpose.msra.mxu0 0.0
        %2382 = vmatpush.xpose.msra.mxu0 0.0
        %2383 = vmatpush.xpose.msra.mxu0 0.0
        %2384 = vmatpush.xpose.msra.mxu0 0.0
        %2385 = vmatpush.xpose.msra.mxu0 0.0
        %2386 = vmatpush.xpose.msra.mxu0 0.0
        %2387 = vmatpush.xpose.msra.mxu0 0.0
        %2388 = vmatpush.xpose.msra.mxu0 0.0
        %2389 = vmatpush.xpose.msra.mxu0 0.0
        %2390 = vmatpush.xpose.msra.mxu0 0.0
        %2391 = vmatpush.xpose.msra.mxu0 %v2375
        %2392 = vmatpush.xpose.msra.mxu0 %v2373
        %2393 = vmatmul.f32.gmra.mxu0 %v2369
        %v2394 = vpop.f32.mrf.mxu0
        %v2395 = vadd.f32 0.0, %v2394
        %2396 = vmatmul.f32.gmra.mxu0 %v2371
        %v2397 = vpop.f32.mrf.mxu0
        %v2398 = vadd.f32 0.0, %v2397
        %2399 = vdwg.mxu0
        %v2400 = vsel %vm240, %v364, 0
        %v2402 = vsel %vm240, %v365, 0
        %v2404 = vsel %vm240, %v908, 0
        %v2406 = vsel %vm240, %v910, 0
        %2408 = vmatpush.xpose.msra.mxu0 0.0
        %2409 = vmatpush.xpose.msra.mxu0 0.0
        %2410 = vmatpush.xpose.msra.mxu0 0.0
        %2411 = vmatpush.xpose.msra.mxu0 0.0
        %2412 = vmatpush.xpose.msra.mxu0 0.0
        %2413 = vmatpush.xpose.msra.mxu0 0.0
        %2414 = vmatpush.xpose.msra.mxu0 0.0
        %2415 = vmatpush.xpose.msra.mxu0 0.0
        %2416 = vmatpush.xpose.msra.mxu0 0.0
        %2417 = vmatpush.xpose.msra.mxu0 0.0
        %2418 = vmatpush.xpose.msra.mxu0 0.0
        %2419 = vmatpush.xpose.msra.mxu0 0.0
        %2420 = vmatpush.xpose.msra.mxu0 0.0
        %2421 = vmatpush.xpose.msra.mxu0 0.0
        %2422 = vmatpush.xpose.msra.mxu0 %v2406
        %2423 = vmatpush.xpose.msra.mxu0 %v2404
        %2424 = vmatmul.f32.gmra.mxu0 %v2400
        %v2425 = vpop.f32.mrf.mxu0
        %v2426 = vadd.f32 0.0, %v2425
        %2427 = vmatmul.f32.gmra.mxu0 %v2402
        %v2428 = vpop.f32.mrf.mxu0
        %v2429 = vadd.f32 0.0, %v2428
        %2430 = vdwg.mxu0
        %vm2431 = vcmask 130048
        %v2432 = vsel %vm2431, %v1961, -inf
        %2433 = vmax.xlane.f32.xlu0 %v2432
        %v2434 = vpop.xlane.xlu0 %2433
        %v2435 = vsel %vm2431, %v1964, -inf
        %2436 = vmax.xlane.f32.xlu0 %v2435
        %v2437 = vpop.xlane.xlu0 %2436
        %v2438 = vsel %vm2431, %v1992, -inf
        %2439 = vmax.xlane.f32.xlu0 %v2438
        %v2440 = vpop.xlane.xlu0 %2439
        %v2441 = vsel %vm2431, %v1995, -inf
        %2442 = vmax.xlane.f32.xlu0 %v2441
        %v2443 = vpop.xlane.xlu0 %2442
        %v2444 = vsel %vm2431, %v2023, -inf
        %2445 = vmax.xlane.f32.xlu0 %v2444
        %v2446 = vpop.xlane.xlu0 %2445
        %v2447 = vsel %vm2431, %v2026, -inf
        %2448 = vmax.xlane.f32.xlu0 %v2447
        %v2449 = vpop.xlane.xlu0 %2448
        %v2450 = vsel %vm2431, %v2054, -inf
        %2451 = vmax.xlane.f32.xlu0 %v2450
        %v2452 = vpop.xlane.xlu0 %2451
        %v2453 = vsel %vm2431, %v2057, -inf
        %2454 = vmax.xlane.f32.xlu0 %v2453
        %v2455 = vpop.xlane.xlu0 %2454
        %v2456 = vsel %vm2431, %v2085, -inf
        %2457 = vmax.xlane.f32.xlu0 %v2456
        %v2458 = vpop.xlane.xlu0 %2457
        %v2459 = vsel %vm2431, %v2088, -inf
        %2460 = vmax.xlane.f32.xlu0 %v2459
        %v2461 = vpop.xlane.xlu0 %2460
        %v2462 = vsel %vm2431, %v2116, -inf
        %2463 = vmax.xlane.f32.xlu0 %v2462
        %v2464 = vpop.xlane.xlu0 %2463
        %v2465 = vsel %vm2431, %v2119, -inf
        %2466 = vmax.xlane.f32.xlu0 %v2465
        %v2467 = vpop.xlane.xlu0 %2466
        %v2468 = vsel %vm2431, %v2147, -inf
        %2469 = vmax.xlane.f32.xlu0 %v2468
        %v2470 = vpop.xlane.xlu0 %2469
        %v2471 = vsel %vm2431, %v2150, -inf
        %2472 = vmax.xlane.f32.xlu0 %v2471
        %v2473 = vpop.xlane.xlu0 %2472
        %v2474 = vsel %vm2431, %v2178, -inf
        %2475 = vmax.xlane.f32.xlu0 %v2474
        %v2476 = vpop.xlane.xlu0 %2475
        %v2477 = vsel %vm2431, %v2181, -inf
        %2478 = vmax.xlane.f32.xlu0 %v2477
        %v2479 = vpop.xlane.xlu0 %2478
        %v2480 = vsel %vm2431, %v2209, -inf
        %2481 = vmax.xlane.f32.xlu0 %v2480
        %v2482 = vpop.xlane.xlu0 %2481
        %v2483 = vsel %vm2431, %v2212, -inf
        %2484 = vmax.xlane.f32.xlu0 %v2483
        %v2485 = vpop.xlane.xlu0 %2484
        %v2486 = vsel %vm2431, %v2240, -inf
        %2487 = vmax.xlane.f32.xlu0 %v2486
        %v2488 = vpop.xlane.xlu0 %2487
        %v2489 = vsel %vm2431, %v2243, -inf
        %2490 = vmax.xlane.f32.xlu0 %v2489
        %v2491 = vpop.xlane.xlu0 %2490
        %v2492 = vsel %vm2431, %v2271, -inf
        %2493 = vmax.xlane.f32.xlu0 %v2492
        %v2494 = vpop.xlane.xlu0 %2493
        %v2495 = vsel %vm2431, %v2274, -inf
        %2496 = vmax.xlane.f32.xlu0 %v2495
        %v2497 = vpop.xlane.xlu0 %2496
        %v2498 = vsel %vm2431, %v2302, -inf
        %2499 = vmax.xlane.f32.xlu0 %v2498
        %v2500 = vpop.xlane.xlu0 %2499
        %v2501 = vsel %vm2431, %v2305, -inf
        %2502 = vmax.xlane.f32.xlu0 %v2501
        %v2503 = vpop.xlane.xlu0 %2502
        %v2504 = vsel %vm2431, %v2333, -inf
        %2505 = vmax.xlane.f32.xlu0 %v2504
        %v2506 = vpop.xlane.xlu0 %2505
        %v2507 = vsel %vm2431, %v2336, -inf
        %2508 = vmax.xlane.f32.xlu0 %v2507
        %v2509 = vpop.xlane.xlu0 %2508
        %v2510 = vsel %vm2431, %v2364, -inf
        %2511 = vmax.xlane.f32.xlu0 %v2510
        %v2512 = vpop.xlane.xlu0 %2511
        %v2513 = vsel %vm2431, %v2367, -inf
        %2514 = vmax.xlane.f32.xlu0 %v2513
        %v2515 = vpop.xlane.xlu0 %2514
        %v2516 = vsel %vm2431, %v2395, -inf
        %2517 = vmax.xlane.f32.xlu0 %v2516
        %v2518 = vpop.xlane.xlu0 %2517
        %v2519 = vsel %vm2431, %v2398, -inf
        %2520 = vmax.xlane.f32.xlu0 %v2519
        %v2521 = vpop.xlane.xlu0 %2520
        %v2522 = vsel %vm2431, %v2426, -inf
        %2523 = vmax.xlane.f32.xlu0 %v2522
        %v2524 = vpop.xlane.xlu0 %2523
        %v2525 = vsel %vm2431, %v2429, -inf
        %2526 = vmax.xlane.f32.xlu0 %v2525
        %v2527 = vpop.xlane.xlu0 %2526
        %v2528 = vsub.f32 %v1961, %v2434
        %v2529 = vsub.f32 %v1964, %v2437
        %v2530 = vsub.f32 %v1992, %v2440
        %v2531 = vsub.f32 %v1995, %v2443
        %v2532 = vsub.f32 %v2023, %v2446
        %v2533 = vsub.f32 %v2026, %v2449
        %v2534 = vsub.f32 %v2054, %v2452
        %v2535 = vsub.f32 %v2057, %v2455
        %v2536 = vsub.f32 %v2085, %v2458
        %v2537 = vsub.f32 %v2088, %v2461
        %v2538 = vsub.f32 %v2116, %v2464
        %v2539 = vsub.f32 %v2119, %v2467
        %v2540 = vsub.f32 %v2147, %v2470
        %v2541 = vsub.f32 %v2150, %v2473
        %v2542 = vsub.f32 %v2178, %v2476
        %v2543 = vsub.f32 %v2181, %v2479
        %v2544 = vsub.f32 %v2209, %v2482
        %v2545 = vsub.f32 %v2212, %v2485
        %v2546 = vsub.f32 %v2240, %v2488
        %v2547 = vsub.f32 %v2243, %v2491
        %v2548 = vsub.f32 %v2271, %v2494
        %v2549 = vsub.f32 %v2274, %v2497
        %v2550 = vsub.f32 %v2302, %v2500
        %v2551 = vsub.f32 %v2305, %v2503
        %v2552 = vsub.f32 %v2333, %v2506
        %v2553 = vsub.f32 %v2336, %v2509
        %v2554 = vsub.f32 %v2364, %v2512
        %v2555 = vsub.f32 %v2367, %v2515
        %v2556 = vsub.f32 %v2395, %v2518
        %v2557 = vsub.f32 %v2398, %v2521
        %v2558 = vsub.f32 %v2426, %v2524
        %v2559 = vsub.f32 %v2429, %v2527
        %v2560 = vmul.f32 %v2528, 1.442695
        %v2561 = vpow.pop %v2560
        %v2562 = vmul.f32 %v2529, 1.442695
        %v2563 = vpow.pop %v2562
        %v2564 = vmul.f32 %v2530, 1.442695
        %v2565 = vpow.pop %v2564
        %v2566 = vmul.f32 %v2531, 1.442695
        %v2567 = vpow.pop %v2566
        %v2568 = vmul.f32 %v2532, 1.442695
        %v2569 = vpow.pop %v2568
        %v2570 = vmul.f32 %v2533, 1.442695
        %v2571 = vpow.pop %v2570
        %v2572 = vmul.f32 %v2534, 1.442695
        %v2573 = vpow.pop %v2572
        %v2574 = vmul.f32 %v2535, 1.442695
        %v2575 = vpow.pop %v2574
        %v2576 = vmul.f32 %v2536, 1.442695
        %v2577 = vpow.pop %v2576
        %v2578 = vmul.f32 %v2537, 1.442695
        %v2579 = vpow.pop %v2578
        %v2580 = vmul.f32 %v2538, 1.442695
        %v2581 = vpow.pop %v2580
        %v2582 = vmul.f32 %v2539, 1.442695
        %v2583 = vpow.pop %v2582
        %v2584 = vmul.f32 %v2540, 1.442695
        %v2585 = vpow.pop %v2584
        %v2586 = vmul.f32 %v2541, 1.442695
        %v2587 = vpow.pop %v2586
        %v2588 = vmul.f32 %v2542, 1.442695
        %v2589 = vpow.pop %v2588
        %v2590 = vmul.f32 %v2543, 1.442695
        %v2591 = vpow.pop %v2590
        %v2592 = vmul.f32 %v2544, 1.442695
        %v2593 = vpow.pop %v2592
        %v2594 = vmul.f32 %v2545, 1.442695
        %v2595 = vpow.pop %v2594
        %v2596 = vmul.f32 %v2546, 1.442695
        %v2597 = vpow.pop %v2596
        %v2598 = vmul.f32 %v2547, 1.442695
        %v2599 = vpow.pop %v2598
        %v2600 = vmul.f32 %v2548, 1.442695
        %v2601 = vpow.pop %v2600
        %v2602 = vmul.f32 %v2549, 1.442695
        %v2603 = vpow.pop %v2602
        %v2604 = vmul.f32 %v2550, 1.442695
        %v2605 = vpow.pop %v2604
        %v2606 = vmul.f32 %v2551, 1.442695
        %v2607 = vpow.pop %v2606
        %v2608 = vmul.f32 %v2552, 1.442695
        %v2609 = vpow.pop %v2608
        %v2610 = vmul.f32 %v2553, 1.442695
        %v2611 = vpow.pop %v2610
        %v2612 = vmul.f32 %v2554, 1.442695
        %v2613 = vpow.pop %v2612
        %v2614 = vmul.f32 %v2555, 1.442695
        %v2615 = vpow.pop %v2614
        %v2616 = vmul.f32 %v2556, 1.442695
        %v2617 = vpow.pop %v2616
        %v2618 = vmul.f32 %v2557, 1.442695
        %v2619 = vpow.pop %v2618
        %v2620 = vmul.f32 %v2558, 1.442695
        %v2621 = vpow.pop %v2620
        %v2622 = vmul.f32 %v2559, 1.442695
        %v2623 = vpow.pop %v2622
        %v2624 = vsel %vm2431, %v2561, 0.0
        %2625 = vadd.xlane.f32.xlu0 %v2624
        %v2626 = vpop.xlane.xlu0 %2625
        %v2627 = vsel %vm2431, %v2563, 0.0
        %2628 = vadd.xlane.f32.xlu0 %v2627
        %v2629 = vpop.xlane.xlu0 %2628
        %v2630 = vsel %vm2431, %v2565, 0.0
        %2631 = vadd.xlane.f32.xlu0 %v2630
        %v2632 = vpop.xlane.xlu0 %2631
        %v2633 = vsel %vm2431, %v2567, 0.0
        %2634 = vadd.xlane.f32.xlu0 %v2633
        %v2635 = vpop.xlane.xlu0 %2634
        %v2636 = vsel %vm2431, %v2569, 0.0
        %2637 = vadd.xlane.f32.xlu0 %v2636
        %v2638 = vpop.xlane.xlu0 %2637
        %v2639 = vsel %vm2431, %v2571, 0.0
        %2640 = vadd.xlane.f32.xlu0 %v2639
        %v2641 = vpop.xlane.xlu0 %2640
        %v2642 = vsel %vm2431, %v2573, 0.0
        %2643 = vadd.xlane.f32.xlu0 %v2642
        %v2644 = vpop.xlane.xlu0 %2643
        %v2645 = vsel %vm2431, %v2575, 0.0
        %2646 = vadd.xlane.f32.xlu0 %v2645
        %v2647 = vpop.xlane.xlu0 %2646
        %v2648 = vsel %vm2431, %v2577, 0.0
        %2649 = vadd.xlane.f32.xlu0 %v2648
        %v2650 = vpop.xlane.xlu0 %2649
        %v2651 = vsel %vm2431, %v2579, 0.0
        %2652 = vadd.xlane.f32.xlu0 %v2651
        %v2653 = vpop.xlane.xlu0 %2652
        %v2654 = vsel %vm2431, %v2581, 0.0
        %2655 = vadd.xlane.f32.xlu0 %v2654
        %v2656 = vpop.xlane.xlu0 %2655
        %v2657 = vsel %vm2431, %v2583, 0.0
        %2658 = vadd.xlane.f32.xlu0 %v2657
        %v2659 = vpop.xlane.xlu0 %2658
        %v2660 = vsel %vm2431, %v2585, 0.0
        %2661 = vadd.xlane.f32.xlu0 %v2660
        %v2662 = vpop.xlane.xlu0 %2661
        %v2663 = vsel %vm2431, %v2587, 0.0
        %2664 = vadd.xlane.f32.xlu0 %v2663
        %v2665 = vpop.xlane.xlu0 %2664
        %v2666 = vsel %vm2431, %v2589, 0.0
        %2667 = vadd.xlane.f32.xlu0 %v2666
        %v2668 = vpop.xlane.xlu0 %2667
        %v2669 = vsel %vm2431, %v2591, 0.0
        %2670 = vadd.xlane.f32.xlu0 %v2669
        %v2671 = vpop.xlane.xlu0 %2670
        %v2672 = vsel %vm2431, %v2593, 0.0
        %2673 = vadd.xlane.f32.xlu0 %v2672
        %v2674 = vpop.xlane.xlu0 %2673
        %v2675 = vsel %vm2431, %v2595, 0.0
        %2676 = vadd.xlane.f32.xlu0 %v2675
        %v2677 = vpop.xlane.xlu0 %2676
        %v2678 = vsel %vm2431, %v2597, 0.0
        %2679 = vadd.xlane.f32.xlu0 %v2678
        %v2680 = vpop.xlane.xlu0 %2679
        %v2681 = vsel %vm2431, %v2599, 0.0
        %2682 = vadd.xlane.f32.xlu0 %v2681
        %v2683 = vpop.xlane.xlu0 %2682
        %v2684 = vsel %vm2431, %v2601, 0.0
        %2685 = vadd.xlane.f32.xlu0 %v2684
        %v2686 = vpop.xlane.xlu0 %2685
        %v2687 = vsel %vm2431, %v2603, 0.0
        %2688 = vadd.xlane.f32.xlu0 %v2687
        %v2689 = vpop.xlane.xlu0 %2688
        %v2690 = vsel %vm2431, %v2605, 0.0
        %2691 = vadd.xlane.f32.xlu0 %v2690
        %v2692 = vpop.xlane.xlu0 %2691
        %v2693 = vsel %vm2431, %v2607, 0.0
        %2694 = vadd.xlane.f32.xlu0 %v2693
        %v2695 = vpop.xlane.xlu0 %2694
        %v2696 = vsel %vm2431, %v2609, 0.0
        %2697 = vadd.xlane.f32.xlu0 %v2696
        %v2698 = vpop.xlane.xlu0 %2697
        %v2699 = vsel %vm2431, %v2611, 0.0
        %2700 = vadd.xlane.f32.xlu0 %v2699
        %v2701 = vpop.xlane.xlu0 %2700
        %v2702 = vsel %vm2431, %v2613, 0.0
        %2703 = vadd.xlane.f32.xlu0 %v2702
        %v2704 = vpop.xlane.xlu0 %2703
        %v2705 = vsel %vm2431, %v2615, 0.0
        %2706 = vadd.xlane.f32.xlu0 %v2705
        %v2707 = vpop.xlane.xlu0 %2706
        %v2708 = vsel %vm2431, %v2617, 0.0
        %2709 = vadd.xlane.f32.xlu0 %v2708
        %v2710 = vpop.xlane.xlu0 %2709
        %v2711 = vsel %vm2431, %v2619, 0.0
        %2712 = vadd.xlane.f32.xlu0 %v2711
        %v2713 = vpop.xlane.xlu0 %2712
        %v2714 = vsel %vm2431, %v2621, 0.0
        %2715 = vadd.xlane.f32.xlu0 %v2714
        %v2716 = vpop.xlane.xlu0 %2715
        %v2717 = vsel %vm2431, %v2623, 0.0
        %2718 = vadd.xlane.f32.xlu0 %v2717
        %v2719 = vpop.xlane.xlu0 %2718
        %v2721 = vsel %vm2431, %v2561, 0
        %v2724 = vsel %vm2431, %v2563, 0
        %2726 = vmatpush.msra.mxu0 0.0
        %2727 = vmatpush.msra.mxu0 0.0
        %2728 = vmatpush.msra.mxu0 0.0
        %2729 = vmatpush.msra.mxu0 0.0
        %2730 = vmatpush.msra.mxu0 0.0
        %2731 = vmatpush.msra.mxu0 0.0
        %2732 = vmatpush.msra.mxu0 0.0
        %2733 = vmatpush.msra.mxu0 0.0
        %2734 = vmatpush.msra.mxu0 0.0
        %2735 = vmatpush.msra.mxu0 0.0
        %2736 = vmatpush.msra.mxu0 0.0
        %2737 = vmatpush.msra.mxu0 0.0
        %2738 = vmatpush.msra.mxu0 0.0
        %2739 = vmatpush.msra.mxu0 0.0
        %2740 = vmatpush.msra.mxu0 %v1394
        %2741 = vmatpush.msra.mxu0 %v1392
        %2742 = vmatmul.f32.gmra.mxu0 %v2721
        %v2743 = vpop.f32.mrf.mxu0
        %v2744 = vadd.f32 0.0, %v2743
        %2745 = vmatmul.f32.gmra.mxu0 %v2724
        %v2746 = vpop.f32.mrf.mxu0
        %v2747 = vadd.f32 0.0, %v2746
        %2748 = vdwg.mxu0
        %v2750 = vsel %vm2431, %v2565, 0
        %v2753 = vsel %vm2431, %v2567, 0
        %2755 = vmatpush.msra.mxu0 0.0
        %2756 = vmatpush.msra.mxu0 0.0
        %2757 = vmatpush.msra.mxu0 0.0
        %2758 = vmatpush.msra.mxu0 0.0
        %2759 = vmatpush.msra.mxu0 0.0
        %2760 = vmatpush.msra.mxu0 0.0
        %2761 = vmatpush.msra.mxu0 0.0
        %2762 = vmatpush.msra.mxu0 0.0
        %2763 = vmatpush.msra.mxu0 0.0
        %2764 = vmatpush.msra.mxu0 0.0
        %2765 = vmatpush.msra.mxu0 0.0
        %2766 = vmatpush.msra.mxu0 0.0
        %2767 = vmatpush.msra.mxu0 0.0
        %2768 = vmatpush.msra.mxu0 0.0
        %2769 = vmatpush.msra.mxu0 %v1398
        %2770 = vmatpush.msra.mxu0 %v1396
        %2771 = vmatmul.f32.gmra.mxu0 %v2750
        %v2772 = vpop.f32.mrf.mxu0
        %v2773 = vadd.f32 0.0, %v2772
        %2774 = vmatmul.f32.gmra.mxu0 %v2753
        %v2775 = vpop.f32.mrf.mxu0
        %v2776 = vadd.f32 0.0, %v2775
        %2777 = vdwg.mxu0
        %v2779 = vsel %vm2431, %v2569, 0
        %v2782 = vsel %vm2431, %v2571, 0
        %2784 = vmatpush.msra.mxu0 0.0
        %2785 = vmatpush.msra.mxu0 0.0
        %2786 = vmatpush.msra.mxu0 0.0
        %2787 = vmatpush.msra.mxu0 0.0
        %2788 = vmatpush.msra.mxu0 0.0
        %2789 = vmatpush.msra.mxu0 0.0
        %2790 = vmatpush.msra.mxu0 0.0
        %2791 = vmatpush.msra.mxu0 0.0
        %2792 = vmatpush.msra.mxu0 0.0
        %2793 = vmatpush.msra.mxu0 0.0
        %2794 = vmatpush.msra.mxu0 0.0
        %2795 = vmatpush.msra.mxu0 0.0
        %2796 = vmatpush.msra.mxu0 0.0
        %2797 = vmatpush.msra.mxu0 0.0
        %2798 = vmatpush.msra.mxu0 %v1402
        %2799 = vmatpush.msra.mxu0 %v1400
        %2800 = vmatmul.f32.gmra.mxu0 %v2779
        %v2801 = vpop.f32.mrf.mxu0
        %v2802 = vadd.f32 0.0, %v2801
        %2803 = vmatmul.f32.gmra.mxu0 %v2782
        %v2804 = vpop.f32.mrf.mxu0
        %v2805 = vadd.f32 0.0, %v2804
        %2806 = vdwg.mxu0
        %v2808 = vsel %vm2431, %v2573, 0
        %v2811 = vsel %vm2431, %v2575, 0
        %2813 = vmatpush.msra.mxu0 0.0
        %2814 = vmatpush.msra.mxu0 0.0
        %2815 = vmatpush.msra.mxu0 0.0
        %2816 = vmatpush.msra.mxu0 0.0
        %2817 = vmatpush.msra.mxu0 0.0
        %2818 = vmatpush.msra.mxu0 0.0
        %2819 = vmatpush.msra.mxu0 0.0
        %2820 = vmatpush.msra.mxu0 0.0
        %2821 = vmatpush.msra.mxu0 0.0
        %2822 = vmatpush.msra.mxu0 0.0
        %2823 = vmatpush.msra.mxu0 0.0
        %2824 = vmatpush.msra.mxu0 0.0
        %2825 = vmatpush.msra.mxu0 0.0
        %2826 = vmatpush.msra.mxu0 0.0
        %2827 = vmatpush.msra.mxu0 %v1406
        %2828 = vmatpush.msra.mxu0 %v1404
        %2829 = vmatmul.f32.gmra.mxu0 %v2808
        %v2830 = vpop.f32.mrf.mxu0
        %v2831 = vadd.f32 0.0, %v2830
        %2832 = vmatmul.f32.gmra.mxu0 %v2811
        %v2833 = vpop.f32.mrf.mxu0
        %v2834 = vadd.f32 0.0, %v2833
        %2835 = vdwg.mxu0
        %v2837 = vsel %vm2431, %v2577, 0
        %v2840 = vsel %vm2431, %v2579, 0
        %2842 = vmatpush.msra.mxu0 0.0
        %2843 = vmatpush.msra.mxu0 0.0
        %2844 = vmatpush.msra.mxu0 0.0
        %2845 = vmatpush.msra.mxu0 0.0
        %2846 = vmatpush.msra.mxu0 0.0
        %2847 = vmatpush.msra.mxu0 0.0
        %2848 = vmatpush.msra.mxu0 0.0
        %2849 = vmatpush.msra.mxu0 0.0
        %2850 = vmatpush.msra.mxu0 0.0
        %2851 = vmatpush.msra.mxu0 0.0
        %2852 = vmatpush.msra.mxu0 0.0
        %2853 = vmatpush.msra.mxu0 0.0
        %2854 = vmatpush.msra.mxu0 0.0
        %2855 = vmatpush.msra.mxu0 0.0
        %2856 = vmatpush.msra.mxu0 %v1410
        %2857 = vmatpush.msra.mxu0 %v1408
        %2858 = vmatmul.f32.gmra.mxu0 %v2837
        %v2859 = vpop.f32.mrf.mxu0
        %v2860 = vadd.f32 0.0, %v2859
        %2861 = vmatmul.f32.gmra.mxu0 %v2840
        %v2862 = vpop.f32.mrf.mxu0
        %v2863 = vadd.f32 0.0, %v2862
        %2864 = vdwg.mxu0
        %v2866 = vsel %vm2431, %v2581, 0
        %v2869 = vsel %vm2431, %v2583, 0
        %2871 = vmatpush.msra.mxu0 0.0
        %2872 = vmatpush.msra.mxu0 0.0
        %2873 = vmatpush.msra.mxu0 0.0
        %2874 = vmatpush.msra.mxu0 0.0
        %2875 = vmatpush.msra.mxu0 0.0
        %2876 = vmatpush.msra.mxu0 0.0
        %2877 = vmatpush.msra.mxu0 0.0
        %2878 = vmatpush.msra.mxu0 0.0
        %2879 = vmatpush.msra.mxu0 0.0
        %2880 = vmatpush.msra.mxu0 0.0
        %2881 = vmatpush.msra.mxu0 0.0
        %2882 = vmatpush.msra.mxu0 0.0
        %2883 = vmatpush.msra.mxu0 0.0
        %2884 = vmatpush.msra.mxu0 0.0
        %2885 = vmatpush.msra.mxu0 %v1414
        %2886 = vmatpush.msra.mxu0 %v1412
        %2887 = vmatmul.f32.gmra.mxu0 %v2866
        %v2888 = vpop.f32.mrf.mxu0
        %v2889 = vadd.f32 0.0, %v2888
        %2890 = vmatmul.f32.gmra.mxu0 %v2869
        %v2891 = vpop.f32.mrf.mxu0
        %v2892 = vadd.f32 0.0, %v2891
        %2893 = vdwg.mxu0
        %v2895 = vsel %vm2431, %v2585, 0
        %v2898 = vsel %vm2431, %v2587, 0
        %2900 = vmatpush.msra.mxu0 0.0
        %2901 = vmatpush.msra.mxu0 0.0
        %2902 = vmatpush.msra.mxu0 0.0
        %2903 = vmatpush.msra.mxu0 0.0
        %2904 = vmatpush.msra.mxu0 0.0
        %2905 = vmatpush.msra.mxu0 0.0
        %2906 = vmatpush.msra.mxu0 0.0
        %2907 = vmatpush.msra.mxu0 0.0
        %2908 = vmatpush.msra.mxu0 0.0
        %2909 = vmatpush.msra.mxu0 0.0
        %2910 = vmatpush.msra.mxu0 0.0
        %2911 = vmatpush.msra.mxu0 0.0
        %2912 = vmatpush.msra.mxu0 0.0
        %2913 = vmatpush.msra.mxu0 0.0
        %2914 = vmatpush.msra.mxu0 %v1418
        %2915 = vmatpush.msra.mxu0 %v1416
        %2916 = vmatmul.f32.gmra.mxu0 %v2895
        %v2917 = vpop.f32.mrf.mxu0
        %v2918 = vadd.f32 0.0, %v2917
        %2919 = vmatmul.f32.gmra.mxu0 %v2898
        %v2920 = vpop.f32.mrf.mxu0
        %v2921 = vadd.f32 0.0, %v2920
        %2922 = vdwg.mxu0
        %v2924 = vsel %vm2431, %v2589, 0
        %v2927 = vsel %vm2431, %v2591, 0
        %2929 = vmatpush.msra.mxu0 0.0
        %2930 = vmatpush.msra.mxu0 0.0
        %2931 = vmatpush.msra.mxu0 0.0
        %2932 = vmatpush.msra.mxu0 0.0
        %2933 = vmatpush.msra.mxu0 0.0
        %2934 = vmatpush.msra.mxu0 0.0
        %2935 = vmatpush.msra.mxu0 0.0
        %2936 = vmatpush.msra.mxu0 0.0
        %2937 = vmatpush.msra.mxu0 0.0
        %2938 = vmatpush.msra.mxu0 0.0
        %2939 = vmatpush.msra.mxu0 0.0
        %2940 = vmatpush.msra.mxu0 0.0
        %2941 = vmatpush.msra.mxu0 0.0
        %2942 = vmatpush.msra.mxu0 0.0
        %2943 = vmatpush.msra.mxu0 %v1422
        %2944 = vmatpush.msra.mxu0 %v1420
        %2945 = vmatmul.f32.gmra.mxu0 %v2924
        %v2946 = vpop.f32.mrf.mxu0
        %v2947 = vadd.f32 0.0, %v2946
        %2948 = vmatmul.f32.gmra.mxu0 %v2927
        %v2949 = vpop.f32.mrf.mxu0
        %v2950 = vadd.f32 0.0, %v2949
        %2951 = vdwg.mxu0
        %v2953 = vsel %vm2431, %v2593, 0
        %v2956 = vsel %vm2431, %v2595, 0
        %2958 = vmatpush.msra.mxu0 0.0
        %2959 = vmatpush.msra.mxu0 0.0
        %2960 = vmatpush.msra.mxu0 0.0
        %2961 = vmatpush.msra.mxu0 0.0
        %2962 = vmatpush.msra.mxu0 0.0
        %2963 = vmatpush.msra.mxu0 0.0
        %2964 = vmatpush.msra.mxu0 0.0
        %2965 = vmatpush.msra.mxu0 0.0
        %2966 = vmatpush.msra.mxu0 0.0
        %2967 = vmatpush.msra.mxu0 0.0
        %2968 = vmatpush.msra.mxu0 0.0
        %2969 = vmatpush.msra.mxu0 0.0
        %2970 = vmatpush.msra.mxu0 0.0
        %2971 = vmatpush.msra.mxu0 0.0
        %2972 = vmatpush.msra.mxu0 %v1426
        %2973 = vmatpush.msra.mxu0 %v1424
        %2974 = vmatmul.f32.gmra.mxu0 %v2953
        %v2975 = vpop.f32.mrf.mxu0
        %v2976 = vadd.f32 0.0, %v2975
        %2977 = vmatmul.f32.gmra.mxu0 %v2956
        %v2978 = vpop.f32.mrf.mxu0
        %v2979 = vadd.f32 0.0, %v2978
        %2980 = vdwg.mxu0
        %v2982 = vsel %vm2431, %v2597, 0
        %v2985 = vsel %vm2431, %v2599, 0
        %2987 = vmatpush.msra.mxu0 0.0
        %2988 = vmatpush.msra.mxu0 0.0
        %2989 = vmatpush.msra.mxu0 0.0
        %2990 = vmatpush.msra.mxu0 0.0
        %2991 = vmatpush.msra.mxu0 0.0
        %2992 = vmatpush.msra.mxu0 0.0
        %2993 = vmatpush.msra.mxu0 0.0
        %2994 = vmatpush.msra.mxu0 0.0
        %2995 = vmatpush.msra.mxu0 0.0
        %2996 = vmatpush.msra.mxu0 0.0
        %2997 = vmatpush.msra.mxu0 0.0
        %2998 = vmatpush.msra.mxu0 0.0
        %2999 = vmatpush.msra.mxu0 0.0
        %3000 = vmatpush.msra.mxu0 0.0
        %3001 = vmatpush.msra.mxu0 %v1430
        %3002 = vmatpush.msra.mxu0 %v1428
        %3003 = vmatmul.f32.gmra.mxu0 %v2982
        %v3004 = vpop.f32.mrf.mxu0
        %v3005 = vadd.f32 0.0, %v3004
        %3006 = vmatmul.f32.gmra.mxu0 %v2985
        %v3007 = vpop.f32.mrf.mxu0
        %v3008 = vadd.f32 0.0, %v3007
        %3009 = vdwg.mxu0
        %v3011 = vsel %vm2431, %v2601, 0
        %v3014 = vsel %vm2431, %v2603, 0
        %3016 = vmatpush.msra.mxu0 0.0
        %3017 = vmatpush.msra.mxu0 0.0
        %3018 = vmatpush.msra.mxu0 0.0
        %3019 = vmatpush.msra.mxu0 0.0
        %3020 = vmatpush.msra.mxu0 0.0
        %3021 = vmatpush.msra.mxu0 0.0
        %3022 = vmatpush.msra.mxu0 0.0
        %3023 = vmatpush.msra.mxu0 0.0
        %3024 = vmatpush.msra.mxu0 0.0
        %3025 = vmatpush.msra.mxu0 0.0
        %3026 = vmatpush.msra.mxu0 0.0
        %3027 = vmatpush.msra.mxu0 0.0
        %3028 = vmatpush.msra.mxu0 0.0
        %3029 = vmatpush.msra.mxu0 0.0
        %3030 = vmatpush.msra.mxu0 %v1434
        %3031 = vmatpush.msra.mxu0 %v1432
        %3032 = vmatmul.f32.gmra.mxu0 %v3011
        %v3033 = vpop.f32.mrf.mxu0
        %v3034 = vadd.f32 0.0, %v3033
        %3035 = vmatmul.f32.gmra.mxu0 %v3014
        %v3036 = vpop.f32.mrf.mxu0
        %v3037 = vadd.f32 0.0, %v3036
        %3038 = vdwg.mxu0
        %v3040 = vsel %vm2431, %v2605, 0
        %v3043 = vsel %vm2431, %v2607, 0
        %3045 = vmatpush.msra.mxu0 0.0
        %3046 = vmatpush.msra.mxu0 0.0
        %3047 = vmatpush.msra.mxu0 0.0
        %3048 = vmatpush.msra.mxu0 0.0
        %3049 = vmatpush.msra.mxu0 0.0
        %3050 = vmatpush.msra.mxu0 0.0
        %3051 = vmatpush.msra.mxu0 0.0
        %3052 = vmatpush.msra.mxu0 0.0
        %3053 = vmatpush.msra.mxu0 0.0
        %3054 = vmatpush.msra.mxu0 0.0
        %3055 = vmatpush.msra.mxu0 0.0
        %3056 = vmatpush.msra.mxu0 0.0
        %3057 = vmatpush.msra.mxu0 0.0
        %3058 = vmatpush.msra.mxu0 0.0
        %3059 = vmatpush.msra.mxu0 %v1438
        %3060 = vmatpush.msra.mxu0 %v1436
        %3061 = vmatmul.f32.gmra.mxu0 %v3040
        %v3062 = vpop.f32.mrf.mxu0
        %v3063 = vadd.f32 0.0, %v3062
        %3064 = vmatmul.f32.gmra.mxu0 %v3043
        %v3065 = vpop.f32.mrf.mxu0
        %v3066 = vadd.f32 0.0, %v3065
        %3067 = vdwg.mxu0
        %v3069 = vsel %vm2431, %v2609, 0
        %v3072 = vsel %vm2431, %v2611, 0
        %3074 = vmatpush.msra.mxu0 0.0
        %3075 = vmatpush.msra.mxu0 0.0
        %3076 = vmatpush.msra.mxu0 0.0
        %3077 = vmatpush.msra.mxu0 0.0
        %3078 = vmatpush.msra.mxu0 0.0
        %3079 = vmatpush.msra.mxu0 0.0
        %3080 = vmatpush.msra.mxu0 0.0
        %3081 = vmatpush.msra.mxu0 0.0
        %3082 = vmatpush.msra.mxu0 0.0
        %3083 = vmatpush.msra.mxu0 0.0
        %3084 = vmatpush.msra.mxu0 0.0
        %3085 = vmatpush.msra.mxu0 0.0
        %3086 = vmatpush.msra.mxu0 0.0
        %3087 = vmatpush.msra.mxu0 0.0
        %3088 = vmatpush.msra.mxu0 %v1442
        %3089 = vmatpush.msra.mxu0 %v1440
        %3090 = vmatmul.f32.gmra.mxu0 %v3069
        %v3091 = vpop.f32.mrf.mxu0
        %v3092 = vadd.f32 0.0, %v3091
        %3093 = vmatmul.f32.gmra.mxu0 %v3072
        %v3094 = vpop.f32.mrf.mxu0
        %v3095 = vadd.f32 0.0, %v3094
        %3096 = vdwg.mxu0
        %v3098 = vsel %vm2431, %v2613, 0
        %v3101 = vsel %vm2431, %v2615, 0
        %3103 = vmatpush.msra.mxu0 0.0
        %3104 = vmatpush.msra.mxu0 0.0
        %3105 = vmatpush.msra.mxu0 0.0
        %3106 = vmatpush.msra.mxu0 0.0
        %3107 = vmatpush.msra.mxu0 0.0
        %3108 = vmatpush.msra.mxu0 0.0
        %3109 = vmatpush.msra.mxu0 0.0
        %3110 = vmatpush.msra.mxu0 0.0
        %3111 = vmatpush.msra.mxu0 0.0
        %3112 = vmatpush.msra.mxu0 0.0
        %3113 = vmatpush.msra.mxu0 0.0
        %3114 = vmatpush.msra.mxu0 0.0
        %3115 = vmatpush.msra.mxu0 0.0
        %3116 = vmatpush.msra.mxu0 0.0
        %3117 = vmatpush.msra.mxu0 %v1446
        %3118 = vmatpush.msra.mxu0 %v1444
        %3119 = vmatmul.f32.gmra.mxu0 %v3098
        %v3120 = vpop.f32.mrf.mxu0
        %v3121 = vadd.f32 0.0, %v3120
        %3122 = vmatmul.f32.gmra.mxu0 %v3101
        %v3123 = vpop.f32.mrf.mxu0
        %v3124 = vadd.f32 0.0, %v3123
        %3125 = vdwg.mxu0
        %v3127 = vsel %vm2431, %v2617, 0
        %v3130 = vsel %vm2431, %v2619, 0
        %3132 = vmatpush.msra.mxu0 0.0
        %3133 = vmatpush.msra.mxu0 0.0
        %3134 = vmatpush.msra.mxu0 0.0
        %3135 = vmatpush.msra.mxu0 0.0
        %3136 = vmatpush.msra.mxu0 0.0
        %3137 = vmatpush.msra.mxu0 0.0
        %3138 = vmatpush.msra.mxu0 0.0
        %3139 = vmatpush.msra.mxu0 0.0
        %3140 = vmatpush.msra.mxu0 0.0
        %3141 = vmatpush.msra.mxu0 0.0
        %3142 = vmatpush.msra.mxu0 0.0
        %3143 = vmatpush.msra.mxu0 0.0
        %3144 = vmatpush.msra.mxu0 0.0
        %3145 = vmatpush.msra.mxu0 0.0
        %3146 = vmatpush.msra.mxu0 %v1450
        %3147 = vmatpush.msra.mxu0 %v1448
        %3148 = vmatmul.f32.gmra.mxu0 %v3127
        %v3149 = vpop.f32.mrf.mxu0
        %v3150 = vadd.f32 0.0, %v3149
        %3151 = vmatmul.f32.gmra.mxu0 %v3130
        %v3152 = vpop.f32.mrf.mxu0
        %v3153 = vadd.f32 0.0, %v3152
        %3154 = vdwg.mxu0
        %v3156 = vsel %vm2431, %v2621, 0
        %v3159 = vsel %vm2431, %v2623, 0
        %3161 = vmatpush.msra.mxu0 0.0
        %3162 = vmatpush.msra.mxu0 0.0
        %3163 = vmatpush.msra.mxu0 0.0
        %3164 = vmatpush.msra.mxu0 0.0
        %3165 = vmatpush.msra.mxu0 0.0
        %3166 = vmatpush.msra.mxu0 0.0
        %3167 = vmatpush.msra.mxu0 0.0
        %3168 = vmatpush.msra.mxu0 0.0
        %3169 = vmatpush.msra.mxu0 0.0
        %3170 = vmatpush.msra.mxu0 0.0
        %3171 = vmatpush.msra.mxu0 0.0
        %3172 = vmatpush.msra.mxu0 0.0
        %3173 = vmatpush.msra.mxu0 0.0
        %3174 = vmatpush.msra.mxu0 0.0
        %3175 = vmatpush.msra.mxu0 %v1454
        %3176 = vmatpush.msra.mxu0 %v1452
        %3177 = vmatmul.f32.gmra.mxu0 %v3156
        %v3178 = vpop.f32.mrf.mxu0
        %v3179 = vadd.f32 0.0, %v3178
        %3180 = vmatmul.f32.gmra.mxu0 %v3159
        %v3181 = vpop.f32.mrf.mxu0
        %v3182 = vadd.f32 0.0, %v3181
        %3183 = vdwg.mxu0
        %v3185 = vsel %vm240, %v464, 0
        %v3188 = vsel %vm240, %v576, 0
        %v3191 = vsel %vm240, %v1040, 0
        %v3194 = vsel %vm240, %v1152, 0
        %3196 = vmatpush.xpose.msra.mxu0 0.0
        %3197 = vmatpush.xpose.msra.mxu0 0.0
        %3198 = vmatpush.xpose.msra.mxu0 0.0
        %3199 = vmatpush.xpose.msra.mxu0 0.0
        %3200 = vmatpush.xpose.msra.mxu0 0.0
        %3201 = vmatpush.xpose.msra.mxu0 0.0
        %3202 = vmatpush.xpose.msra.mxu0 0.0
        %3203 = vmatpush.xpose.msra.mxu0 0.0
        %3204 = vmatpush.xpose.msra.mxu0 0.0
        %3205 = vmatpush.xpose.msra.mxu0 0.0
        %3206 = vmatpush.xpose.msra.mxu0 0.0
        %3207 = vmatpush.xpose.msra.mxu0 0.0
        %3208 = vmatpush.xpose.msra.mxu0 0.0
        %3209 = vmatpush.xpose.msra.mxu0 0.0
        %3210 = vmatpush.xpose.msra.mxu0 %v3194
        %3211 = vmatpush.xpose.msra.mxu0 %v3191
        %3212 = vmatmul.f32.gmra.mxu0 %v3185
        %v3213 = vpop.f32.mrf.mxu0
        %v3214 = vadd.f32 0.0, %v3213
        %3215 = vmatmul.f32.gmra.mxu0 %v3188
        %v3216 = vpop.f32.mrf.mxu0
        %v3217 = vadd.f32 0.0, %v3216
        %3218 = vdwg.mxu0
        %v3220 = vsel %vm240, %v466, 0
        %v3223 = vsel %vm240, %v578, 0
        %v3226 = vsel %vm240, %v1042, 0
        %v3229 = vsel %vm240, %v1154, 0
        %3231 = vmatpush.xpose.msra.mxu0 0.0
        %3232 = vmatpush.xpose.msra.mxu0 0.0
        %3233 = vmatpush.xpose.msra.mxu0 0.0
        %3234 = vmatpush.xpose.msra.mxu0 0.0
        %3235 = vmatpush.xpose.msra.mxu0 0.0
        %3236 = vmatpush.xpose.msra.mxu0 0.0
        %3237 = vmatpush.xpose.msra.mxu0 0.0
        %3238 = vmatpush.xpose.msra.mxu0 0.0
        %3239 = vmatpush.xpose.msra.mxu0 0.0
        %3240 = vmatpush.xpose.msra.mxu0 0.0
        %3241 = vmatpush.xpose.msra.mxu0 0.0
        %3242 = vmatpush.xpose.msra.mxu0 0.0
        %3243 = vmatpush.xpose.msra.mxu0 0.0
        %3244 = vmatpush.xpose.msra.mxu0 0.0
        %3245 = vmatpush.xpose.msra.mxu0 %v3229
        %3246 = vmatpush.xpose.msra.mxu0 %v3226
        %3247 = vmatmul.f32.gmra.mxu0 %v3220
        %v3248 = vpop.f32.mrf.mxu0
        %v3249 = vadd.f32 0.0, %v3248
        %3250 = vmatmul.f32.gmra.mxu0 %v3223
        %v3251 = vpop.f32.mrf.mxu0
        %v3252 = vadd.f32 0.0, %v3251
        %3253 = vdwg.mxu0
        %v3255 = vsel %vm240, %v468, 0
        %v3258 = vsel %vm240, %v580, 0
        %v3261 = vsel %vm240, %v1044, 0
        %v3264 = vsel %vm240, %v1156, 0
        %3266 = vmatpush.xpose.msra.mxu0 0.0
        %3267 = vmatpush.xpose.msra.mxu0 0.0
        %3268 = vmatpush.xpose.msra.mxu0 0.0
        %3269 = vmatpush.xpose.msra.mxu0 0.0
        %3270 = vmatpush.xpose.msra.mxu0 0.0
        %3271 = vmatpush.xpose.msra.mxu0 0.0
        %3272 = vmatpush.xpose.msra.mxu0 0.0
        %3273 = vmatpush.xpose.msra.mxu0 0.0
        %3274 = vmatpush.xpose.msra.mxu0 0.0
        %3275 = vmatpush.xpose.msra.mxu0 0.0
        %3276 = vmatpush.xpose.msra.mxu0 0.0
        %3277 = vmatpush.xpose.msra.mxu0 0.0
        %3278 = vmatpush.xpose.msra.mxu0 0.0
        %3279 = vmatpush.xpose.msra.mxu0 0.0
        %3280 = vmatpush.xpose.msra.mxu0 %v3264
        %3281 = vmatpush.xpose.msra.mxu0 %v3261
        %3282 = vmatmul.f32.gmra.mxu0 %v3255
        %v3283 = vpop.f32.mrf.mxu0
        %v3284 = vadd.f32 0.0, %v3283
        %3285 = vmatmul.f32.gmra.mxu0 %v3258
        %v3286 = vpop.f32.mrf.mxu0
        %v3287 = vadd.f32 0.0, %v3286
        %3288 = vdwg.mxu0
        %v3290 = vsel %vm240, %v470, 0
        %v3293 = vsel %vm240, %v582, 0
        %v3296 = vsel %vm240, %v1046, 0
        %v3299 = vsel %vm240, %v1158, 0
        %3301 = vmatpush.xpose.msra.mxu0 0.0
        %3302 = vmatpush.xpose.msra.mxu0 0.0
        %3303 = vmatpush.xpose.msra.mxu0 0.0
        %3304 = vmatpush.xpose.msra.mxu0 0.0
        %3305 = vmatpush.xpose.msra.mxu0 0.0
        %3306 = vmatpush.xpose.msra.mxu0 0.0
        %3307 = vmatpush.xpose.msra.mxu0 0.0
        %3308 = vmatpush.xpose.msra.mxu0 0.0
        %3309 = vmatpush.xpose.msra.mxu0 0.0
        %3310 = vmatpush.xpose.msra.mxu0 0.0
        %3311 = vmatpush.xpose.msra.mxu0 0.0
        %3312 = vmatpush.xpose.msra.mxu0 0.0
        %3313 = vmatpush.xpose.msra.mxu0 0.0
        %3314 = vmatpush.xpose.msra.mxu0 0.0
        %3315 = vmatpush.xpose.msra.mxu0 %v3299
        %3316 = vmatpush.xpose.msra.mxu0 %v3296
        %3317 = vmatmul.f32.gmra.mxu0 %v3290
        %v3318 = vpop.f32.mrf.mxu0
        %v3319 = vadd.f32 0.0, %v3318
        %3320 = vmatmul.f32.gmra.mxu0 %v3293
        %v3321 = vpop.f32.mrf.mxu0
        %v3322 = vadd.f32 0.0, %v3321
        %3323 = vdwg.mxu0
        %v3325 = vsel %vm240, %v472, 0
        %v3328 = vsel %vm240, %v584, 0
        %v3331 = vsel %vm240, %v1048, 0
        %v3334 = vsel %vm240, %v1160, 0
        %3336 = vmatpush.xpose.msra.mxu0 0.0
        %3337 = vmatpush.xpose.msra.mxu0 0.0
        %3338 = vmatpush.xpose.msra.mxu0 0.0
        %3339 = vmatpush.xpose.msra.mxu0 0.0
        %3340 = vmatpush.xpose.msra.mxu0 0.0
        %3341 = vmatpush.xpose.msra.mxu0 0.0
        %3342 = vmatpush.xpose.msra.mxu0 0.0
        %3343 = vmatpush.xpose.msra.mxu0 0.0
        %3344 = vmatpush.xpose.msra.mxu0 0.0
        %3345 = vmatpush.xpose.msra.mxu0 0.0
        %3346 = vmatpush.xpose.msra.mxu0 0.0
        %3347 = vmatpush.xpose.msra.mxu0 0.0
        %3348 = vmatpush.xpose.msra.mxu0 0.0
        %3349 = vmatpush.xpose.msra.mxu0 0.0
        %3350 = vmatpush.xpose.msra.mxu0 %v3334
        %3351 = vmatpush.xpose.msra.mxu0 %v3331
        %3352 = vmatmul.f32.gmra.mxu0 %v3325
        %v3353 = vpop.f32.mrf.mxu0
        %v3354 = vadd.f32 0.0, %v3353
        %3355 = vmatmul.f32.gmra.mxu0 %v3328
        %v3356 = vpop.f32.mrf.mxu0
        %v3357 = vadd.f32 0.0, %v3356
        %3358 = vdwg.mxu0
        %v3360 = vsel %vm240, %v474, 0
        %v3363 = vsel %vm240, %v586, 0
        %v3366 = vsel %vm240, %v1050, 0
        %v3369 = vsel %vm240, %v1162, 0
        %3371 = vmatpush.xpose.msra.mxu0 0.0
        %3372 = vmatpush.xpose.msra.mxu0 0.0
        %3373 = vmatpush.xpose.msra.mxu0 0.0
        %3374 = vmatpush.xpose.msra.mxu0 0.0
        %3375 = vmatpush.xpose.msra.mxu0 0.0
        %3376 = vmatpush.xpose.msra.mxu0 0.0
        %3377 = vmatpush.xpose.msra.mxu0 0.0
        %3378 = vmatpush.xpose.msra.mxu0 0.0
        %3379 = vmatpush.xpose.msra.mxu0 0.0
        %3380 = vmatpush.xpose.msra.mxu0 0.0
        %3381 = vmatpush.xpose.msra.mxu0 0.0
        %3382 = vmatpush.xpose.msra.mxu0 0.0
        %3383 = vmatpush.xpose.msra.mxu0 0.0
        %3384 = vmatpush.xpose.msra.mxu0 0.0
        %3385 = vmatpush.xpose.msra.mxu0 %v3369
        %3386 = vmatpush.xpose.msra.mxu0 %v3366
        %3387 = vmatmul.f32.gmra.mxu0 %v3360
        %v3388 = vpop.f32.mrf.mxu0
        %v3389 = vadd.f32 0.0, %v3388
        %3390 = vmatmul.f32.gmra.mxu0 %v3363
        %v3391 = vpop.f32.mrf.mxu0
        %v3392 = vadd.f32 0.0, %v3391
        %3393 = vdwg.mxu0
        %v3395 = vsel %vm240, %v476, 0
        %v3398 = vsel %vm240, %v588, 0
        %v3401 = vsel %vm240, %v1052, 0
        %v3404 = vsel %vm240, %v1164, 0
        %3406 = vmatpush.xpose.msra.mxu0 0.0
        %3407 = vmatpush.xpose.msra.mxu0 0.0
        %3408 = vmatpush.xpose.msra.mxu0 0.0
        %3409 = vmatpush.xpose.msra.mxu0 0.0
        %3410 = vmatpush.xpose.msra.mxu0 0.0
        %3411 = vmatpush.xpose.msra.mxu0 0.0
        %3412 = vmatpush.xpose.msra.mxu0 0.0
        %3413 = vmatpush.xpose.msra.mxu0 0.0
        %3414 = vmatpush.xpose.msra.mxu0 0.0
        %3415 = vmatpush.xpose.msra.mxu0 0.0
        %3416 = vmatpush.xpose.msra.mxu0 0.0
        %3417 = vmatpush.xpose.msra.mxu0 0.0
        %3418 = vmatpush.xpose.msra.mxu0 0.0
        %3419 = vmatpush.xpose.msra.mxu0 0.0
        %3420 = vmatpush.xpose.msra.mxu0 %v3404
        %3421 = vmatpush.xpose.msra.mxu0 %v3401
        %3422 = vmatmul.f32.gmra.mxu0 %v3395
        %v3423 = vpop.f32.mrf.mxu0
        %v3424 = vadd.f32 0.0, %v3423
        %3425 = vmatmul.f32.gmra.mxu0 %v3398
        %v3426 = vpop.f32.mrf.mxu0
        %v3427 = vadd.f32 0.0, %v3426
        %3428 = vdwg.mxu0
        %v3430 = vsel %vm240, %v478, 0
        %v3433 = vsel %vm240, %v590, 0
        %v3436 = vsel %vm240, %v1054, 0
        %v3439 = vsel %vm240, %v1166, 0
        %3441 = vmatpush.xpose.msra.mxu0 0.0
        %3442 = vmatpush.xpose.msra.mxu0 0.0
        %3443 = vmatpush.xpose.msra.mxu0 0.0
        %3444 = vmatpush.xpose.msra.mxu0 0.0
        %3445 = vmatpush.xpose.msra.mxu0 0.0
        %3446 = vmatpush.xpose.msra.mxu0 0.0
        %3447 = vmatpush.xpose.msra.mxu0 0.0
        %3448 = vmatpush.xpose.msra.mxu0 0.0
        %3449 = vmatpush.xpose.msra.mxu0 0.0
        %3450 = vmatpush.xpose.msra.mxu0 0.0
        %3451 = vmatpush.xpose.msra.mxu0 0.0
        %3452 = vmatpush.xpose.msra.mxu0 0.0
        %3453 = vmatpush.xpose.msra.mxu0 0.0
        %3454 = vmatpush.xpose.msra.mxu0 0.0
        %3455 = vmatpush.xpose.msra.mxu0 %v3439
        %3456 = vmatpush.xpose.msra.mxu0 %v3436
        %3457 = vmatmul.f32.gmra.mxu0 %v3430
        %v3458 = vpop.f32.mrf.mxu0
        %v3459 = vadd.f32 0.0, %v3458
        %3460 = vmatmul.f32.gmra.mxu0 %v3433
        %v3461 = vpop.f32.mrf.mxu0
        %v3462 = vadd.f32 0.0, %v3461
        %3463 = vdwg.mxu0
        %v3465 = vsel %vm240, %v688, 0
        %v3468 = vsel %vm240, %v800, 0
        %v3471 = vsel %vm240, %v1264, 0
        %v3474 = vsel %vm240, %v1376, 0
        %3476 = vmatpush.xpose.msra.mxu0 0.0
        %3477 = vmatpush.xpose.msra.mxu0 0.0
        %3478 = vmatpush.xpose.msra.mxu0 0.0
        %3479 = vmatpush.xpose.msra.mxu0 0.0
        %3480 = vmatpush.xpose.msra.mxu0 0.0
        %3481 = vmatpush.xpose.msra.mxu0 0.0
        %3482 = vmatpush.xpose.msra.mxu0 0.0
        %3483 = vmatpush.xpose.msra.mxu0 0.0
        %3484 = vmatpush.xpose.msra.mxu0 0.0
        %3485 = vmatpush.xpose.msra.mxu0 0.0
        %3486 = vmatpush.xpose.msra.mxu0 0.0
        %3487 = vmatpush.xpose.msra.mxu0 0.0
        %3488 = vmatpush.xpose.msra.mxu0 0.0
        %3489 = vmatpush.xpose.msra.mxu0 0.0
        %3490 = vmatpush.xpose.msra.mxu0 %v3474
        %3491 = vmatpush.xpose.msra.mxu0 %v3471
        %3492 = vmatmul.f32.gmra.mxu0 %v3465
        %v3493 = vpop.f32.mrf.mxu0
        %v3494 = vadd.f32 0.0, %v3493
        %3495 = vmatmul.f32.gmra.mxu0 %v3468
        %v3496 = vpop.f32.mrf.mxu0
        %v3497 = vadd.f32 0.0, %v3496
        %3498 = vdwg.mxu0
        %v3500 = vsel %vm240, %v690, 0
        %v3503 = vsel %vm240, %v802, 0
        %v3506 = vsel %vm240, %v1266, 0
        %v3509 = vsel %vm240, %v1378, 0
        %3511 = vmatpush.xpose.msra.mxu0 0.0
        %3512 = vmatpush.xpose.msra.mxu0 0.0
        %3513 = vmatpush.xpose.msra.mxu0 0.0
        %3514 = vmatpush.xpose.msra.mxu0 0.0
        %3515 = vmatpush.xpose.msra.mxu0 0.0
        %3516 = vmatpush.xpose.msra.mxu0 0.0
        %3517 = vmatpush.xpose.msra.mxu0 0.0
        %3518 = vmatpush.xpose.msra.mxu0 0.0
        %3519 = vmatpush.xpose.msra.mxu0 0.0
        %3520 = vmatpush.xpose.msra.mxu0 0.0
        %3521 = vmatpush.xpose.msra.mxu0 0.0
        %3522 = vmatpush.xpose.msra.mxu0 0.0
        %3523 = vmatpush.xpose.msra.mxu0 0.0
        %3524 = vmatpush.xpose.msra.mxu0 0.0
        %3525 = vmatpush.xpose.msra.mxu0 %v3509
        %3526 = vmatpush.xpose.msra.mxu0 %v3506
        %3527 = vmatmul.f32.gmra.mxu0 %v3500
        %v3528 = vpop.f32.mrf.mxu0
        %v3529 = vadd.f32 0.0, %v3528
        %3530 = vmatmul.f32.gmra.mxu0 %v3503
        %v3531 = vpop.f32.mrf.mxu0
        %v3532 = vadd.f32 0.0, %v3531
        %3533 = vdwg.mxu0
        %v3535 = vsel %vm240, %v692, 0
        %v3538 = vsel %vm240, %v804, 0
        %v3541 = vsel %vm240, %v1268, 0
        %v3544 = vsel %vm240, %v1380, 0
        %3546 = vmatpush.xpose.msra.mxu0 0.0
        %3547 = vmatpush.xpose.msra.mxu0 0.0
        %3548 = vmatpush.xpose.msra.mxu0 0.0
        %3549 = vmatpush.xpose.msra.mxu0 0.0
        %3550 = vmatpush.xpose.msra.mxu0 0.0
        %3551 = vmatpush.xpose.msra.mxu0 0.0
        %3552 = vmatpush.xpose.msra.mxu0 0.0
        %3553 = vmatpush.xpose.msra.mxu0 0.0
        %3554 = vmatpush.xpose.msra.mxu0 0.0
        %3555 = vmatpush.xpose.msra.mxu0 0.0
        %3556 = vmatpush.xpose.msra.mxu0 0.0
        %3557 = vmatpush.xpose.msra.mxu0 0.0
        %3558 = vmatpush.xpose.msra.mxu0 0.0
        %3559 = vmatpush.xpose.msra.mxu0 0.0
        %3560 = vmatpush.xpose.msra.mxu0 %v3544
        %3561 = vmatpush.xpose.msra.mxu0 %v3541
        %3562 = vmatmul.f32.gmra.mxu0 %v3535
        %v3563 = vpop.f32.mrf.mxu0
        %v3564 = vadd.f32 0.0, %v3563
        %3565 = vmatmul.f32.gmra.mxu0 %v3538
        %v3566 = vpop.f32.mrf.mxu0
        %v3567 = vadd.f32 0.0, %v3566
        %3568 = vdwg.mxu0
        %v3570 = vsel %vm240, %v694, 0
        %v3573 = vsel %vm240, %v806, 0
        %v3576 = vsel %vm240, %v1270, 0
        %v3579 = vsel %vm240, %v1382, 0
        %3581 = vmatpush.xpose.msra.mxu0 0.0
        %3582 = vmatpush.xpose.msra.mxu0 0.0
        %3583 = vmatpush.xpose.msra.mxu0 0.0
        %3584 = vmatpush.xpose.msra.mxu0 0.0
        %3585 = vmatpush.xpose.msra.mxu0 0.0
        %3586 = vmatpush.xpose.msra.mxu0 0.0
        %3587 = vmatpush.xpose.msra.mxu0 0.0
        %3588 = vmatpush.xpose.msra.mxu0 0.0
        %3589 = vmatpush.xpose.msra.mxu0 0.0
        %3590 = vmatpush.xpose.msra.mxu0 0.0
        %3591 = vmatpush.xpose.msra.mxu0 0.0
        %3592 = vmatpush.xpose.msra.mxu0 0.0
        %3593 = vmatpush.xpose.msra.mxu0 0.0
        %3594 = vmatpush.xpose.msra.mxu0 0.0
        %3595 = vmatpush.xpose.msra.mxu0 %v3579
        %3596 = vmatpush.xpose.msra.mxu0 %v3576
        %3597 = vmatmul.f32.gmra.mxu0 %v3570
        %v3598 = vpop.f32.mrf.mxu0
        %v3599 = vadd.f32 0.0, %v3598
        %3600 = vmatmul.f32.gmra.mxu0 %v3573
        %v3601 = vpop.f32.mrf.mxu0
        %v3602 = vadd.f32 0.0, %v3601
        %3603 = vdwg.mxu0
        %v3605 = vsel %vm240, %v696, 0
        %v3608 = vsel %vm240, %v808, 0
        %v3611 = vsel %vm240, %v1272, 0
        %v3614 = vsel %vm240, %v1384, 0
        %3616 = vmatpush.xpose.msra.mxu0 0.0
        %3617 = vmatpush.xpose.msra.mxu0 0.0
        %3618 = vmatpush.xpose.msra.mxu0 0.0
        %3619 = vmatpush.xpose.msra.mxu0 0.0
        %3620 = vmatpush.xpose.msra.mxu0 0.0
        %3621 = vmatpush.xpose.msra.mxu0 0.0
        %3622 = vmatpush.xpose.msra.mxu0 0.0
        %3623 = vmatpush.xpose.msra.mxu0 0.0
        %3624 = vmatpush.xpose.msra.mxu0 0.0
        %3625 = vmatpush.xpose.msra.mxu0 0.0
        %3626 = vmatpush.xpose.msra.mxu0 0.0
        %3627 = vmatpush.xpose.msra.mxu0 0.0
        %3628 = vmatpush.xpose.msra.mxu0 0.0
        %3629 = vmatpush.xpose.msra.mxu0 0.0
        %3630 = vmatpush.xpose.msra.mxu0 %v3614
        %3631 = vmatpush.xpose.msra.mxu0 %v3611
        %3632 = vmatmul.f32.gmra.mxu0 %v3605
        %v3633 = vpop.f32.mrf.mxu0
        %v3634 = vadd.f32 0.0, %v3633
        %3635 = vmatmul.f32.gmra.mxu0 %v3608
        %v3636 = vpop.f32.mrf.mxu0
        %v3637 = vadd.f32 0.0, %v3636
        %3638 = vdwg.mxu0
        %v3640 = vsel %vm240, %v698, 0
        %v3643 = vsel %vm240, %v810, 0
        %v3646 = vsel %vm240, %v1274, 0
        %v3649 = vsel %vm240, %v1386, 0
        %3651 = vmatpush.xpose.msra.mxu0 0.0
        %3652 = vmatpush.xpose.msra.mxu0 0.0
        %3653 = vmatpush.xpose.msra.mxu0 0.0
        %3654 = vmatpush.xpose.msra.mxu0 0.0
        %3655 = vmatpush.xpose.msra.mxu0 0.0
        %3656 = vmatpush.xpose.msra.mxu0 0.0
        %3657 = vmatpush.xpose.msra.mxu0 0.0
        %3658 = vmatpush.xpose.msra.mxu0 0.0
        %3659 = vmatpush.xpose.msra.mxu0 0.0
        %3660 = vmatpush.xpose.msra.mxu0 0.0
        %3661 = vmatpush.xpose.msra.mxu0 0.0
        %3662 = vmatpush.xpose.msra.mxu0 0.0
        %3663 = vmatpush.xpose.msra.mxu0 0.0
        %3664 = vmatpush.xpose.msra.mxu0 0.0
        %3665 = vmatpush.xpose.msra.mxu0 %v3649
        %3666 = vmatpush.xpose.msra.mxu0 %v3646
        %3667 = vmatmul.f32.gmra.mxu0 %v3640
        %v3668 = vpop.f32.mrf.mxu0
        %v3669 = vadd.f32 0.0, %v3668
        %3670 = vmatmul.f32.gmra.mxu0 %v3643
        %v3671 = vpop.f32.mrf.mxu0
        %v3672 = vadd.f32 0.0, %v3671
        %3673 = vdwg.mxu0
        %v3675 = vsel %vm240, %v700, 0
        %v3678 = vsel %vm240, %v812, 0
        %v3681 = vsel %vm240, %v1276, 0
        %v3684 = vsel %vm240, %v1388, 0
        %3686 = vmatpush.xpose.msra.mxu0 0.0
        %3687 = vmatpush.xpose.msra.mxu0 0.0
        %3688 = vmatpush.xpose.msra.mxu0 0.0
        %3689 = vmatpush.xpose.msra.mxu0 0.0
        %3690 = vmatpush.xpose.msra.mxu0 0.0
        %3691 = vmatpush.xpose.msra.mxu0 0.0
        %3692 = vmatpush.xpose.msra.mxu0 0.0
        %3693 = vmatpush.xpose.msra.mxu0 0.0
        %3694 = vmatpush.xpose.msra.mxu0 0.0
        %3695 = vmatpush.xpose.msra.mxu0 0.0
        %3696 = vmatpush.xpose.msra.mxu0 0.0
        %3697 = vmatpush.xpose.msra.mxu0 0.0
        %3698 = vmatpush.xpose.msra.mxu0 0.0
        %3699 = vmatpush.xpose.msra.mxu0 0.0
        %3700 = vmatpush.xpose.msra.mxu0 %v3684
        %3701 = vmatpush.xpose.msra.mxu0 %v3681
        %3702 = vmatmul.f32.gmra.mxu0 %v3675
        %v3703 = vpop.f32.mrf.mxu0
        %v3704 = vadd.f32 0.0, %v3703
        %3705 = vmatmul.f32.gmra.mxu0 %v3678
        %v3706 = vpop.f32.mrf.mxu0
        %v3707 = vadd.f32 0.0, %v3706
        %3708 = vdwg.mxu0
        %v3710 = vsel %vm240, %v702, 0
        %v3713 = vsel %vm240, %v814, 0
        %v3716 = vsel %vm240, %v1278, 0
        %v3719 = vsel %vm240, %v1390, 0
        %3721 = vmatpush.xpose.msra.mxu0 0.0
        %3722 = vmatpush.xpose.msra.mxu0 0.0
        %3723 = vmatpush.xpose.msra.mxu0 0.0
        %3724 = vmatpush.xpose.msra.mxu0 0.0
        %3725 = vmatpush.xpose.msra.mxu0 0.0
        %3726 = vmatpush.xpose.msra.mxu0 0.0
        %3727 = vmatpush.xpose.msra.mxu0 0.0
        %3728 = vmatpush.xpose.msra.mxu0 0.0
        %3729 = vmatpush.xpose.msra.mxu0 0.0
        %3730 = vmatpush.xpose.msra.mxu0 0.0
        %3731 = vmatpush.xpose.msra.mxu0 0.0
        %3732 = vmatpush.xpose.msra.mxu0 0.0
        %3733 = vmatpush.xpose.msra.mxu0 0.0
        %3734 = vmatpush.xpose.msra.mxu0 0.0
        %3735 = vmatpush.xpose.msra.mxu0 %v3719
        %3736 = vmatpush.xpose.msra.mxu0 %v3716
        %3737 = vmatmul.f32.gmra.mxu0 %v3710
        %v3738 = vpop.f32.mrf.mxu0
        %v3739 = vadd.f32 0.0, %v3738
        %3740 = vmatmul.f32.gmra.mxu0 %v3713
        %v3741 = vpop.f32.mrf.mxu0
        %v3742 = vadd.f32 0.0, %v3741
        %3743 = vdwg.mxu0
        %v3744 = vlaneseq
        %v3745 = vshrl.u32 %v3744, 7
        %v3746 = vadd.s32 %v3745, 8
        %v3747 = vlaneseq
        %v3748 = vand.u32 %v3747, 127
        %vm3749 = vcmp.eq.s32.totalorder %v3745, %v3748
        %vm3750 = vcmp.eq.s32.totalorder %v3746, %v3748
        %v3751 = vsel %vm3749, -1e+30, %v3214
        %v3752 = vsel %vm3750, -1e+30, %v3217
        %v3753 = vsel %vm3749, -1e+30, %v3249
        %v3754 = vsel %vm3750, -1e+30, %v3252
        %v3755 = vsel %vm3749, -1e+30, %v3284
        %v3756 = vsel %vm3750, -1e+30, %v3287
        %v3757 = vsel %vm3749, -1e+30, %v3319
        %v3758 = vsel %vm3750, -1e+30, %v3322
        %v3759 = vsel %vm3749, -1e+30, %v3354
        %v3760 = vsel %vm3750, -1e+30, %v3357
        %v3761 = vsel %vm3749, -1e+30, %v3389
        %v3762 = vsel %vm3750, -1e+30, %v3392
        %v3763 = vsel %vm3749, -1e+30, %v3424
        %v3764 = vsel %vm3750, -1e+30, %v3427
        %v3765 = vsel %vm3749, -1e+30, %v3459
        %v3766 = vsel %vm3750, -1e+30, %v3462
        %v3767 = vsel %vm3749, -1e+30, %v3494
        %v3768 = vsel %vm3750, -1e+30, %v3497
        %v3769 = vsel %vm3749, -1e+30, %v3529
        %v3770 = vsel %vm3750, -1e+30, %v3532
        %v3771 = vsel %vm3749, -1e+30, %v3564
        %v3772 = vsel %vm3750, -1e+30, %v3567
        %v3773 = vsel %vm3749, -1e+30, %v3599
        %v3774 = vsel %vm3750, -1e+30, %v3602
        %v3775 = vsel %vm3749, -1e+30, %v3634
        %v3776 = vsel %vm3750, -1e+30, %v3637
        %v3777 = vsel %vm3749, -1e+30, %v3669
        %v3778 = vsel %vm3750, -1e+30, %v3672
        %v3779 = vsel %vm3749, -1e+30, %v3704
        %v3780 = vsel %vm3750, -1e+30, %v3707
        %v3781 = vsel %vm3749, -1e+30, %v3739
        %v3782 = vsel %vm3750, -1e+30, %v3742
        %v3783 = vsel %vm2431, %v3751, -inf
        %3784 = vmax.xlane.f32.xlu0 %v3783
        %v3785 = vpop.xlane.xlu0 %3784
        %v3786 = vsel %vm2431, %v3752, -inf
        %3787 = vmax.xlane.f32.xlu0 %v3786
        %v3788 = vpop.xlane.xlu0 %3787
        %v3789 = vsel %vm2431, %v3753, -inf
        %3790 = vmax.xlane.f32.xlu0 %v3789
        %v3791 = vpop.xlane.xlu0 %3790
        %v3792 = vsel %vm2431, %v3754, -inf
        %3793 = vmax.xlane.f32.xlu0 %v3792
        %v3794 = vpop.xlane.xlu0 %3793
        %v3795 = vsel %vm2431, %v3755, -inf
        %3796 = vmax.xlane.f32.xlu0 %v3795
        %v3797 = vpop.xlane.xlu0 %3796
        %v3798 = vsel %vm2431, %v3756, -inf
        %3799 = vmax.xlane.f32.xlu0 %v3798
        %v3800 = vpop.xlane.xlu0 %3799
        %v3801 = vsel %vm2431, %v3757, -inf
        %3802 = vmax.xlane.f32.xlu0 %v3801
        %v3803 = vpop.xlane.xlu0 %3802
        %v3804 = vsel %vm2431, %v3758, -inf
        %3805 = vmax.xlane.f32.xlu0 %v3804
        %v3806 = vpop.xlane.xlu0 %3805
        %v3807 = vsel %vm2431, %v3759, -inf
        %3808 = vmax.xlane.f32.xlu0 %v3807
        %v3809 = vpop.xlane.xlu0 %3808
        %v3810 = vsel %vm2431, %v3760, -inf
        %3811 = vmax.xlane.f32.xlu0 %v3810
        %v3812 = vpop.xlane.xlu0 %3811
        %v3813 = vsel %vm2431, %v3761, -inf
        %3814 = vmax.xlane.f32.xlu0 %v3813
        %v3815 = vpop.xlane.xlu0 %3814
        %v3816 = vsel %vm2431, %v3762, -inf
        %3817 = vmax.xlane.f32.xlu0 %v3816
        %v3818 = vpop.xlane.xlu0 %3817
        %v3819 = vsel %vm2431, %v3763, -inf
        %3820 = vmax.xlane.f32.xlu0 %v3819
        %v3821 = vpop.xlane.xlu0 %3820
        %v3822 = vsel %vm2431, %v3764, -inf
        %3823 = vmax.xlane.f32.xlu0 %v3822
        %v3824 = vpop.xlane.xlu0 %3823
        %v3825 = vsel %vm2431, %v3765, -inf
        %3826 = vmax.xlane.f32.xlu0 %v3825
        %v3827 = vpop.xlane.xlu0 %3826
        %v3828 = vsel %vm2431, %v3766, -inf
        %3829 = vmax.xlane.f32.xlu0 %v3828
        %v3830 = vpop.xlane.xlu0 %3829
        %v3831 = vsel %vm2431, %v3767, -inf
        %3832 = vmax.xlane.f32.xlu0 %v3831
        %v3833 = vpop.xlane.xlu0 %3832
        %v3834 = vsel %vm2431, %v3768, -inf
        %3835 = vmax.xlane.f32.xlu0 %v3834
        %v3836 = vpop.xlane.xlu0 %3835
        %v3837 = vsel %vm2431, %v3769, -inf
        %3838 = vmax.xlane.f32.xlu0 %v3837
        %v3839 = vpop.xlane.xlu0 %3838
        %v3840 = vsel %vm2431, %v3770, -inf
        %3841 = vmax.xlane.f32.xlu0 %v3840
        %v3842 = vpop.xlane.xlu0 %3841
        %v3843 = vsel %vm2431, %v3771, -inf
        %3844 = vmax.xlane.f32.xlu0 %v3843
        %v3845 = vpop.xlane.xlu0 %3844
        %v3846 = vsel %vm2431, %v3772, -inf
        %3847 = vmax.xlane.f32.xlu0 %v3846
        %v3848 = vpop.xlane.xlu0 %3847
        %v3849 = vsel %vm2431, %v3773, -inf
        %3850 = vmax.xlane.f32.xlu0 %v3849
        %v3851 = vpop.xlane.xlu0 %3850
        %v3852 = vsel %vm2431, %v3774, -inf
        %3853 = vmax.xlane.f32.xlu0 %v3852
        %v3854 = vpop.xlane.xlu0 %3853
        %v3855 = vsel %vm2431, %v3775, -inf
        %3856 = vmax.xlane.f32.xlu0 %v3855
        %v3857 = vpop.xlane.xlu0 %3856
        %v3858 = vsel %vm2431, %v3776, -inf
        %3859 = vmax.xlane.f32.xlu0 %v3858
        %v3860 = vpop.xlane.xlu0 %3859
        %v3861 = vsel %vm2431, %v3777, -inf
        %3862 = vmax.xlane.f32.xlu0 %v3861
        %v3863 = vpop.xlane.xlu0 %3862
        %v3864 = vsel %vm2431, %v3778, -inf
        %3865 = vmax.xlane.f32.xlu0 %v3864
        %v3866 = vpop.xlane.xlu0 %3865
        %v3867 = vsel %vm2431, %v3779, -inf
        %3868 = vmax.xlane.f32.xlu0 %v3867
        %v3869 = vpop.xlane.xlu0 %3868
        %v3870 = vsel %vm2431, %v3780, -inf
        %3871 = vmax.xlane.f32.xlu0 %v3870
        %v3872 = vpop.xlane.xlu0 %3871
        %v3873 = vsel %vm2431, %v3781, -inf
        %3874 = vmax.xlane.f32.xlu0 %v3873
        %v3875 = vpop.xlane.xlu0 %3874
        %v3876 = vsel %vm2431, %v3782, -inf
        %3877 = vmax.xlane.f32.xlu0 %v3876
        %v3878 = vpop.xlane.xlu0 %3877
        %v3879 = vsub.f32 %v3751, %v3785
        %v3880 = vsub.f32 %v3752, %v3788
        %v3881 = vsub.f32 %v3753, %v3791
        %v3882 = vsub.f32 %v3754, %v3794
        %v3883 = vsub.f32 %v3755, %v3797
        %v3884 = vsub.f32 %v3756, %v3800
        %v3885 = vsub.f32 %v3757, %v3803
        %v3886 = vsub.f32 %v3758, %v3806
        %v3887 = vsub.f32 %v3759, %v3809
        %v3888 = vsub.f32 %v3760, %v3812
        %v3889 = vsub.f32 %v3761, %v3815
        %v3890 = vsub.f32 %v3762, %v3818
        %v3891 = vsub.f32 %v3763, %v3821
        %v3892 = vsub.f32 %v3764, %v3824
        %v3893 = vsub.f32 %v3765, %v3827
        %v3894 = vsub.f32 %v3766, %v3830
        %v3895 = vsub.f32 %v3767, %v3833
        %v3896 = vsub.f32 %v3768, %v3836
        %v3897 = vsub.f32 %v3769, %v3839
        %v3898 = vsub.f32 %v3770, %v3842
        %v3899 = vsub.f32 %v3771, %v3845
        %v3900 = vsub.f32 %v3772, %v3848
        %v3901 = vsub.f32 %v3773, %v3851
        %v3902 = vsub.f32 %v3774, %v3854
        %v3903 = vsub.f32 %v3775, %v3857
        %v3904 = vsub.f32 %v3776, %v3860
        %v3905 = vsub.f32 %v3777, %v3863
        %v3906 = vsub.f32 %v3778, %v3866
        %v3907 = vsub.f32 %v3779, %v3869
        %v3908 = vsub.f32 %v3780, %v3872
        %v3909 = vsub.f32 %v3781, %v3875
        %v3910 = vsub.f32 %v3782, %v3878
        %v3911 = vmul.f32 %v3879, 1.442695
        %v3912 = vpow.pop %v3911
        %v3913 = vmul.f32 %v3880, 1.442695
        %v3914 = vpow.pop %v3913
        %v3915 = vmul.f32 %v3881, 1.442695
        %v3916 = vpow.pop %v3915
        %v3917 = vmul.f32 %v3882, 1.442695
        %v3918 = vpow.pop %v3917
        %v3919 = vmul.f32 %v3883, 1.442695
        %v3920 = vpow.pop %v3919
        %v3921 = vmul.f32 %v3884, 1.442695
        %v3922 = vpow.pop %v3921
        %v3923 = vmul.f32 %v3885, 1.442695
        %v3924 = vpow.pop %v3923
        %v3925 = vmul.f32 %v3886, 1.442695
        %v3926 = vpow.pop %v3925
        %v3927 = vmul.f32 %v3887, 1.442695
        %v3928 = vpow.pop %v3927
        %v3929 = vmul.f32 %v3888, 1.442695
        %v3930 = vpow.pop %v3929
        %v3931 = vmul.f32 %v3889, 1.442695
        %v3932 = vpow.pop %v3931
        %v3933 = vmul.f32 %v3890, 1.442695
        %v3934 = vpow.pop %v3933
        %v3935 = vmul.f32 %v3891, 1.442695
        %v3936 = vpow.pop %v3935
        %v3937 = vmul.f32 %v3892, 1.442695
        %v3938 = vpow.pop %v3937
        %v3939 = vmul.f32 %v3893, 1.442695
        %v3940 = vpow.pop %v3939
        %v3941 = vmul.f32 %v3894, 1.442695
        %v3942 = vpow.pop %v3941
        %v3943 = vmul.f32 %v3895, 1.442695
        %v3944 = vpow.pop %v3943
        %v3945 = vmul.f32 %v3896, 1.442695
        %v3946 = vpow.pop %v3945
        %v3947 = vmul.f32 %v3897, 1.442695
        %v3948 = vpow.pop %v3947
        %v3949 = vmul.f32 %v3898, 1.442695
        %v3950 = vpow.pop %v3949
        %v3951 = vmul.f32 %v3899, 1.442695
        %v3952 = vpow.pop %v3951
        %v3953 = vmul.f32 %v3900, 1.442695
        %v3954 = vpow.pop %v3953
        %v3955 = vmul.f32 %v3901, 1.442695
        %v3956 = vpow.pop %v3955
        %v3957 = vmul.f32 %v3902, 1.442695
        %v3958 = vpow.pop %v3957
        %v3959 = vmul.f32 %v3903, 1.442695
        %v3960 = vpow.pop %v3959
        %v3961 = vmul.f32 %v3904, 1.442695
        %v3962 = vpow.pop %v3961
        %v3963 = vmul.f32 %v3905, 1.442695
        %v3964 = vpow.pop %v3963
        %v3965 = vmul.f32 %v3906, 1.442695
        %v3966 = vpow.pop %v3965
        %v3967 = vmul.f32 %v3907, 1.442695
        %v3968 = vpow.pop %v3967
        %v3969 = vmul.f32 %v3908, 1.442695
        %v3970 = vpow.pop %v3969
        %v3971 = vmul.f32 %v3909, 1.442695
        %v3972 = vpow.pop %v3971
        %v3973 = vmul.f32 %v3910, 1.442695
        %v3974 = vpow.pop %v3973
        %v3975 = vsel %vm2431, %v3912, 0.0
        %3976 = vadd.xlane.f32.xlu0 %v3975
        %v3977 = vpop.xlane.xlu0 %3976
        %v3978 = vsel %vm2431, %v3914, 0.0
        %3979 = vadd.xlane.f32.xlu0 %v3978
        %v3980 = vpop.xlane.xlu0 %3979
        %v3981 = vsel %vm2431, %v3916, 0.0
        %3982 = vadd.xlane.f32.xlu0 %v3981
        %v3983 = vpop.xlane.xlu0 %3982
        %v3984 = vsel %vm2431, %v3918, 0.0
        %3985 = vadd.xlane.f32.xlu0 %v3984
        %v3986 = vpop.xlane.xlu0 %3985
        %v3987 = vsel %vm2431, %v3920, 0.0
        %3988 = vadd.xlane.f32.xlu0 %v3987
        %v3989 = vpop.xlane.xlu0 %3988
        %v3990 = vsel %vm2431, %v3922, 0.0
        %3991 = vadd.xlane.f32.xlu0 %v3990
        %v3992 = vpop.xlane.xlu0 %3991
        %v3993 = vsel %vm2431, %v3924, 0.0
        %3994 = vadd.xlane.f32.xlu0 %v3993
        %v3995 = vpop.xlane.xlu0 %3994
        %v3996 = vsel %vm2431, %v3926, 0.0
        %3997 = vadd.xlane.f32.xlu0 %v3996
        %v3998 = vpop.xlane.xlu0 %3997
        %v3999 = vsel %vm2431, %v3928, 0.0
        %4000 = vadd.xlane.f32.xlu0 %v3999
        %v4001 = vpop.xlane.xlu0 %4000
        %v4002 = vsel %vm2431, %v3930, 0.0
        %4003 = vadd.xlane.f32.xlu0 %v4002
        %v4004 = vpop.xlane.xlu0 %4003
        %v4005 = vsel %vm2431, %v3932, 0.0
        %4006 = vadd.xlane.f32.xlu0 %v4005
        %v4007 = vpop.xlane.xlu0 %4006
        %v4008 = vsel %vm2431, %v3934, 0.0
        %4009 = vadd.xlane.f32.xlu0 %v4008
        %v4010 = vpop.xlane.xlu0 %4009
        %v4011 = vsel %vm2431, %v3936, 0.0
        %4012 = vadd.xlane.f32.xlu0 %v4011
        %v4013 = vpop.xlane.xlu0 %4012
        %v4014 = vsel %vm2431, %v3938, 0.0
        %4015 = vadd.xlane.f32.xlu0 %v4014
        %v4016 = vpop.xlane.xlu0 %4015
        %v4017 = vsel %vm2431, %v3940, 0.0
        %4018 = vadd.xlane.f32.xlu0 %v4017
        %v4019 = vpop.xlane.xlu0 %4018
        %v4020 = vsel %vm2431, %v3942, 0.0
        %4021 = vadd.xlane.f32.xlu0 %v4020
        %v4022 = vpop.xlane.xlu0 %4021
        %v4023 = vsel %vm2431, %v3944, 0.0
        %4024 = vadd.xlane.f32.xlu0 %v4023
        %v4025 = vpop.xlane.xlu0 %4024
        %v4026 = vsel %vm2431, %v3946, 0.0
        %4027 = vadd.xlane.f32.xlu0 %v4026
        %v4028 = vpop.xlane.xlu0 %4027
        %v4029 = vsel %vm2431, %v3948, 0.0
        %4030 = vadd.xlane.f32.xlu0 %v4029
        %v4031 = vpop.xlane.xlu0 %4030
        %v4032 = vsel %vm2431, %v3950, 0.0
        %4033 = vadd.xlane.f32.xlu0 %v4032
        %v4034 = vpop.xlane.xlu0 %4033
        %v4035 = vsel %vm2431, %v3952, 0.0
        %4036 = vadd.xlane.f32.xlu0 %v4035
        %v4037 = vpop.xlane.xlu0 %4036
        %v4038 = vsel %vm2431, %v3954, 0.0
        %4039 = vadd.xlane.f32.xlu0 %v4038
        %v4040 = vpop.xlane.xlu0 %4039
        %v4041 = vsel %vm2431, %v3956, 0.0
        %4042 = vadd.xlane.f32.xlu0 %v4041
        %v4043 = vpop.xlane.xlu0 %4042
        %v4044 = vsel %vm2431, %v3958, 0.0
        %4045 = vadd.xlane.f32.xlu0 %v4044
        %v4046 = vpop.xlane.xlu0 %4045
        %v4047 = vsel %vm2431, %v3960, 0.0
        %4048 = vadd.xlane.f32.xlu0 %v4047
        %v4049 = vpop.xlane.xlu0 %4048
        %v4050 = vsel %vm2431, %v3962, 0.0
        %4051 = vadd.xlane.f32.xlu0 %v4050
        %v4052 = vpop.xlane.xlu0 %4051
        %v4053 = vsel %vm2431, %v3964, 0.0
        %4054 = vadd.xlane.f32.xlu0 %v4053
        %v4055 = vpop.xlane.xlu0 %4054
        %v4056 = vsel %vm2431, %v3966, 0.0
        %4057 = vadd.xlane.f32.xlu0 %v4056
        %v4058 = vpop.xlane.xlu0 %4057
        %v4059 = vsel %vm2431, %v3968, 0.0
        %4060 = vadd.xlane.f32.xlu0 %v4059
        %v4061 = vpop.xlane.xlu0 %4060
        %v4062 = vsel %vm2431, %v3970, 0.0
        %4063 = vadd.xlane.f32.xlu0 %v4062
        %v4064 = vpop.xlane.xlu0 %4063
        %v4065 = vsel %vm2431, %v3972, 0.0
        %4066 = vadd.xlane.f32.xlu0 %v4065
        %v4067 = vpop.xlane.xlu0 %4066
        %v4068 = vsel %vm2431, %v3974, 0.0
        %4069 = vadd.xlane.f32.xlu0 %v4068
        %v4070 = vpop.xlane.xlu0 %4069
        %v4072 = vsel %vm2431, %v3912, 0
        %v4075 = vsel %vm2431, %v3914, 0
        %4077 = vmatpush.msra.mxu0 0.0
        %4078 = vmatpush.msra.mxu0 0.0
        %4079 = vmatpush.msra.mxu0 0.0
        %4080 = vmatpush.msra.mxu0 0.0
        %4081 = vmatpush.msra.mxu0 0.0
        %4082 = vmatpush.msra.mxu0 0.0
        %4083 = vmatpush.msra.mxu0 0.0
        %4084 = vmatpush.msra.mxu0 0.0
        %4085 = vmatpush.msra.mxu0 0.0
        %4086 = vmatpush.msra.mxu0 0.0
        %4087 = vmatpush.msra.mxu0 0.0
        %4088 = vmatpush.msra.mxu0 0.0
        %4089 = vmatpush.msra.mxu0 0.0
        %4090 = vmatpush.msra.mxu0 0.0
        %4091 = vmatpush.msra.mxu0 %v1696
        %4092 = vmatpush.msra.mxu0 %v1584
        %4093 = vmatmul.f32.gmra.mxu0 %v4072
        %v4094 = vpop.f32.mrf.mxu0
        %v4095 = vadd.f32 0.0, %v4094
        %4096 = vmatmul.f32.gmra.mxu0 %v4075
        %v4097 = vpop.f32.mrf.mxu0
        %v4098 = vadd.f32 0.0, %v4097
        %4099 = vdwg.mxu0
        %v4101 = vsel %vm2431, %v3916, 0
        %v4104 = vsel %vm2431, %v3918, 0
        %4106 = vmatpush.msra.mxu0 0.0
        %4107 = vmatpush.msra.mxu0 0.0
        %4108 = vmatpush.msra.mxu0 0.0
        %4109 = vmatpush.msra.mxu0 0.0
        %4110 = vmatpush.msra.mxu0 0.0
        %4111 = vmatpush.msra.mxu0 0.0
        %4112 = vmatpush.msra.mxu0 0.0
        %4113 = vmatpush.msra.mxu0 0.0
        %4114 = vmatpush.msra.mxu0 0.0
        %4115 = vmatpush.msra.mxu0 0.0
        %4116 = vmatpush.msra.mxu0 0.0
        %4117 = vmatpush.msra.mxu0 0.0
        %4118 = vmatpush.msra.mxu0 0.0
        %4119 = vmatpush.msra.mxu0 0.0
        %4120 = vmatpush.msra.mxu0 %v1698
        %4121 = vmatpush.msra.mxu0 %v1586
        %4122 = vmatmul.f32.gmra.mxu0 %v4101
        %v4123 = vpop.f32.mrf.mxu0
        %v4124 = vadd.f32 0.0, %v4123
        %4125 = vmatmul.f32.gmra.mxu0 %v4104
        %v4126 = vpop.f32.mrf.mxu0
        %v4127 = vadd.f32 0.0, %v4126
        %4128 = vdwg.mxu0
        %v4130 = vsel %vm2431, %v3920, 0
        %v4133 = vsel %vm2431, %v3922, 0
        %4135 = vmatpush.msra.mxu0 0.0
        %4136 = vmatpush.msra.mxu0 0.0
        %4137 = vmatpush.msra.mxu0 0.0
        %4138 = vmatpush.msra.mxu0 0.0
        %4139 = vmatpush.msra.mxu0 0.0
        %4140 = vmatpush.msra.mxu0 0.0
        %4141 = vmatpush.msra.mxu0 0.0
        %4142 = vmatpush.msra.mxu0 0.0
        %4143 = vmatpush.msra.mxu0 0.0
        %4144 = vmatpush.msra.mxu0 0.0
        %4145 = vmatpush.msra.mxu0 0.0
        %4146 = vmatpush.msra.mxu0 0.0
        %4147 = vmatpush.msra.mxu0 0.0
        %4148 = vmatpush.msra.mxu0 0.0
        %4149 = vmatpush.msra.mxu0 %v1700
        %4150 = vmatpush.msra.mxu0 %v1588
        %4151 = vmatmul.f32.gmra.mxu0 %v4130
        %v4152 = vpop.f32.mrf.mxu0
        %v4153 = vadd.f32 0.0, %v4152
        %4154 = vmatmul.f32.gmra.mxu0 %v4133
        %v4155 = vpop.f32.mrf.mxu0
        %v4156 = vadd.f32 0.0, %v4155
        %4157 = vdwg.mxu0
        %v4159 = vsel %vm2431, %v3924, 0
        %v4162 = vsel %vm2431, %v3926, 0
        %4164 = vmatpush.msra.mxu0 0.0
        %4165 = vmatpush.msra.mxu0 0.0
        %4166 = vmatpush.msra.mxu0 0.0
        %4167 = vmatpush.msra.mxu0 0.0
        %4168 = vmatpush.msra.mxu0 0.0
        %4169 = vmatpush.msra.mxu0 0.0
        %4170 = vmatpush.msra.mxu0 0.0
        %4171 = vmatpush.msra.mxu0 0.0
        %4172 = vmatpush.msra.mxu0 0.0
        %4173 = vmatpush.msra.mxu0 0.0
        %4174 = vmatpush.msra.mxu0 0.0
        %4175 = vmatpush.msra.mxu0 0.0
        %4176 = vmatpush.msra.mxu0 0.0
        %4177 = vmatpush.msra.mxu0 0.0
        %4178 = vmatpush.msra.mxu0 %v1702
        %4179 = vmatpush.msra.mxu0 %v1590
        %4180 = vmatmul.f32.gmra.mxu0 %v4159
        %v4181 = vpop.f32.mrf.mxu0
        %v4182 = vadd.f32 0.0, %v4181
        %4183 = vmatmul.f32.gmra.mxu0 %v4162
        %v4184 = vpop.f32.mrf.mxu0
        %v4185 = vadd.f32 0.0, %v4184
        %4186 = vdwg.mxu0
        %v4188 = vsel %vm2431, %v3928, 0
        %v4191 = vsel %vm2431, %v3930, 0
        %4193 = vmatpush.msra.mxu0 0.0
        %4194 = vmatpush.msra.mxu0 0.0
        %4195 = vmatpush.msra.mxu0 0.0
        %4196 = vmatpush.msra.mxu0 0.0
        %4197 = vmatpush.msra.mxu0 0.0
        %4198 = vmatpush.msra.mxu0 0.0
        %4199 = vmatpush.msra.mxu0 0.0
        %4200 = vmatpush.msra.mxu0 0.0
        %4201 = vmatpush.msra.mxu0 0.0
        %4202 = vmatpush.msra.mxu0 0.0
        %4203 = vmatpush.msra.mxu0 0.0
        %4204 = vmatpush.msra.mxu0 0.0
        %4205 = vmatpush.msra.mxu0 0.0
        %4206 = vmatpush.msra.mxu0 0.0
        %4207 = vmatpush.msra.mxu0 %v1704
        %4208 = vmatpush.msra.mxu0 %v1592
        %4209 = vmatmul.f32.gmra.mxu0 %v4188
        %v4210 = vpop.f32.mrf.mxu0
        %v4211 = vadd.f32 0.0, %v4210
        %4212 = vmatmul.f32.gmra.mxu0 %v4191
        %v4213 = vpop.f32.mrf.mxu0
        %v4214 = vadd.f32 0.0, %v4213
        %4215 = vdwg.mxu0
        %v4217 = vsel %vm2431, %v3932, 0
        %v4220 = vsel %vm2431, %v3934, 0
        %4222 = vmatpush.msra.mxu0 0.0
        %4223 = vmatpush.msra.mxu0 0.0
        %4224 = vmatpush.msra.mxu0 0.0
        %4225 = vmatpush.msra.mxu0 0.0
        %4226 = vmatpush.msra.mxu0 0.0
        %4227 = vmatpush.msra.mxu0 0.0
        %4228 = vmatpush.msra.mxu0 0.0
        %4229 = vmatpush.msra.mxu0 0.0
        %4230 = vmatpush.msra.mxu0 0.0
        %4231 = vmatpush.msra.mxu0 0.0
        %4232 = vmatpush.msra.mxu0 0.0
        %4233 = vmatpush.msra.mxu0 0.0
        %4234 = vmatpush.msra.mxu0 0.0
        %4235 = vmatpush.msra.mxu0 0.0
        %4236 = vmatpush.msra.mxu0 %v1706
        %4237 = vmatpush.msra.mxu0 %v1594
        %4238 = vmatmul.f32.gmra.mxu0 %v4217
        %v4239 = vpop.f32.mrf.mxu0
        %v4240 = vadd.f32 0.0, %v4239
        %4241 = vmatmul.f32.gmra.mxu0 %v4220
        %v4242 = vpop.f32.mrf.mxu0
        %v4243 = vadd.f32 0.0, %v4242
        %4244 = vdwg.mxu0
        %v4246 = vsel %vm2431, %v3936, 0
        %v4249 = vsel %vm2431, %v3938, 0
        %4251 = vmatpush.msra.mxu0 0.0
        %4252 = vmatpush.msra.mxu0 0.0
        %4253 = vmatpush.msra.mxu0 0.0
        %4254 = vmatpush.msra.mxu0 0.0
        %4255 = vmatpush.msra.mxu0 0.0
        %4256 = vmatpush.msra.mxu0 0.0
        %4257 = vmatpush.msra.mxu0 0.0
        %4258 = vmatpush.msra.mxu0 0.0
        %4259 = vmatpush.msra.mxu0 0.0
        %4260 = vmatpush.msra.mxu0 0.0
        %4261 = vmatpush.msra.mxu0 0.0
        %4262 = vmatpush.msra.mxu0 0.0
        %4263 = vmatpush.msra.mxu0 0.0
        %4264 = vmatpush.msra.mxu0 0.0
        %4265 = vmatpush.msra.mxu0 %v1708
        %4266 = vmatpush.msra.mxu0 %v1596
        %4267 = vmatmul.f32.gmra.mxu0 %v4246
        %v4268 = vpop.f32.mrf.mxu0
        %v4269 = vadd.f32 0.0, %v4268
        %4270 = vmatmul.f32.gmra.mxu0 %v4249
        %v4271 = vpop.f32.mrf.mxu0
        %v4272 = vadd.f32 0.0, %v4271
        %4273 = vdwg.mxu0
        %v4275 = vsel %vm2431, %v3940, 0
        %v4278 = vsel %vm2431, %v3942, 0
        %4280 = vmatpush.msra.mxu0 0.0
        %4281 = vmatpush.msra.mxu0 0.0
        %4282 = vmatpush.msra.mxu0 0.0
        %4283 = vmatpush.msra.mxu0 0.0
        %4284 = vmatpush.msra.mxu0 0.0
        %4285 = vmatpush.msra.mxu0 0.0
        %4286 = vmatpush.msra.mxu0 0.0
        %4287 = vmatpush.msra.mxu0 0.0
        %4288 = vmatpush.msra.mxu0 0.0
        %4289 = vmatpush.msra.mxu0 0.0
        %4290 = vmatpush.msra.mxu0 0.0
        %4291 = vmatpush.msra.mxu0 0.0
        %4292 = vmatpush.msra.mxu0 0.0
        %4293 = vmatpush.msra.mxu0 0.0
        %4294 = vmatpush.msra.mxu0 %v1710
        %4295 = vmatpush.msra.mxu0 %v1598
        %4296 = vmatmul.f32.gmra.mxu0 %v4275
        %v4297 = vpop.f32.mrf.mxu0
        %v4298 = vadd.f32 0.0, %v4297
        %4299 = vmatmul.f32.gmra.mxu0 %v4278
        %v4300 = vpop.f32.mrf.mxu0
        %v4301 = vadd.f32 0.0, %v4300
        %4302 = vdwg.mxu0
        %v4304 = vsel %vm2431, %v3944, 0
        %v4307 = vsel %vm2431, %v3946, 0
        %4309 = vmatpush.msra.mxu0 0.0
        %4310 = vmatpush.msra.mxu0 0.0
        %4311 = vmatpush.msra.mxu0 0.0
        %4312 = vmatpush.msra.mxu0 0.0
        %4313 = vmatpush.msra.mxu0 0.0
        %4314 = vmatpush.msra.mxu0 0.0
        %4315 = vmatpush.msra.mxu0 0.0
        %4316 = vmatpush.msra.mxu0 0.0
        %4317 = vmatpush.msra.mxu0 0.0
        %4318 = vmatpush.msra.mxu0 0.0
        %4319 = vmatpush.msra.mxu0 0.0
        %4320 = vmatpush.msra.mxu0 0.0
        %4321 = vmatpush.msra.mxu0 0.0
        %4322 = vmatpush.msra.mxu0 0.0
        %4323 = vmatpush.msra.mxu0 %v1920
        %4324 = vmatpush.msra.mxu0 %v1808
        %4325 = vmatmul.f32.gmra.mxu0 %v4304
        %v4326 = vpop.f32.mrf.mxu0
        %v4327 = vadd.f32 0.0, %v4326
        %4328 = vmatmul.f32.gmra.mxu0 %v4307
        %v4329 = vpop.f32.mrf.mxu0
        %v4330 = vadd.f32 0.0, %v4329
        %4331 = vdwg.mxu0
        %v4333 = vsel %vm2431, %v3948, 0
        %v4336 = vsel %vm2431, %v3950, 0
        %4338 = vmatpush.msra.mxu0 0.0
        %4339 = vmatpush.msra.mxu0 0.0
        %4340 = vmatpush.msra.mxu0 0.0
        %4341 = vmatpush.msra.mxu0 0.0
        %4342 = vmatpush.msra.mxu0 0.0
        %4343 = vmatpush.msra.mxu0 0.0
        %4344 = vmatpush.msra.mxu0 0.0
        %4345 = vmatpush.msra.mxu0 0.0
        %4346 = vmatpush.msra.mxu0 0.0
        %4347 = vmatpush.msra.mxu0 0.0
        %4348 = vmatpush.msra.mxu0 0.0
        %4349 = vmatpush.msra.mxu0 0.0
        %4350 = vmatpush.msra.mxu0 0.0
        %4351 = vmatpush.msra.mxu0 0.0
        %4352 = vmatpush.msra.mxu0 %v1922
        %4353 = vmatpush.msra.mxu0 %v1810
        %4354 = vmatmul.f32.gmra.mxu0 %v4333
        %v4355 = vpop.f32.mrf.mxu0
        %v4356 = vadd.f32 0.0, %v4355
        %4357 = vmatmul.f32.gmra.mxu0 %v4336
        %v4358 = vpop.f32.mrf.mxu0
        %v4359 = vadd.f32 0.0, %v4358
        %4360 = vdwg.mxu0
        %v4362 = vsel %vm2431, %v3952, 0
        %v4365 = vsel %vm2431, %v3954, 0
        %4367 = vmatpush.msra.mxu0 0.0
        %4368 = vmatpush.msra.mxu0 0.0
        %4369 = vmatpush.msra.mxu0 0.0
        %4370 = vmatpush.msra.mxu0 0.0
        %4371 = vmatpush.msra.mxu0 0.0
        %4372 = vmatpush.msra.mxu0 0.0
        %4373 = vmatpush.msra.mxu0 0.0
        %4374 = vmatpush.msra.mxu0 0.0
        %4375 = vmatpush.msra.mxu0 0.0
        %4376 = vmatpush.msra.mxu0 0.0
        %4377 = vmatpush.msra.mxu0 0.0
        %4378 = vmatpush.msra.mxu0 0.0
        %4379 = vmatpush.msra.mxu0 0.0
        %4380 = vmatpush.msra.mxu0 0.0
        %4381 = vmatpush.msra.mxu0 %v1924
        %4382 = vmatpush.msra.mxu0 %v1812
        %4383 = vmatmul.f32.gmra.mxu0 %v4362
        %v4384 = vpop.f32.mrf.mxu0
        %v4385 = vadd.f32 0.0, %v4384
        %4386 = vmatmul.f32.gmra.mxu0 %v4365
        %v4387 = vpop.f32.mrf.mxu0
        %v4388 = vadd.f32 0.0, %v4387
        %4389 = vdwg.mxu0
        %v4391 = vsel %vm2431, %v3956, 0
        %v4394 = vsel %vm2431, %v3958, 0
        %4396 = vmatpush.msra.mxu0 0.0
        %4397 = vmatpush.msra.mxu0 0.0
        %4398 = vmatpush.msra.mxu0 0.0
        %4399 = vmatpush.msra.mxu0 0.0
        %4400 = vmatpush.msra.mxu0 0.0
        %4401 = vmatpush.msra.mxu0 0.0
        %4402 = vmatpush.msra.mxu0 0.0
        %4403 = vmatpush.msra.mxu0 0.0
        %4404 = vmatpush.msra.mxu0 0.0
        %4405 = vmatpush.msra.mxu0 0.0
        %4406 = vmatpush.msra.mxu0 0.0
        %4407 = vmatpush.msra.mxu0 0.0
        %4408 = vmatpush.msra.mxu0 0.0
        %4409 = vmatpush.msra.mxu0 0.0
        %4410 = vmatpush.msra.mxu0 %v1926
        %4411 = vmatpush.msra.mxu0 %v1814
        %4412 = vmatmul.f32.gmra.mxu0 %v4391
        %v4413 = vpop.f32.mrf.mxu0
        %v4414 = vadd.f32 0.0, %v4413
        %4415 = vmatmul.f32.gmra.mxu0 %v4394
        %v4416 = vpop.f32.mrf.mxu0
        %v4417 = vadd.f32 0.0, %v4416
        %4418 = vdwg.mxu0
        %v4420 = vsel %vm2431, %v3960, 0
        %v4423 = vsel %vm2431, %v3962, 0
        %4425 = vmatpush.msra.mxu0 0.0
        %4426 = vmatpush.msra.mxu0 0.0
        %4427 = vmatpush.msra.mxu0 0.0
        %4428 = vmatpush.msra.mxu0 0.0
        %4429 = vmatpush.msra.mxu0 0.0
        %4430 = vmatpush.msra.mxu0 0.0
        %4431 = vmatpush.msra.mxu0 0.0
        %4432 = vmatpush.msra.mxu0 0.0
        %4433 = vmatpush.msra.mxu0 0.0
        %4434 = vmatpush.msra.mxu0 0.0
        %4435 = vmatpush.msra.mxu0 0.0
        %4436 = vmatpush.msra.mxu0 0.0
        %4437 = vmatpush.msra.mxu0 0.0
        %4438 = vmatpush.msra.mxu0 0.0
        %4439 = vmatpush.msra.mxu0 %v1928
        %4440 = vmatpush.msra.mxu0 %v1816
        %4441 = vmatmul.f32.gmra.mxu0 %v4420
        %v4442 = vpop.f32.mrf.mxu0
        %v4443 = vadd.f32 0.0, %v4442
        %4444 = vmatmul.f32.gmra.mxu0 %v4423
        %v4445 = vpop.f32.mrf.mxu0
        %v4446 = vadd.f32 0.0, %v4445
        %4447 = vdwg.mxu0
        %v4449 = vsel %vm2431, %v3964, 0
        %v4452 = vsel %vm2431, %v3966, 0
        %4454 = vmatpush.msra.mxu0 0.0
        %4455 = vmatpush.msra.mxu0 0.0
        %4456 = vmatpush.msra.mxu0 0.0
        %4457 = vmatpush.msra.mxu0 0.0
        %4458 = vmatpush.msra.mxu0 0.0
        %4459 = vmatpush.msra.mxu0 0.0
        %4460 = vmatpush.msra.mxu0 0.0
        %4461 = vmatpush.msra.mxu0 0.0
        %4462 = vmatpush.msra.mxu0 0.0
        %4463 = vmatpush.msra.mxu0 0.0
        %4464 = vmatpush.msra.mxu0 0.0
        %4465 = vmatpush.msra.mxu0 0.0
        %4466 = vmatpush.msra.mxu0 0.0
        %4467 = vmatpush.msra.mxu0 0.0
        %4468 = vmatpush.msra.mxu0 %v1930
        %4469 = vmatpush.msra.mxu0 %v1818
        %4470 = vmatmul.f32.gmra.mxu0 %v4449
        %v4471 = vpop.f32.mrf.mxu0
        %v4472 = vadd.f32 0.0, %v4471
        %4473 = vmatmul.f32.gmra.mxu0 %v4452
        %v4474 = vpop.f32.mrf.mxu0
        %v4475 = vadd.f32 0.0, %v4474
        %4476 = vdwg.mxu0
        %v4478 = vsel %vm2431, %v3968, 0
        %v4481 = vsel %vm2431, %v3970, 0
        %4483 = vmatpush.msra.mxu0 0.0
        %4484 = vmatpush.msra.mxu0 0.0
        %4485 = vmatpush.msra.mxu0 0.0
        %4486 = vmatpush.msra.mxu0 0.0
        %4487 = vmatpush.msra.mxu0 0.0
        %4488 = vmatpush.msra.mxu0 0.0
        %4489 = vmatpush.msra.mxu0 0.0
        %4490 = vmatpush.msra.mxu0 0.0
        %4491 = vmatpush.msra.mxu0 0.0
        %4492 = vmatpush.msra.mxu0 0.0
        %4493 = vmatpush.msra.mxu0 0.0
        %4494 = vmatpush.msra.mxu0 0.0
        %4495 = vmatpush.msra.mxu0 0.0
        %4496 = vmatpush.msra.mxu0 0.0
        %4497 = vmatpush.msra.mxu0 %v1932
        %4498 = vmatpush.msra.mxu0 %v1820
        %4499 = vmatmul.f32.gmra.mxu0 %v4478
        %v4500 = vpop.f32.mrf.mxu0
        %v4501 = vadd.f32 0.0, %v4500
        %4502 = vmatmul.f32.gmra.mxu0 %v4481
        %v4503 = vpop.f32.mrf.mxu0
        %v4504 = vadd.f32 0.0, %v4503
        %4505 = vdwg.mxu0
        %v4507 = vsel %vm2431, %v3972, 0
        %v4510 = vsel %vm2431, %v3974, 0
        %4512 = vmatpush.msra.mxu0 0.0
        %4513 = vmatpush.msra.mxu0 0.0
        %4514 = vmatpush.msra.mxu0 0.0
        %4515 = vmatpush.msra.mxu0 0.0
        %4516 = vmatpush.msra.mxu0 0.0
        %4517 = vmatpush.msra.mxu0 0.0
        %4518 = vmatpush.msra.mxu0 0.0
        %4519 = vmatpush.msra.mxu0 0.0
        %4520 = vmatpush.msra.mxu0 0.0
        %4521 = vmatpush.msra.mxu0 0.0
        %4522 = vmatpush.msra.mxu0 0.0
        %4523 = vmatpush.msra.mxu0 0.0
        %4524 = vmatpush.msra.mxu0 0.0
        %4525 = vmatpush.msra.mxu0 0.0
        %4526 = vmatpush.msra.mxu0 %v1934
        %4527 = vmatpush.msra.mxu0 %v1822
        %4528 = vmatmul.f32.gmra.mxu0 %v4507
        %v4529 = vpop.f32.mrf.mxu0
        %v4530 = vadd.f32 0.0, %v4529
        %4531 = vmatmul.f32.gmra.mxu0 %v4510
        %v4532 = vpop.f32.mrf.mxu0
        %v4533 = vadd.f32 0.0, %v4532
        %4534 = vdwg.mxu0
        %v4567 = vperm.slane %v3785, %v3748
        %v4568 = vadd.s32 %v3748, 4294967288
        %v4569 = vperm.slane %v3788, %v4568
        %vm4570 = vcmask 130112
        %v4571 = vsel %vm4570, %v4569, %v4567
        %v4572 = vperm.slane %v3791, %v3748
        %v4573 = vperm.slane %v3794, %v4568
        %v4574 = vsel %vm4570, %v4573, %v4572
        %v4575 = vperm.slane %v3797, %v3748
        %v4576 = vperm.slane %v3800, %v4568
        %v4577 = vsel %vm4570, %v4576, %v4575
        %v4578 = vperm.slane %v3803, %v3748
        %v4579 = vperm.slane %v3806, %v4568
        %v4580 = vsel %vm4570, %v4579, %v4578
        %v4581 = vperm.slane %v3809, %v3748
        %v4582 = vperm.slane %v3812, %v4568
        %v4583 = vsel %vm4570, %v4582, %v4581
        %v4584 = vperm.slane %v3815, %v3748
        %v4585 = vperm.slane %v3818, %v4568
        %v4586 = vsel %vm4570, %v4585, %v4584
        %v4587 = vperm.slane %v3821, %v3748
        %v4588 = vperm.slane %v3824, %v4568
        %v4589 = vsel %vm4570, %v4588, %v4587
        %v4590 = vperm.slane %v3827, %v3748
        %v4591 = vperm.slane %v3830, %v4568
        %v4592 = vsel %vm4570, %v4591, %v4590
        %v4593 = vperm.slane %v3833, %v3748
        %v4594 = vperm.slane %v3836, %v4568
        %v4595 = vsel %vm4570, %v4594, %v4593
        %v4596 = vperm.slane %v3839, %v3748
        %v4597 = vperm.slane %v3842, %v4568
        %v4598 = vsel %vm4570, %v4597, %v4596
        %v4599 = vperm.slane %v3845, %v3748
        %v4600 = vperm.slane %v3848, %v4568
        %v4601 = vsel %vm4570, %v4600, %v4599
        %v4602 = vperm.slane %v3851, %v3748
        %v4603 = vperm.slane %v3854, %v4568
        %v4604 = vsel %vm4570, %v4603, %v4602
        %v4605 = vperm.slane %v3857, %v3748
        %v4606 = vperm.slane %v3860, %v4568
        %v4607 = vsel %vm4570, %v4606, %v4605
        %v4608 = vperm.slane %v3863, %v3748
        %v4609 = vperm.slane %v3866, %v4568
        %v4610 = vsel %vm4570, %v4609, %v4608
        %v4611 = vperm.slane %v3869, %v3748
        %v4612 = vperm.slane %v3872, %v4568
        %v4613 = vsel %vm4570, %v4612, %v4611
        %v4614 = vperm.slane %v3875, %v3748
        %v4615 = vperm.slane %v3878, %v4568
        %v4616 = vsel %vm4570, %v4615, %v4614
        %vm4617 = vcmask 1041409
        %v4618 = vsel %vm4617, %v4574, %v4571
        %vm4619 = vcmask 1042434
        %v4620 = vsel %vm4619, %v4577, %v4618
        %vm4621 = vcmask 1043459
        %v4622 = vsel %vm4621, %v4580, %v4620
        %vm4623 = vcmask 1044484
        %v4624 = vsel %vm4623, %v4583, %v4622
        %vm4625 = vcmask 1045509
        %v4626 = vsel %vm4625, %v4586, %v4624
        %vm4627 = vcmask 1046534
        %v4628 = vsel %vm4627, %v4589, %v4626
        %vm4629 = vcmask 1047559
        %v4630 = vsel %vm4629, %v4592, %v4628
        %v4631 = vsel %vm4617, %v4598, %v4595
        %v4632 = vsel %vm4619, %v4601, %v4631
        %v4633 = vsel %vm4621, %v4604, %v4632
        %v4634 = vsel %vm4623, %v4607, %v4633
        %v4635 = vsel %vm4625, %v4610, %v4634
        %v4636 = vsel %vm4627, %v4613, %v4635
        %v4637 = vsel %vm4629, %v4616, %v4636
        %4640 = vxpose.xlu0.b32.start [1/16] %v4630, 128
        %4641 = vxpose.xlu0.b32.cont [2/16] %v4637, 128
        %4642 = vxpose.xlu0.b32.cont [3/16] 0.0, 128
        %4643 = vxpose.xlu0.b32.cont [4/16] 0.0, 128
        %4644 = vxpose.xlu0.b32.cont [5/16] 0.0, 128
        %4645 = vxpose.xlu0.b32.cont [6/16] 0.0, 128
        %4646 = vxpose.xlu0.b32.cont [7/16] 0.0, 128
        %4647 = vxpose.xlu0.b32.cont [8/16] 0.0, 128
        %4648 = vxpose.xlu0.b32.cont [9/16] 0.0, 128
        %4649 = vxpose.xlu0.b32.cont [10/16] 0.0, 128
        %4650 = vxpose.xlu0.b32.cont [11/16] 0.0, 128
        %4651 = vxpose.xlu0.b32.cont [12/16] 0.0, 128
        %4652 = vxpose.xlu0.b32.cont [13/16] 0.0, 128
        %4653 = vxpose.xlu0.b32.cont [14/16] 0.0, 128
        %4654 = vxpose.xlu0.b32.cont [15/16] 0.0, 128
        %4655 = vxpose.xlu0.b32.end [16/16] 0.0, 128
        %v4656 = vpop.trf.xlu0
        %v4657 = vpop.trf.xlu0
        %v4658 = vpop.trf.xlu0
        %v4659 = vpop.trf.xlu0
        %v4660 = vpop.trf.xlu0
        %v4661 = vpop.trf.xlu0
        %v4662 = vpop.trf.xlu0
        %v4663 = vpop.trf.xlu0
        %v4664 = vpop.trf.xlu0
        %v4665 = vpop.trf.xlu0
        %v4666 = vpop.trf.xlu0
        %v4667 = vpop.trf.xlu0
        %v4668 = vpop.trf.xlu0
        %v4669 = vpop.trf.xlu0
        %v4670 = vpop.trf.xlu0
        %v4671 = vpop.trf.xlu0
        %v4704 = vperm.slane %v3977, %v3748
        %v4705 = vperm.slane %v3980, %v4568
        %v4706 = vsel %vm4570, %v4705, %v4704
        %v4707 = vperm.slane %v3983, %v3748
        %v4708 = vperm.slane %v3986, %v4568
        %v4709 = vsel %vm4570, %v4708, %v4707
        %v4710 = vperm.slane %v3989, %v3748
        %v4711 = vperm.slane %v3992, %v4568
        %v4712 = vsel %vm4570, %v4711, %v4710
        %v4713 = vperm.slane %v3995, %v3748
        %v4714 = vperm.slane %v3998, %v4568
        %v4715 = vsel %vm4570, %v4714, %v4713
        %v4716 = vperm.slane %v4001, %v3748
        %v4717 = vperm.slane %v4004, %v4568
        %v4718 = vsel %vm4570, %v4717, %v4716
        %v4719 = vperm.slane %v4007, %v3748
        %v4720 = vperm.slane %v4010, %v4568
        %v4721 = vsel %vm4570, %v4720, %v4719
        %v4722 = vperm.slane %v4013, %v3748
        %v4723 = vperm.slane %v4016, %v4568
        %v4724 = vsel %vm4570, %v4723, %v4722
        %v4725 = vperm.slane %v4019, %v3748
        %v4726 = vperm.slane %v4022, %v4568
        %v4727 = vsel %vm4570, %v4726, %v4725
        %v4728 = vperm.slane %v4025, %v3748
        %v4729 = vperm.slane %v4028, %v4568
        %v4730 = vsel %vm4570, %v4729, %v4728
        %v4731 = vperm.slane %v4031, %v3748
        %v4732 = vperm.slane %v4034, %v4568
        %v4733 = vsel %vm4570, %v4732, %v4731
        %v4734 = vperm.slane %v4037, %v3748
        %v4735 = vperm.slane %v4040, %v4568
        %v4736 = vsel %vm4570, %v4735, %v4734
        %v4737 = vperm.slane %v4043, %v3748
        %v4738 = vperm.slane %v4046, %v4568
        %v4739 = vsel %vm4570, %v4738, %v4737
        %v4740 = vperm.slane %v4049, %v3748
        %v4741 = vperm.slane %v4052, %v4568
        %v4742 = vsel %vm4570, %v4741, %v4740
        %v4743 = vperm.slane %v4055, %v3748
        %v4744 = vperm.slane %v4058, %v4568
        %v4745 = vsel %vm4570, %v4744, %v4743
        %v4746 = vperm.slane %v4061, %v3748
        %v4747 = vperm.slane %v4064, %v4568
        %v4748 = vsel %vm4570, %v4747, %v4746
        %v4749 = vperm.slane %v4067, %v3748
        %v4750 = vperm.slane %v4070, %v4568
        %v4751 = vsel %vm4570, %v4750, %v4749
        %v4752 = vsel %vm4617, %v4709, %v4706
        %v4753 = vsel %vm4619, %v4712, %v4752
        %v4754 = vsel %vm4621, %v4715, %v4753
        %v4755 = vsel %vm4623, %v4718, %v4754
        %v4756 = vsel %vm4625, %v4721, %v4755
        %v4757 = vsel %vm4627, %v4724, %v4756
        %v4758 = vsel %vm4629, %v4727, %v4757
        %v4759 = vsel %vm4617, %v4733, %v4730
        %v4760 = vsel %vm4619, %v4736, %v4759
        %v4761 = vsel %vm4621, %v4739, %v4760
        %v4762 = vsel %vm4623, %v4742, %v4761
        %v4763 = vsel %vm4625, %v4745, %v4762
        %v4764 = vsel %vm4627, %v4748, %v4763
        %v4765 = vsel %vm4629, %v4751, %v4764
        %4768 = vxpose.xlu0.b32.start [1/16] %v4758, 128
        %4769 = vxpose.xlu0.b32.cont [2/16] %v4765, 128
        %4770 = vxpose.xlu0.b32.cont [3/16] 0.0, 128
        %4771 = vxpose.xlu0.b32.cont [4/16] 0.0, 128
        %4772 = vxpose.xlu0.b32.cont [5/16] 0.0, 128
        %4773 = vxpose.xlu0.b32.cont [6/16] 0.0, 128
        %4774 = vxpose.xlu0.b32.cont [7/16] 0.0, 128
        %4775 = vxpose.xlu0.b32.cont [8/16] 0.0, 128
        %4776 = vxpose.xlu0.b32.cont [9/16] 0.0, 128
        %4777 = vxpose.xlu0.b32.cont [10/16] 0.0, 128
        %4778 = vxpose.xlu0.b32.cont [11/16] 0.0, 128
        %4779 = vxpose.xlu0.b32.cont [12/16] 0.0, 128
        %4780 = vxpose.xlu0.b32.cont [13/16] 0.0, 128
        %4781 = vxpose.xlu0.b32.cont [14/16] 0.0, 128
        %4782 = vxpose.xlu0.b32.cont [15/16] 0.0, 128
        %4783 = vxpose.xlu0.b32.end [16/16] 0.0, 128
        %v4784 = vpop.trf.xlu0
        %v4785 = vpop.trf.xlu0
        %v4786 = vpop.trf.xlu0
        %v4787 = vpop.trf.xlu0
        %v4788 = vpop.trf.xlu0
        %v4789 = vpop.trf.xlu0
        %v4790 = vpop.trf.xlu0
        %v4791 = vpop.trf.xlu0
        %v4792 = vpop.trf.xlu0
        %v4793 = vpop.trf.xlu0
        %v4794 = vpop.trf.xlu0
        %v4795 = vpop.trf.xlu0
        %v4796 = vpop.trf.xlu0
        %v4797 = vpop.trf.xlu0
        %v4798 = vpop.trf.xlu0
        %v4799 = vpop.trf.xlu0
        %v4802 = vperm.slane %v4656, 0
        %v4803 = vlaneseq
        %v4804 = vshrl.u32 %v4803, 7
        %4806 = vset.pattern.permute.xlu0 %v4804
        %4807 = vperm.xlu0 %4806, %v4802
        %v4808 = vpop.permute.xlu0 %4807
        %v4809 = vlaneseq
        %v4810 = vshrl.u32 %v4809, 7
        %v4811 = vadd.s32 %v4810, 8
        %4812 = vset.pattern.permute.xlu0 %v4811
        %4813 = vperm.xlu0 %4812, %v4802
        %v4814 = vpop.permute.xlu0 %4813
        %v4815 = vperm.slane %v4656, 1
        %v4816 = vlaneseq
        %v4817 = vshrl.u32 %v4816, 7
        %4819 = vset.pattern.permute.xlu0 %v4817
        %4820 = vperm.xlu0 %4819, %v4815
        %v4821 = vpop.permute.xlu0 %4820
        %v4822 = vlaneseq
        %v4823 = vshrl.u32 %v4822, 7
        %v4824 = vadd.s32 %v4823, 8
        %4825 = vset.pattern.permute.xlu0 %v4824
        %4826 = vperm.xlu0 %4825, %v4815
        %v4827 = vpop.permute.xlu0 %4826
        %v4828 = vperm.slane %v4656, 2
        %v4829 = vlaneseq
        %v4830 = vshrl.u32 %v4829, 7
        %4832 = vset.pattern.permute.xlu0 %v4830
        %4833 = vperm.xlu0 %4832, %v4828
        %v4834 = vpop.permute.xlu0 %4833
        %v4835 = vlaneseq
        %v4836 = vshrl.u32 %v4835, 7
        %v4837 = vadd.s32 %v4836, 8
        %4838 = vset.pattern.permute.xlu0 %v4837
        %4839 = vperm.xlu0 %4838, %v4828
        %v4840 = vpop.permute.xlu0 %4839
        %v4841 = vperm.slane %v4656, 3
        %v4842 = vlaneseq
        %v4843 = vshrl.u32 %v4842, 7
        %4845 = vset.pattern.permute.xlu0 %v4843
        %4846 = vperm.xlu0 %4845, %v4841
        %v4847 = vpop.permute.xlu0 %4846
        %v4848 = vlaneseq
        %v4849 = vshrl.u32 %v4848, 7
        %v4850 = vadd.s32 %v4849, 8
        %4851 = vset.pattern.permute.xlu0 %v4850
        %4852 = vperm.xlu0 %4851, %v4841
        %v4853 = vpop.permute.xlu0 %4852
        %v4854 = vperm.slane %v4656, 4
        %v4855 = vlaneseq
        %v4856 = vshrl.u32 %v4855, 7
        %4858 = vset.pattern.permute.xlu0 %v4856
        %4859 = vperm.xlu0 %4858, %v4854
        %v4860 = vpop.permute.xlu0 %4859
        %v4861 = vlaneseq
        %v4862 = vshrl.u32 %v4861, 7
        %v4863 = vadd.s32 %v4862, 8
        %4864 = vset.pattern.permute.xlu0 %v4863
        %4865 = vperm.xlu0 %4864, %v4854
        %v4866 = vpop.permute.xlu0 %4865
        %v4867 = vperm.slane %v4656, 5
        %v4868 = vlaneseq
        %v4869 = vshrl.u32 %v4868, 7
        %4871 = vset.pattern.permute.xlu0 %v4869
        %4872 = vperm.xlu0 %4871, %v4867
        %v4873 = vpop.permute.xlu0 %4872
        %v4874 = vlaneseq
        %v4875 = vshrl.u32 %v4874, 7
        %v4876 = vadd.s32 %v4875, 8
        %4877 = vset.pattern.permute.xlu0 %v4876
        %4878 = vperm.xlu0 %4877, %v4867
        %v4879 = vpop.permute.xlu0 %4878
        %v4880 = vperm.slane %v4656, 6
        %v4881 = vlaneseq
        %v4882 = vshrl.u32 %v4881, 7
        %4884 = vset.pattern.permute.xlu0 %v4882
        %4885 = vperm.xlu0 %4884, %v4880
        %v4886 = vpop.permute.xlu0 %4885
        %v4887 = vlaneseq
        %v4888 = vshrl.u32 %v4887, 7
        %v4889 = vadd.s32 %v4888, 8
        %4890 = vset.pattern.permute.xlu0 %v4889
        %4891 = vperm.xlu0 %4890, %v4880
        %v4892 = vpop.permute.xlu0 %4891
        %v4893 = vperm.slane %v4656, 7
        %v4894 = vlaneseq
        %v4895 = vshrl.u32 %v4894, 7
        %4897 = vset.pattern.permute.xlu0 %v4895
        %4898 = vperm.xlu0 %4897, %v4893
        %v4899 = vpop.permute.xlu0 %4898
        %v4900 = vlaneseq
        %v4901 = vshrl.u32 %v4900, 7
        %v4902 = vadd.s32 %v4901, 8
        %4903 = vset.pattern.permute.xlu0 %v4902
        %4904 = vperm.xlu0 %4903, %v4893
        %v4905 = vpop.permute.xlu0 %4904
        %v4906 = vperm.slane %v4657, 0
        %v4907 = vlaneseq
        %v4908 = vshrl.u32 %v4907, 7
        %4910 = vset.pattern.permute.xlu0 %v4908
        %4911 = vperm.xlu0 %4910, %v4906
        %v4912 = vpop.permute.xlu0 %4911
        %v4913 = vlaneseq
        %v4914 = vshrl.u32 %v4913, 7
        %v4915 = vadd.s32 %v4914, 8
        %4916 = vset.pattern.permute.xlu0 %v4915
        %4917 = vperm.xlu0 %4916, %v4906
        %v4918 = vpop.permute.xlu0 %4917
        %v4919 = vperm.slane %v4657, 1
        %v4920 = vlaneseq
        %v4921 = vshrl.u32 %v4920, 7
        %4923 = vset.pattern.permute.xlu0 %v4921
        %4924 = vperm.xlu0 %4923, %v4919
        %v4925 = vpop.permute.xlu0 %4924
        %v4926 = vlaneseq
        %v4927 = vshrl.u32 %v4926, 7
        %v4928 = vadd.s32 %v4927, 8
        %4929 = vset.pattern.permute.xlu0 %v4928
        %4930 = vperm.xlu0 %4929, %v4919
        %v4931 = vpop.permute.xlu0 %4930
        %v4932 = vperm.slane %v4657, 2
        %v4933 = vlaneseq
        %v4934 = vshrl.u32 %v4933, 7
        %4936 = vset.pattern.permute.xlu0 %v4934
        %4937 = vperm.xlu0 %4936, %v4932
        %v4938 = vpop.permute.xlu0 %4937
        %v4939 = vlaneseq
        %v4940 = vshrl.u32 %v4939, 7
        %v4941 = vadd.s32 %v4940, 8
        %4942 = vset.pattern.permute.xlu0 %v4941
        %4943 = vperm.xlu0 %4942, %v4932
        %v4944 = vpop.permute.xlu0 %4943
        %v4945 = vperm.slane %v4657, 3
        %v4946 = vlaneseq
        %v4947 = vshrl.u32 %v4946, 7
        %4949 = vset.pattern.permute.xlu0 %v4947
        %4950 = vperm.xlu0 %4949, %v4945
        %v4951 = vpop.permute.xlu0 %4950
        %v4952 = vlaneseq
        %v4953 = vshrl.u32 %v4952, 7
        %v4954 = vadd.s32 %v4953, 8
        %4955 = vset.pattern.permute.xlu0 %v4954
        %4956 = vperm.xlu0 %4955, %v4945
        %v4957 = vpop.permute.xlu0 %4956
        %v4958 = vperm.slane %v4657, 4
        %v4959 = vlaneseq
        %v4960 = vshrl.u32 %v4959, 7
        %4962 = vset.pattern.permute.xlu0 %v4960
        %4963 = vperm.xlu0 %4962, %v4958
        %v4964 = vpop.permute.xlu0 %4963
        %v4965 = vlaneseq
        %v4966 = vshrl.u32 %v4965, 7
        %v4967 = vadd.s32 %v4966, 8
        %4968 = vset.pattern.permute.xlu0 %v4967
        %4969 = vperm.xlu0 %4968, %v4958
        %v4970 = vpop.permute.xlu0 %4969
        %v4971 = vperm.slane %v4657, 5
        %v4972 = vlaneseq
        %v4973 = vshrl.u32 %v4972, 7
        %4975 = vset.pattern.permute.xlu0 %v4973
        %4976 = vperm.xlu0 %4975, %v4971
        %v4977 = vpop.permute.xlu0 %4976
        %v4978 = vlaneseq
        %v4979 = vshrl.u32 %v4978, 7
        %v4980 = vadd.s32 %v4979, 8
        %4981 = vset.pattern.permute.xlu0 %v4980
        %4982 = vperm.xlu0 %4981, %v4971
        %v4983 = vpop.permute.xlu0 %4982
        %v4984 = vperm.slane %v4657, 6
        %v4985 = vlaneseq
        %v4986 = vshrl.u32 %v4985, 7
        %4988 = vset.pattern.permute.xlu0 %v4986
        %4989 = vperm.xlu0 %4988, %v4984
        %v4990 = vpop.permute.xlu0 %4989
        %v4991 = vlaneseq
        %v4992 = vshrl.u32 %v4991, 7
        %v4993 = vadd.s32 %v4992, 8
        %4994 = vset.pattern.permute.xlu0 %v4993
        %4995 = vperm.xlu0 %4994, %v4984
        %v4996 = vpop.permute.xlu0 %4995
        %v4997 = vperm.slane %v4657, 7
        %v4998 = vlaneseq
        %v4999 = vshrl.u32 %v4998, 7
        %5001 = vset.pattern.permute.xlu0 %v4999
        %5002 = vperm.xlu0 %5001, %v4997
        %v5003 = vpop.permute.xlu0 %5002
        %v5004 = vlaneseq
        %v5005 = vshrl.u32 %v5004, 7
        %v5006 = vadd.s32 %v5005, 8
        %5007 = vset.pattern.permute.xlu0 %v5006
        %5008 = vperm.xlu0 %5007, %v4997
        %v5009 = vpop.permute.xlu0 %5008
        %v5042 = vmax.f32 %v2434, %v4808
        %v5043 = vmax.f32 %v2437, %v4814
        %v5044 = vmax.f32 %v2440, %v4821
        %v5045 = vmax.f32 %v2443, %v4827
        %v5046 = vmax.f32 %v2446, %v4834
        %v5047 = vmax.f32 %v2449, %v4840
        %v5048 = vmax.f32 %v2452, %v4847
        %v5049 = vmax.f32 %v2455, %v4853
        %v5050 = vmax.f32 %v2458, %v4860
        %v5051 = vmax.f32 %v2461, %v4866
        %v5052 = vmax.f32 %v2464, %v4873
        %v5053 = vmax.f32 %v2467, %v4879
        %v5054 = vmax.f32 %v2470, %v4886
        %v5055 = vmax.f32 %v2473, %v4892
        %v5056 = vmax.f32 %v2476, %v4899
        %v5057 = vmax.f32 %v2479, %v4905
        %v5058 = vmax.f32 %v2482, %v4912
        %v5059 = vmax.f32 %v2485, %v4918
        %v5060 = vmax.f32 %v2488, %v4925
        %v5061 = vmax.f32 %v2491, %v4931
        %v5062 = vmax.f32 %v2494, %v4938
        %v5063 = vmax.f32 %v2497, %v4944
        %v5064 = vmax.f32 %v2500, %v4951
        %v5065 = vmax.f32 %v2503, %v4957
        %v5066 = vmax.f32 %v2506, %v4964
        %v5067 = vmax.f32 %v2509, %v4970
        %v5068 = vmax.f32 %v2512, %v4977
        %v5069 = vmax.f32 %v2515, %v4983
        %v5070 = vmax.f32 %v2518, %v4990
        %v5071 = vmax.f32 %v2521, %v4996
        %v5072 = vmax.f32 %v2524, %v5003
        %v5073 = vmax.f32 %v2527, %v5009
        %v5074 = vsub.f32 %v2434, %v5042
        %v5075 = vsub.f32 %v2437, %v5043
        %v5076 = vsub.f32 %v2440, %v5044
        %v5077 = vsub.f32 %v2443, %v5045
        %v5078 = vsub.f32 %v2446, %v5046
        %v5079 = vsub.f32 %v2449, %v5047
        %v5080 = vsub.f32 %v2452, %v5048
        %v5081 = vsub.f32 %v2455, %v5049
        %v5082 = vsub.f32 %v2458, %v5050
        %v5083 = vsub.f32 %v2461, %v5051
        %v5084 = vsub.f32 %v2464, %v5052
        %v5085 = vsub.f32 %v2467, %v5053
        %v5086 = vsub.f32 %v2470, %v5054
        %v5087 = vsub.f32 %v2473, %v5055
        %v5088 = vsub.f32 %v2476, %v5056
        %v5089 = vsub.f32 %v2479, %v5057
        %v5090 = vsub.f32 %v2482, %v5058
        %v5091 = vsub.f32 %v2485, %v5059
        %v5092 = vsub.f32 %v2488, %v5060
        %v5093 = vsub.f32 %v2491, %v5061
        %v5094 = vsub.f32 %v2494, %v5062
        %v5095 = vsub.f32 %v2497, %v5063
        %v5096 = vsub.f32 %v2500, %v5064
        %v5097 = vsub.f32 %v2503, %v5065
        %v5098 = vsub.f32 %v2506, %v5066
        %v5099 = vsub.f32 %v2509, %v5067
        %v5100 = vsub.f32 %v2512, %v5068
        %v5101 = vsub.f32 %v2515, %v5069
        %v5102 = vsub.f32 %v2518, %v5070
        %v5103 = vsub.f32 %v2521, %v5071
        %v5104 = vsub.f32 %v2524, %v5072
        %v5105 = vsub.f32 %v2527, %v5073
        %v5106 = vmul.f32 %v5074, 1.442695
        %v5107 = vpow.pop %v5106
        %v5108 = vmul.f32 %v5075, 1.442695
        %v5109 = vpow.pop %v5108
        %v5110 = vmul.f32 %v5076, 1.442695
        %v5111 = vpow.pop %v5110
        %v5112 = vmul.f32 %v5077, 1.442695
        %v5113 = vpow.pop %v5112
        %v5114 = vmul.f32 %v5078, 1.442695
        %v5115 = vpow.pop %v5114
        %v5116 = vmul.f32 %v5079, 1.442695
        %v5117 = vpow.pop %v5116
        %v5118 = vmul.f32 %v5080, 1.442695
        %v5119 = vpow.pop %v5118
        %v5120 = vmul.f32 %v5081, 1.442695
        %v5121 = vpow.pop %v5120
        %v5122 = vmul.f32 %v5082, 1.442695
        %v5123 = vpow.pop %v5122
        %v5124 = vmul.f32 %v5083, 1.442695
        %v5125 = vpow.pop %v5124
        %v5126 = vmul.f32 %v5084, 1.442695
        %v5127 = vpow.pop %v5126
        %v5128 = vmul.f32 %v5085, 1.442695
        %v5129 = vpow.pop %v5128
        %v5130 = vmul.f32 %v5086, 1.442695
        %v5131 = vpow.pop %v5130
        %v5132 = vmul.f32 %v5087, 1.442695
        %v5133 = vpow.pop %v5132
        %v5134 = vmul.f32 %v5088, 1.442695
        %v5135 = vpow.pop %v5134
        %v5136 = vmul.f32 %v5089, 1.442695
        %v5137 = vpow.pop %v5136
        %v5138 = vmul.f32 %v5090, 1.442695
        %v5139 = vpow.pop %v5138
        %v5140 = vmul.f32 %v5091, 1.442695
        %v5141 = vpow.pop %v5140
        %v5142 = vmul.f32 %v5092, 1.442695
        %v5143 = vpow.pop %v5142
        %v5144 = vmul.f32 %v5093, 1.442695
        %v5145 = vpow.pop %v5144
        %v5146 = vmul.f32 %v5094, 1.442695
        %v5147 = vpow.pop %v5146
        %v5148 = vmul.f32 %v5095, 1.442695
        %v5149 = vpow.pop %v5148
        %v5150 = vmul.f32 %v5096, 1.442695
        %v5151 = vpow.pop %v5150
        %v5152 = vmul.f32 %v5097, 1.442695
        %v5153 = vpow.pop %v5152
        %v5154 = vmul.f32 %v5098, 1.442695
        %v5155 = vpow.pop %v5154
        %v5156 = vmul.f32 %v5099, 1.442695
        %v5157 = vpow.pop %v5156
        %v5158 = vmul.f32 %v5100, 1.442695
        %v5159 = vpow.pop %v5158
        %v5160 = vmul.f32 %v5101, 1.442695
        %v5161 = vpow.pop %v5160
        %v5162 = vmul.f32 %v5102, 1.442695
        %v5163 = vpow.pop %v5162
        %v5164 = vmul.f32 %v5103, 1.442695
        %v5165 = vpow.pop %v5164
        %v5166 = vmul.f32 %v5104, 1.442695
        %v5167 = vpow.pop %v5166
        %v5168 = vmul.f32 %v5105, 1.442695
        %v5169 = vpow.pop %v5168
        %5202 = vset.pattern.permute.xlu0 0
        %5203 = vperm.xlu0 %5202, %v5042
        %v5204 = vpop.permute.xlu0 %5203
        %5205 = vset.pattern.permute.xlu0 0
        %5206 = vperm.xlu0 %5205, %v5043
        %v5207 = vpop.permute.xlu0 %5206
        %5208 = vset.pattern.permute.xlu0 0
        %5209 = vperm.xlu0 %5208, %v5044
        %v5210 = vpop.permute.xlu0 %5209
        %5211 = vset.pattern.permute.xlu0 0
        %5212 = vperm.xlu0 %5211, %v5045
        %v5213 = vpop.permute.xlu0 %5212
        %5214 = vset.pattern.permute.xlu0 0
        %5215 = vperm.xlu0 %5214, %v5046
        %v5216 = vpop.permute.xlu0 %5215
        %5217 = vset.pattern.permute.xlu0 0
        %5218 = vperm.xlu0 %5217, %v5047
        %v5219 = vpop.permute.xlu0 %5218
        %5220 = vset.pattern.permute.xlu0 0
        %5221 = vperm.xlu0 %5220, %v5048
        %v5222 = vpop.permute.xlu0 %5221
        %5223 = vset.pattern.permute.xlu0 0
        %5224 = vperm.xlu0 %5223, %v5049
        %v5225 = vpop.permute.xlu0 %5224
        %5226 = vset.pattern.permute.xlu0 0
        %5227 = vperm.xlu0 %5226, %v5050
        %v5228 = vpop.permute.xlu0 %5227
        %5229 = vset.pattern.permute.xlu0 0
        %5230 = vperm.xlu0 %5229, %v5051
        %v5231 = vpop.permute.xlu0 %5230
        %5232 = vset.pattern.permute.xlu0 0
        %5233 = vperm.xlu0 %5232, %v5052
        %v5234 = vpop.permute.xlu0 %5233
        %5235 = vset.pattern.permute.xlu0 0
        %5236 = vperm.xlu0 %5235, %v5053
        %v5237 = vpop.permute.xlu0 %5236
        %5238 = vset.pattern.permute.xlu0 0
        %5239 = vperm.xlu0 %5238, %v5054
        %v5240 = vpop.permute.xlu0 %5239
        %5241 = vset.pattern.permute.xlu0 0
        %5242 = vperm.xlu0 %5241, %v5055
        %v5243 = vpop.permute.xlu0 %5242
        %5244 = vset.pattern.permute.xlu0 0
        %5245 = vperm.xlu0 %5244, %v5056
        %v5246 = vpop.permute.xlu0 %5245
        %5247 = vset.pattern.permute.xlu0 0
        %5248 = vperm.xlu0 %5247, %v5057
        %v5249 = vpop.permute.xlu0 %5248
        %5250 = vset.pattern.permute.xlu0 0
        %5251 = vperm.xlu0 %5250, %v5058
        %v5252 = vpop.permute.xlu0 %5251
        %5253 = vset.pattern.permute.xlu0 0
        %5254 = vperm.xlu0 %5253, %v5059
        %v5255 = vpop.permute.xlu0 %5254
        %5256 = vset.pattern.permute.xlu0 0
        %5257 = vperm.xlu0 %5256, %v5060
        %v5258 = vpop.permute.xlu0 %5257
        %5259 = vset.pattern.permute.xlu0 0
        %5260 = vperm.xlu0 %5259, %v5061
        %v5261 = vpop.permute.xlu0 %5260
        %5262 = vset.pattern.permute.xlu0 0
        %5263 = vperm.xlu0 %5262, %v5062
        %v5264 = vpop.permute.xlu0 %5263
        %5265 = vset.pattern.permute.xlu0 0
        %5266 = vperm.xlu0 %5265, %v5063
        %v5267 = vpop.permute.xlu0 %5266
        %5268 = vset.pattern.permute.xlu0 0
        %5269 = vperm.xlu0 %5268, %v5064
        %v5270 = vpop.permute.xlu0 %5269
        %5271 = vset.pattern.permute.xlu0 0
        %5272 = vperm.xlu0 %5271, %v5065
        %v5273 = vpop.permute.xlu0 %5272
        %5274 = vset.pattern.permute.xlu0 0
        %5275 = vperm.xlu0 %5274, %v5066
        %v5276 = vpop.permute.xlu0 %5275
        %5277 = vset.pattern.permute.xlu0 0
        %5278 = vperm.xlu0 %5277, %v5067
        %v5279 = vpop.permute.xlu0 %5278
        %5280 = vset.pattern.permute.xlu0 0
        %5281 = vperm.xlu0 %5280, %v5068
        %v5282 = vpop.permute.xlu0 %5281
        %5283 = vset.pattern.permute.xlu0 0
        %5284 = vperm.xlu0 %5283, %v5069
        %v5285 = vpop.permute.xlu0 %5284
        %5286 = vset.pattern.permute.xlu0 0
        %5287 = vperm.xlu0 %5286, %v5070
        %v5288 = vpop.permute.xlu0 %5287
        %5289 = vset.pattern.permute.xlu0 0
        %5290 = vperm.xlu0 %5289, %v5071
        %v5291 = vpop.permute.xlu0 %5290
        %5292 = vset.pattern.permute.xlu0 0
        %5293 = vperm.xlu0 %5292, %v5072
        %v5294 = vpop.permute.xlu0 %5293
        %5295 = vset.pattern.permute.xlu0 0
        %5296 = vperm.xlu0 %5295, %v5073
        %v5297 = vpop.permute.xlu0 %5296
        %v5298 = vperm.slane %v5204, %v3748
        %v5299 = vperm.slane %v5207, %v4568
        %v5300 = vsel %vm4570, %v5299, %v5298
        %v5301 = vperm.slane %v5210, %v3748
        %v5302 = vperm.slane %v5213, %v4568
        %v5303 = vsel %vm4570, %v5302, %v5301
        %v5304 = vperm.slane %v5216, %v3748
        %v5305 = vperm.slane %v5219, %v4568
        %v5306 = vsel %vm4570, %v5305, %v5304
        %v5307 = vperm.slane %v5222, %v3748
        %v5308 = vperm.slane %v5225, %v4568
        %v5309 = vsel %vm4570, %v5308, %v5307
        %v5310 = vperm.slane %v5228, %v3748
        %v5311 = vperm.slane %v5231, %v4568
        %v5312 = vsel %vm4570, %v5311, %v5310
        %v5313 = vperm.slane %v5234, %v3748
        %v5314 = vperm.slane %v5237, %v4568
        %v5315 = vsel %vm4570, %v5314, %v5313
        %v5316 = vperm.slane %v5240, %v3748
        %v5317 = vperm.slane %v5243, %v4568
        %v5318 = vsel %vm4570, %v5317, %v5316
        %v5319 = vperm.slane %v5246, %v3748
        %v5320 = vperm.slane %v5249, %v4568
        %v5321 = vsel %vm4570, %v5320, %v5319
        %v5322 = vperm.slane %v5252, %v3748
        %v5323 = vperm.slane %v5255, %v4568
        %v5324 = vsel %vm4570, %v5323, %v5322
        %v5325 = vperm.slane %v5258, %v3748
        %v5326 = vperm.slane %v5261, %v4568
        %v5327 = vsel %vm4570, %v5326, %v5325
        %v5328 = vperm.slane %v5264, %v3748
        %v5329 = vperm.slane %v5267, %v4568
        %v5330 = vsel %vm4570, %v5329, %v5328
        %v5331 = vperm.slane %v5270, %v3748
        %v5332 = vperm.slane %v5273, %v4568
        %v5333 = vsel %vm4570, %v5332, %v5331
        %v5334 = vperm.slane %v5276, %v3748
        %v5335 = vperm.slane %v5279, %v4568
        %v5336 = vsel %vm4570, %v5335, %v5334
        %v5337 = vperm.slane %v5282, %v3748
        %v5338 = vperm.slane %v5285, %v4568
        %v5339 = vsel %vm4570, %v5338, %v5337
        %v5340 = vperm.slane %v5288, %v3748
        %v5341 = vperm.slane %v5291, %v4568
        %v5342 = vsel %vm4570, %v5341, %v5340
        %v5343 = vperm.slane %v5294, %v3748
        %v5344 = vperm.slane %v5297, %v4568
        %v5345 = vsel %vm4570, %v5344, %v5343
        %v5346 = vsel %vm4617, %v5303, %v5300
        %v5347 = vsel %vm4619, %v5306, %v5346
        %v5348 = vsel %vm4621, %v5309, %v5347
        %v5349 = vsel %vm4623, %v5312, %v5348
        %v5350 = vsel %vm4625, %v5315, %v5349
        %v5351 = vsel %vm4627, %v5318, %v5350
        %v5352 = vsel %vm4629, %v5321, %v5351
        %v5353 = vsel %vm4617, %v5327, %v5324
        %v5354 = vsel %vm4619, %v5330, %v5353
        %v5355 = vsel %vm4621, %v5333, %v5354
        %v5356 = vsel %vm4623, %v5336, %v5355
        %v5357 = vsel %vm4625, %v5339, %v5356
        %v5358 = vsel %vm4627, %v5342, %v5357
        %v5359 = vsel %vm4629, %v5345, %v5358
        %v5362 = vsub.f32 %v4656, %v5352
        %v5363 = vsub.f32 %v4657, %v5359
        %v5364 = vmul.f32 %v5362, 1.442695
        %v5365 = vpow.pop %v5364
        %v5366 = vmul.f32 %v5363, 1.442695
        %v5367 = vpow.pop %v5366
        %s5368 = sld [smem:[#allocation2]]
        %v5369 = vmul.f32 %v5107, %v2626
        %v5370 = vmul.f32 %v5109, %v2629
        %v5371 = vmul.f32 %v5111, %v2632
        %v5372 = vmul.f32 %v5113, %v2635
        %v5373 = vmul.f32 %v5115, %v2638
        %v5374 = vmul.f32 %v5117, %v2641
        %v5375 = vmul.f32 %v5119, %v2644
        %v5376 = vmul.f32 %v5121, %v2647
        %v5377 = vmul.f32 %v5123, %v2650
        %v5378 = vmul.f32 %v5125, %v2653
        %v5379 = vmul.f32 %v5127, %v2656
        %v5380 = vmul.f32 %v5129, %v2659
        %v5381 = vmul.f32 %v5131, %v2662
        %v5382 = vmul.f32 %v5133, %v2665
        %v5383 = vmul.f32 %v5135, %v2668
        %v5384 = vmul.f32 %v5137, %v2671
        %v5385 = vmul.f32 %v5139, %v2674
        %v5386 = vmul.f32 %v5141, %v2677
        %v5387 = vmul.f32 %v5143, %v2680
        %v5388 = vmul.f32 %v5145, %v2683
        %v5389 = vmul.f32 %v5147, %v2686
        %v5390 = vmul.f32 %v5149, %v2689
        %v5391 = vmul.f32 %v5151, %v2692
        %v5392 = vmul.f32 %v5153, %v2695
        %v5393 = vmul.f32 %v5155, %v2698
        %v5394 = vmul.f32 %v5157, %v2701
        %v5395 = vmul.f32 %v5159, %v2704
        %v5396 = vmul.f32 %v5161, %v2707
        %v5397 = vmul.f32 %v5163, %v2710
        %v5398 = vmul.f32 %v5165, %v2713
        %v5399 = vmul.f32 %v5167, %v2716
        %v5400 = vmul.f32 %v5169, %v2719
        %v5401 = vmul.f32 %v5365, %v4784
        %v5402 = vmul.f32 %v5367, %v4785
        %v5405 = vperm.slane %v5401, 0
        %v5406 = vlaneseq
        %v5407 = vshrl.u32 %v5406, 7
        %5409 = vset.pattern.permute.xlu0 %v5407
        %5410 = vperm.xlu0 %5409, %v5405
        %v5411 = vpop.permute.xlu0 %5410
        %v5412 = vlaneseq
        %v5413 = vshrl.u32 %v5412, 7
        %v5414 = vadd.s32 %v5413, 8
        %5415 = vset.pattern.permute.xlu0 %v5414
        %5416 = vperm.xlu0 %5415, %v5405
        %v5417 = vpop.permute.xlu0 %5416
        %v5418 = vperm.slane %v5401, 1
        %v5419 = vlaneseq
        %v5420 = vshrl.u32 %v5419, 7
        %5422 = vset.pattern.permute.xlu0 %v5420
        %5423 = vperm.xlu0 %5422, %v5418
        %v5424 = vpop.permute.xlu0 %5423
        %v5425 = vlaneseq
        %v5426 = vshrl.u32 %v5425, 7
        %v5427 = vadd.s32 %v5426, 8
        %5428 = vset.pattern.permute.xlu0 %v5427
        %5429 = vperm.xlu0 %5428, %v5418
        %v5430 = vpop.permute.xlu0 %5429
        %v5431 = vperm.slane %v5401, 2
        %v5432 = vlaneseq
        %v5433 = vshrl.u32 %v5432, 7
        %5435 = vset.pattern.permute.xlu0 %v5433
        %5436 = vperm.xlu0 %5435, %v5431
        %v5437 = vpop.permute.xlu0 %5436
        %v5438 = vlaneseq
        %v5439 = vshrl.u32 %v5438, 7
        %v5440 = vadd.s32 %v5439, 8
        %5441 = vset.pattern.permute.xlu0 %v5440
        %5442 = vperm.xlu0 %5441, %v5431
        %v5443 = vpop.permute.xlu0 %5442
        %v5444 = vperm.slane %v5401, 3
        %v5445 = vlaneseq
        %v5446 = vshrl.u32 %v5445, 7
        %5448 = vset.pattern.permute.xlu0 %v5446
        %5449 = vperm.xlu0 %5448, %v5444
        %v5450 = vpop.permute.xlu0 %5449
        %v5451 = vlaneseq
        %v5452 = vshrl.u32 %v5451, 7
        %v5453 = vadd.s32 %v5452, 8
        %5454 = vset.pattern.permute.xlu0 %v5453
        %5455 = vperm.xlu0 %5454, %v5444
        %v5456 = vpop.permute.xlu0 %5455
        %v5457 = vperm.slane %v5401, 4
        %v5458 = vlaneseq
        %v5459 = vshrl.u32 %v5458, 7
        %5461 = vset.pattern.permute.xlu0 %v5459
        %5462 = vperm.xlu0 %5461, %v5457
        %v5463 = vpop.permute.xlu0 %5462
        %v5464 = vlaneseq
        %v5465 = vshrl.u32 %v5464, 7
        %v5466 = vadd.s32 %v5465, 8
        %5467 = vset.pattern.permute.xlu0 %v5466
        %5468 = vperm.xlu0 %5467, %v5457
        %v5469 = vpop.permute.xlu0 %5468
        %v5470 = vperm.slane %v5401, 5
        %v5471 = vlaneseq
        %v5472 = vshrl.u32 %v5471, 7
        %5474 = vset.pattern.permute.xlu0 %v5472
        %5475 = vperm.xlu0 %5474, %v5470
        %v5476 = vpop.permute.xlu0 %5475
        %v5477 = vlaneseq
        %v5478 = vshrl.u32 %v5477, 7
        %v5479 = vadd.s32 %v5478, 8
        %5480 = vset.pattern.permute.xlu0 %v5479
        %5481 = vperm.xlu0 %5480, %v5470
        %v5482 = vpop.permute.xlu0 %5481
        %v5483 = vperm.slane %v5401, 6
        %v5484 = vlaneseq
        %v5485 = vshrl.u32 %v5484, 7
        %5487 = vset.pattern.permute.xlu0 %v5485
        %5488 = vperm.xlu0 %5487, %v5483
        %v5489 = vpop.permute.xlu0 %5488
        %v5490 = vlaneseq
        %v5491 = vshrl.u32 %v5490, 7
        %v5492 = vadd.s32 %v5491, 8
        %5493 = vset.pattern.permute.xlu0 %v5492
        %5494 = vperm.xlu0 %5493, %v5483
        %v5495 = vpop.permute.xlu0 %5494
        %v5496 = vperm.slane %v5401, 7
        %v5497 = vlaneseq
        %v5498 = vshrl.u32 %v5497, 7
        %5500 = vset.pattern.permute.xlu0 %v5498
        %5501 = vperm.xlu0 %5500, %v5496
        %v5502 = vpop.permute.xlu0 %5501
        %v5503 = vlaneseq
        %v5504 = vshrl.u32 %v5503, 7
        %v5505 = vadd.s32 %v5504, 8
        %5506 = vset.pattern.permute.xlu0 %v5505
        %5507 = vperm.xlu0 %5506, %v5496
        %v5508 = vpop.permute.xlu0 %5507
        %v5509 = vperm.slane %v5402, 0
        %v5510 = vlaneseq
        %v5511 = vshrl.u32 %v5510, 7
        %5513 = vset.pattern.permute.xlu0 %v5511
        %5514 = vperm.xlu0 %5513, %v5509
        %v5515 = vpop.permute.xlu0 %5514
        %v5516 = vlaneseq
        %v5517 = vshrl.u32 %v5516, 7
        %v5518 = vadd.s32 %v5517, 8
        %5519 = vset.pattern.permute.xlu0 %v5518
        %5520 = vperm.xlu0 %5519, %v5509
        %v5521 = vpop.permute.xlu0 %5520
        %v5522 = vperm.slane %v5402, 1
        %v5523 = vlaneseq
        %v5524 = vshrl.u32 %v5523, 7
        %5526 = vset.pattern.permute.xlu0 %v5524
        %5527 = vperm.xlu0 %5526, %v5522
        %v5528 = vpop.permute.xlu0 %5527
        %v5529 = vlaneseq
        %v5530 = vshrl.u32 %v5529, 7
        %v5531 = vadd.s32 %v5530, 8
        %5532 = vset.pattern.permute.xlu0 %v5531
        %5533 = vperm.xlu0 %5532, %v5522
        %v5534 = vpop.permute.xlu0 %5533
        %v5535 = vperm.slane %v5402, 2
        %v5536 = vlaneseq
        %v5537 = vshrl.u32 %v5536, 7
        %5539 = vset.pattern.permute.xlu0 %v5537
        %5540 = vperm.xlu0 %5539, %v5535
        %v5541 = vpop.permute.xlu0 %5540
        %v5542 = vlaneseq
        %v5543 = vshrl.u32 %v5542, 7
        %v5544 = vadd.s32 %v5543, 8
        %5545 = vset.pattern.permute.xlu0 %v5544
        %5546 = vperm.xlu0 %5545, %v5535
        %v5547 = vpop.permute.xlu0 %5546
        %v5548 = vperm.slane %v5402, 3
        %v5549 = vlaneseq
        %v5550 = vshrl.u32 %v5549, 7
        %5552 = vset.pattern.permute.xlu0 %v5550
        %5553 = vperm.xlu0 %5552, %v5548
        %v5554 = vpop.permute.xlu0 %5553
        %v5555 = vlaneseq
        %v5556 = vshrl.u32 %v5555, 7
        %v5557 = vadd.s32 %v5556, 8
        %5558 = vset.pattern.permute.xlu0 %v5557
        %5559 = vperm.xlu0 %5558, %v5548
        %v5560 = vpop.permute.xlu0 %5559
        %v5561 = vperm.slane %v5402, 4
        %v5562 = vlaneseq
        %v5563 = vshrl.u32 %v5562, 7
        %5565 = vset.pattern.permute.xlu0 %v5563
        %5566 = vperm.xlu0 %5565, %v5561
        %v5567 = vpop.permute.xlu0 %5566
        %v5568 = vlaneseq
        %v5569 = vshrl.u32 %v5568, 7
        %v5570 = vadd.s32 %v5569, 8
        %5571 = vset.pattern.permute.xlu0 %v5570
        %5572 = vperm.xlu0 %5571, %v5561
        %v5573 = vpop.permute.xlu0 %5572
        %v5574 = vperm.slane %v5402, 5
        %v5575 = vlaneseq
        %v5576 = vshrl.u32 %v5575, 7
        %5578 = vset.pattern.permute.xlu0 %v5576
        %5579 = vperm.xlu0 %5578, %v5574
        %v5580 = vpop.permute.xlu0 %5579
        %v5581 = vlaneseq
        %v5582 = vshrl.u32 %v5581, 7
        %v5583 = vadd.s32 %v5582, 8
        %5584 = vset.pattern.permute.xlu0 %v5583
        %5585 = vperm.xlu0 %5584, %v5574
        %v5586 = vpop.permute.xlu0 %5585
        %v5587 = vperm.slane %v5402, 6
        %v5588 = vlaneseq
        %v5589 = vshrl.u32 %v5588, 7
        %5591 = vset.pattern.permute.xlu0 %v5589
        %5592 = vperm.xlu0 %5591, %v5587
        %v5593 = vpop.permute.xlu0 %5592
        %v5594 = vlaneseq
        %v5595 = vshrl.u32 %v5594, 7
        %v5596 = vadd.s32 %v5595, 8
        %5597 = vset.pattern.permute.xlu0 %v5596
        %5598 = vperm.xlu0 %5597, %v5587
        %v5599 = vpop.permute.xlu0 %5598
        %v5600 = vperm.slane %v5402, 7
        %v5601 = vlaneseq
        %v5602 = vshrl.u32 %v5601, 7
        %5604 = vset.pattern.permute.xlu0 %v5602
        %5605 = vperm.xlu0 %5604, %v5600
        %v5606 = vpop.permute.xlu0 %5605
        %v5607 = vlaneseq
        %v5608 = vshrl.u32 %v5607, 7
        %v5609 = vadd.s32 %v5608, 8
        %5610 = vset.pattern.permute.xlu0 %v5609
        %5611 = vperm.xlu0 %5610, %v5600
        %v5612 = vpop.permute.xlu0 %5611
        %v5645 = vadd.f32 %v5369, %v5411
        %v5646 = vadd.f32 %v5370, %v5417
        %v5647 = vadd.f32 %v5371, %v5424
        %v5648 = vadd.f32 %v5372, %v5430
        %v5649 = vadd.f32 %v5373, %v5437
        %v5650 = vadd.f32 %v5374, %v5443
        %v5651 = vadd.f32 %v5375, %v5450
        %v5652 = vadd.f32 %v5376, %v5456
        %v5653 = vadd.f32 %v5377, %v5463
        %v5654 = vadd.f32 %v5378, %v5469
        %v5655 = vadd.f32 %v5379, %v5476
        %v5656 = vadd.f32 %v5380, %v5482
        %v5657 = vadd.f32 %v5381, %v5489
        %v5658 = vadd.f32 %v5382, %v5495
        %v5659 = vadd.f32 %v5383, %v5502
        %v5660 = vadd.f32 %v5384, %v5508
        %v5661 = vadd.f32 %v5385, %v5515
        %v5662 = vadd.f32 %v5386, %v5521
        %v5663 = vadd.f32 %v5387, %v5528
        %v5664 = vadd.f32 %v5388, %v5534
        %v5665 = vadd.f32 %v5389, %v5541
        %v5666 = vadd.f32 %v5390, %v5547
        %v5667 = vadd.f32 %v5391, %v5554
        %v5668 = vadd.f32 %v5392, %v5560
        %v5669 = vadd.f32 %v5393, %v5567
        %v5670 = vadd.f32 %v5394, %v5573
        %v5671 = vadd.f32 %v5395, %v5580
        %v5672 = vadd.f32 %v5396, %v5586
        %v5673 = vadd.f32 %v5397, %v5593
        %v5674 = vadd.f32 %v5398, %v5599
        %v5675 = vadd.f32 %v5399, %v5606
        %v5676 = vadd.f32 %v5400, %v5612
        %v5677 = vstv %s5368
        %v5678 = vrcp.pop %v5645
        %v5679 = vmul.f32 %v5645, %v5678
        %v5680 = vsub.f32 1.0, %v5679
        %v5681 = vmul.f32 %v5678, %v5680
        %v5682 = vadd.f32 %v5678, %v5681
        %vm5683 = vweird.f32 %v5645
        %vm5684 = vweird.f32 %v5678
        %vm5685 = vmor %vm5683, %vm5684
        %v5686 = vsel %vm5685, %v5678, %v5682
        %v5687 = vand.u32 2147483647, %v5645
        %vm5688 = vcmp.eq.f32.partialorder %v5687, 8.507059e+37
        %v5689 = vand.u32 %v5645, 2147483648
        %v5690 = vor.u32 1.1754944e-38, %v5689
        %v5691 = vsel %vm5688, %v5690, %v5686
        %v5692 = vmul.f32 %v5677, %v5691
        %v5693 = vrcp.pop %v5646
        %v5694 = vmul.f32 %v5646, %v5693
        %v5695 = vsub.f32 1.0, %v5694
        %v5696 = vmul.f32 %v5693, %v5695
        %v5697 = vadd.f32 %v5693, %v5696
        %vm5698 = vweird.f32 %v5646
        %vm5699 = vweird.f32 %v5693
        %vm5700 = vmor %vm5698, %vm5699
        %v5701 = vsel %vm5700, %v5693, %v5697
        %v5702 = vand.u32 2147483647, %v5646
        %vm5703 = vcmp.eq.f32.partialorder %v5702, 8.507059e+37
        %v5704 = vand.u32 %v5646, 2147483648
        %v5705 = vor.u32 1.1754944e-38, %v5704
        %v5706 = vsel %vm5703, %v5705, %v5701
        %v5707 = vmul.f32 %v5677, %v5706
        %v5708 = vrcp.pop %v5647
        %v5709 = vmul.f32 %v5647, %v5708
        %v5710 = vsub.f32 1.0, %v5709
        %v5711 = vmul.f32 %v5708, %v5710
        %v5712 = vadd.f32 %v5708, %v5711
        %vm5713 = vweird.f32 %v5647
        %vm5714 = vweird.f32 %v5708
        %vm5715 = vmor %vm5713, %vm5714
        %v5716 = vsel %vm5715, %v5708, %v5712
        %v5717 = vand.u32 2147483647, %v5647
        %vm5718 = vcmp.eq.f32.partialorder %v5717, 8.507059e+37
        %v5719 = vand.u32 %v5647, 2147483648
        %v5720 = vor.u32 1.1754944e-38, %v5719
        %v5721 = vsel %vm5718, %v5720, %v5716
        %v5722 = vmul.f32 %v5677, %v5721
        %v5723 = vrcp.pop %v5648
        %v5724 = vmul.f32 %v5648, %v5723
        %v5725 = vsub.f32 1.0, %v5724
        %v5726 = vmul.f32 %v5723, %v5725
        %v5727 = vadd.f32 %v5723, %v5726
        %vm5728 = vweird.f32 %v5648
        %vm5729 = vweird.f32 %v5723
        %vm5730 = vmor %vm5728, %vm5729
        %v5731 = vsel %vm5730, %v5723, %v5727
        %v5732 = vand.u32 2147483647, %v5648
        %vm5733 = vcmp.eq.f32.partialorder %v5732, 8.507059e+37
        %v5734 = vand.u32 %v5648, 2147483648
        %v5735 = vor.u32 1.1754944e-38, %v5734
        %v5736 = vsel %vm5733, %v5735, %v5731
        %v5737 = vmul.f32 %v5677, %v5736
        %v5738 = vrcp.pop %v5649
        %v5739 = vmul.f32 %v5649, %v5738
        %v5740 = vsub.f32 1.0, %v5739
        %v5741 = vmul.f32 %v5738, %v5740
        %v5742 = vadd.f32 %v5738, %v5741
        %vm5743 = vweird.f32 %v5649
        %vm5744 = vweird.f32 %v5738
        %vm5745 = vmor %vm5743, %vm5744
        %v5746 = vsel %vm5745, %v5738, %v5742
        %v5747 = vand.u32 2147483647, %v5649
        %vm5748 = vcmp.eq.f32.partialorder %v5747, 8.507059e+37
        %v5749 = vand.u32 %v5649, 2147483648
        %v5750 = vor.u32 1.1754944e-38, %v5749
        %v5751 = vsel %vm5748, %v5750, %v5746
        %v5752 = vmul.f32 %v5677, %v5751
        %v5753 = vrcp.pop %v5650
        %v5754 = vmul.f32 %v5650, %v5753
        %v5755 = vsub.f32 1.0, %v5754
        %v5756 = vmul.f32 %v5753, %v5755
        %v5757 = vadd.f32 %v5753, %v5756
        %vm5758 = vweird.f32 %v5650
        %vm5759 = vweird.f32 %v5753
        %vm5760 = vmor %vm5758, %vm5759
        %v5761 = vsel %vm5760, %v5753, %v5757
        %v5762 = vand.u32 2147483647, %v5650
        %vm5763 = vcmp.eq.f32.partialorder %v5762, 8.507059e+37
        %v5764 = vand.u32 %v5650, 2147483648
        %v5765 = vor.u32 1.1754944e-38, %v5764
        %v5766 = vsel %vm5763, %v5765, %v5761
        %v5767 = vmul.f32 %v5677, %v5766
        %v5768 = vrcp.pop %v5651
        %v5769 = vmul.f32 %v5651, %v5768
        %v5770 = vsub.f32 1.0, %v5769
        %v5771 = vmul.f32 %v5768, %v5770
        %v5772 = vadd.f32 %v5768, %v5771
        %vm5773 = vweird.f32 %v5651
        %vm5774 = vweird.f32 %v5768
        %vm5775 = vmor %vm5773, %vm5774
        %v5776 = vsel %vm5775, %v5768, %v5772
        %v5777 = vand.u32 2147483647, %v5651
        %vm5778 = vcmp.eq.f32.partialorder %v5777, 8.507059e+37
        %v5779 = vand.u32 %v5651, 2147483648
        %v5780 = vor.u32 1.1754944e-38, %v5779
        %v5781 = vsel %vm5778, %v5780, %v5776
        %v5782 = vmul.f32 %v5677, %v5781
        %v5783 = vrcp.pop %v5652
        %v5784 = vmul.f32 %v5652, %v5783
        %v5785 = vsub.f32 1.0, %v5784
        %v5786 = vmul.f32 %v5783, %v5785
        %v5787 = vadd.f32 %v5783, %v5786
        %vm5788 = vweird.f32 %v5652
        %vm5789 = vweird.f32 %v5783
        %vm5790 = vmor %vm5788, %vm5789
        %v5791 = vsel %vm5790, %v5783, %v5787
        %v5792 = vand.u32 2147483647, %v5652
        %vm5793 = vcmp.eq.f32.partialorder %v5792, 8.507059e+37
        %v5794 = vand.u32 %v5652, 2147483648
        %v5795 = vor.u32 1.1754944e-38, %v5794
        %v5796 = vsel %vm5793, %v5795, %v5791
        %v5797 = vmul.f32 %v5677, %v5796
        %v5798 = vrcp.pop %v5653
        %v5799 = vmul.f32 %v5653, %v5798
        %v5800 = vsub.f32 1.0, %v5799
        %v5801 = vmul.f32 %v5798, %v5800
        %v5802 = vadd.f32 %v5798, %v5801
        %vm5803 = vweird.f32 %v5653
        %vm5804 = vweird.f32 %v5798
        %vm5805 = vmor %vm5803, %vm5804
        %v5806 = vsel %vm5805, %v5798, %v5802
        %v5807 = vand.u32 2147483647, %v5653
        %vm5808 = vcmp.eq.f32.partialorder %v5807, 8.507059e+37
        %v5809 = vand.u32 %v5653, 2147483648
        %v5810 = vor.u32 1.1754944e-38, %v5809
        %v5811 = vsel %vm5808, %v5810, %v5806
        %v5812 = vmul.f32 %v5677, %v5811
        %v5813 = vrcp.pop %v5654
        %v5814 = vmul.f32 %v5654, %v5813
        %v5815 = vsub.f32 1.0, %v5814
        %v5816 = vmul.f32 %v5813, %v5815
        %v5817 = vadd.f32 %v5813, %v5816
        %vm5818 = vweird.f32 %v5654
        %vm5819 = vweird.f32 %v5813
        %vm5820 = vmor %vm5818, %vm5819
        %v5821 = vsel %vm5820, %v5813, %v5817
        %v5822 = vand.u32 2147483647, %v5654
        %vm5823 = vcmp.eq.f32.partialorder %v5822, 8.507059e+37
        %v5824 = vand.u32 %v5654, 2147483648
        %v5825 = vor.u32 1.1754944e-38, %v5824
        %v5826 = vsel %vm5823, %v5825, %v5821
        %v5827 = vmul.f32 %v5677, %v5826
        %v5828 = vrcp.pop %v5655
        %v5829 = vmul.f32 %v5655, %v5828
        %v5830 = vsub.f32 1.0, %v5829
        %v5831 = vmul.f32 %v5828, %v5830
        %v5832 = vadd.f32 %v5828, %v5831
        %vm5833 = vweird.f32 %v5655
        %vm5834 = vweird.f32 %v5828
        %vm5835 = vmor %vm5833, %vm5834
        %v5836 = vsel %vm5835, %v5828, %v5832
        %v5837 = vand.u32 2147483647, %v5655
        %vm5838 = vcmp.eq.f32.partialorder %v5837, 8.507059e+37
        %v5839 = vand.u32 %v5655, 2147483648
        %v5840 = vor.u32 1.1754944e-38, %v5839
        %v5841 = vsel %vm5838, %v5840, %v5836
        %v5842 = vmul.f32 %v5677, %v5841
        %v5843 = vrcp.pop %v5656
        %v5844 = vmul.f32 %v5656, %v5843
        %v5845 = vsub.f32 1.0, %v5844
        %v5846 = vmul.f32 %v5843, %v5845
        %v5847 = vadd.f32 %v5843, %v5846
        %vm5848 = vweird.f32 %v5656
        %vm5849 = vweird.f32 %v5843
        %vm5850 = vmor %vm5848, %vm5849
        %v5851 = vsel %vm5850, %v5843, %v5847
        %v5852 = vand.u32 2147483647, %v5656
        %vm5853 = vcmp.eq.f32.partialorder %v5852, 8.507059e+37
        %v5854 = vand.u32 %v5656, 2147483648
        %v5855 = vor.u32 1.1754944e-38, %v5854
        %v5856 = vsel %vm5853, %v5855, %v5851
        %v5857 = vmul.f32 %v5677, %v5856
        %v5858 = vrcp.pop %v5657
        %v5859 = vmul.f32 %v5657, %v5858
        %v5860 = vsub.f32 1.0, %v5859
        %v5861 = vmul.f32 %v5858, %v5860
        %v5862 = vadd.f32 %v5858, %v5861
        %vm5863 = vweird.f32 %v5657
        %vm5864 = vweird.f32 %v5858
        %vm5865 = vmor %vm5863, %vm5864
        %v5866 = vsel %vm5865, %v5858, %v5862
        %v5867 = vand.u32 2147483647, %v5657
        %vm5868 = vcmp.eq.f32.partialorder %v5867, 8.507059e+37
        %v5869 = vand.u32 %v5657, 2147483648
        %v5870 = vor.u32 1.1754944e-38, %v5869
        %v5871 = vsel %vm5868, %v5870, %v5866
        %v5872 = vmul.f32 %v5677, %v5871
        %v5873 = vrcp.pop %v5658
        %v5874 = vmul.f32 %v5658, %v5873
        %v5875 = vsub.f32 1.0, %v5874
        %v5876 = vmul.f32 %v5873, %v5875
        %v5877 = vadd.f32 %v5873, %v5876
        %vm5878 = vweird.f32 %v5658
        %vm5879 = vweird.f32 %v5873
        %vm5880 = vmor %vm5878, %vm5879
        %v5881 = vsel %vm5880, %v5873, %v5877
        %v5882 = vand.u32 2147483647, %v5658
        %vm5883 = vcmp.eq.f32.partialorder %v5882, 8.507059e+37
        %v5884 = vand.u32 %v5658, 2147483648
        %v5885 = vor.u32 1.1754944e-38, %v5884
        %v5886 = vsel %vm5883, %v5885, %v5881
        %v5887 = vmul.f32 %v5677, %v5886
        %v5888 = vrcp.pop %v5659
        %v5889 = vmul.f32 %v5659, %v5888
        %v5890 = vsub.f32 1.0, %v5889
        %v5891 = vmul.f32 %v5888, %v5890
        %v5892 = vadd.f32 %v5888, %v5891
        %vm5893 = vweird.f32 %v5659
        %vm5894 = vweird.f32 %v5888
        %vm5895 = vmor %vm5893, %vm5894
        %v5896 = vsel %vm5895, %v5888, %v5892
        %v5897 = vand.u32 2147483647, %v5659
        %vm5898 = vcmp.eq.f32.partialorder %v5897, 8.507059e+37
        %v5899 = vand.u32 %v5659, 2147483648
        %v5900 = vor.u32 1.1754944e-38, %v5899
        %v5901 = vsel %vm5898, %v5900, %v5896
        %v5902 = vmul.f32 %v5677, %v5901
        %v5903 = vrcp.pop %v5660
        %v5904 = vmul.f32 %v5660, %v5903
        %v5905 = vsub.f32 1.0, %v5904
        %v5906 = vmul.f32 %v5903, %v5905
        %v5907 = vadd.f32 %v5903, %v5906
        %vm5908 = vweird.f32 %v5660
        %vm5909 = vweird.f32 %v5903
        %vm5910 = vmor %vm5908, %vm5909
        %v5911 = vsel %vm5910, %v5903, %v5907
        %v5912 = vand.u32 2147483647, %v5660
        %vm5913 = vcmp.eq.f32.partialorder %v5912, 8.507059e+37
        %v5914 = vand.u32 %v5660, 2147483648
        %v5915 = vor.u32 1.1754944e-38, %v5914
        %v5916 = vsel %vm5913, %v5915, %v5911
        %v5917 = vmul.f32 %v5677, %v5916
        %v5918 = vrcp.pop %v5661
        %v5919 = vmul.f32 %v5661, %v5918
        %v5920 = vsub.f32 1.0, %v5919
        %v5921 = vmul.f32 %v5918, %v5920
        %v5922 = vadd.f32 %v5918, %v5921
        %vm5923 = vweird.f32 %v5661
        %vm5924 = vweird.f32 %v5918
        %vm5925 = vmor %vm5923, %vm5924
        %v5926 = vsel %vm5925, %v5918, %v5922
        %v5927 = vand.u32 2147483647, %v5661
        %vm5928 = vcmp.eq.f32.partialorder %v5927, 8.507059e+37
        %v5929 = vand.u32 %v5661, 2147483648
        %v5930 = vor.u32 1.1754944e-38, %v5929
        %v5931 = vsel %vm5928, %v5930, %v5926
        %v5932 = vmul.f32 %v5677, %v5931
        %v5933 = vrcp.pop %v5662
        %v5934 = vmul.f32 %v5662, %v5933
        %v5935 = vsub.f32 1.0, %v5934
        %v5936 = vmul.f32 %v5933, %v5935
        %v5937 = vadd.f32 %v5933, %v5936
        %vm5938 = vweird.f32 %v5662
        %vm5939 = vweird.f32 %v5933
        %vm5940 = vmor %vm5938, %vm5939
        %v5941 = vsel %vm5940, %v5933, %v5937
        %v5942 = vand.u32 2147483647, %v5662
        %vm5943 = vcmp.eq.f32.partialorder %v5942, 8.507059e+37
        %v5944 = vand.u32 %v5662, 2147483648
        %v5945 = vor.u32 1.1754944e-38, %v5944
        %v5946 = vsel %vm5943, %v5945, %v5941
        %v5947 = vmul.f32 %v5677, %v5946
        %v5948 = vrcp.pop %v5663
        %v5949 = vmul.f32 %v5663, %v5948
        %v5950 = vsub.f32 1.0, %v5949
        %v5951 = vmul.f32 %v5948, %v5950
        %v5952 = vadd.f32 %v5948, %v5951
        %vm5953 = vweird.f32 %v5663
        %vm5954 = vweird.f32 %v5948
        %vm5955 = vmor %vm5953, %vm5954
        %v5956 = vsel %vm5955, %v5948, %v5952
        %v5957 = vand.u32 2147483647, %v5663
        %vm5958 = vcmp.eq.f32.partialorder %v5957, 8.507059e+37
        %v5959 = vand.u32 %v5663, 2147483648
        %v5960 = vor.u32 1.1754944e-38, %v5959
        %v5961 = vsel %vm5958, %v5960, %v5956
        %v5962 = vmul.f32 %v5677, %v5961
        %v5963 = vrcp.pop %v5664
        %v5964 = vmul.f32 %v5664, %v5963
        %v5965 = vsub.f32 1.0, %v5964
        %v5966 = vmul.f32 %v5963, %v5965
        %v5967 = vadd.f32 %v5963, %v5966
        %vm5968 = vweird.f32 %v5664
        %vm5969 = vweird.f32 %v5963
        %vm5970 = vmor %vm5968, %vm5969
        %v5971 = vsel %vm5970, %v5963, %v5967
        %v5972 = vand.u32 2147483647, %v5664
        %vm5973 = vcmp.eq.f32.partialorder %v5972, 8.507059e+37
        %v5974 = vand.u32 %v5664, 2147483648
        %v5975 = vor.u32 1.1754944e-38, %v5974
        %v5976 = vsel %vm5973, %v5975, %v5971
        %v5977 = vmul.f32 %v5677, %v5976
        %v5978 = vrcp.pop %v5665
        %v5979 = vmul.f32 %v5665, %v5978
        %v5980 = vsub.f32 1.0, %v5979
        %v5981 = vmul.f32 %v5978, %v5980
        %v5982 = vadd.f32 %v5978, %v5981
        %vm5983 = vweird.f32 %v5665
        %vm5984 = vweird.f32 %v5978
        %vm5985 = vmor %vm5983, %vm5984
        %v5986 = vsel %vm5985, %v5978, %v5982
        %v5987 = vand.u32 2147483647, %v5665
        %vm5988 = vcmp.eq.f32.partialorder %v5987, 8.507059e+37
        %v5989 = vand.u32 %v5665, 2147483648
        %v5990 = vor.u32 1.1754944e-38, %v5989
        %v5991 = vsel %vm5988, %v5990, %v5986
        %v5992 = vmul.f32 %v5677, %v5991
        %v5993 = vrcp.pop %v5666
        %v5994 = vmul.f32 %v5666, %v5993
        %v5995 = vsub.f32 1.0, %v5994
        %v5996 = vmul.f32 %v5993, %v5995
        %v5997 = vadd.f32 %v5993, %v5996
        %vm5998 = vweird.f32 %v5666
        %vm5999 = vweird.f32 %v5993
        %vm6000 = vmor %vm5998, %vm5999
        %v6001 = vsel %vm6000, %v5993, %v5997
        %v6002 = vand.u32 2147483647, %v5666
        %vm6003 = vcmp.eq.f32.partialorder %v6002, 8.507059e+37
        %v6004 = vand.u32 %v5666, 2147483648
        %v6005 = vor.u32 1.1754944e-38, %v6004
        %v6006 = vsel %vm6003, %v6005, %v6001
        %v6007 = vmul.f32 %v5677, %v6006
        %v6008 = vrcp.pop %v5667
        %v6009 = vmul.f32 %v5667, %v6008
        %v6010 = vsub.f32 1.0, %v6009
        %v6011 = vmul.f32 %v6008, %v6010
        %v6012 = vadd.f32 %v6008, %v6011
        %vm6013 = vweird.f32 %v5667
        %vm6014 = vweird.f32 %v6008
        %vm6015 = vmor %vm6013, %vm6014
        %v6016 = vsel %vm6015, %v6008, %v6012
        %v6017 = vand.u32 2147483647, %v5667
        %vm6018 = vcmp.eq.f32.partialorder %v6017, 8.507059e+37
        %v6019 = vand.u32 %v5667, 2147483648
        %v6020 = vor.u32 1.1754944e-38, %v6019
        %v6021 = vsel %vm6018, %v6020, %v6016
        %v6022 = vmul.f32 %v5677, %v6021
        %v6023 = vrcp.pop %v5668
        %v6024 = vmul.f32 %v5668, %v6023
        %v6025 = vsub.f32 1.0, %v6024
        %v6026 = vmul.f32 %v6023, %v6025
        %v6027 = vadd.f32 %v6023, %v6026
        %vm6028 = vweird.f32 %v5668
        %vm6029 = vweird.f32 %v6023
        %vm6030 = vmor %vm6028, %vm6029
        %v6031 = vsel %vm6030, %v6023, %v6027
        %v6032 = vand.u32 2147483647, %v5668
        %vm6033 = vcmp.eq.f32.partialorder %v6032, 8.507059e+37
        %v6034 = vand.u32 %v5668, 2147483648
        %v6035 = vor.u32 1.1754944e-38, %v6034
        %v6036 = vsel %vm6033, %v6035, %v6031
        %v6037 = vmul.f32 %v5677, %v6036
        %v6038 = vrcp.pop %v5669
        %v6039 = vmul.f32 %v5669, %v6038
        %v6040 = vsub.f32 1.0, %v6039
        %v6041 = vmul.f32 %v6038, %v6040
        %v6042 = vadd.f32 %v6038, %v6041
        %vm6043 = vweird.f32 %v5669
        %vm6044 = vweird.f32 %v6038
        %vm6045 = vmor %vm6043, %vm6044
        %v6046 = vsel %vm6045, %v6038, %v6042
        %v6047 = vand.u32 2147483647, %v5669
        %vm6048 = vcmp.eq.f32.partialorder %v6047, 8.507059e+37
        %v6049 = vand.u32 %v5669, 2147483648
        %v6050 = vor.u32 1.1754944e-38, %v6049
        %v6051 = vsel %vm6048, %v6050, %v6046
        %v6052 = vmul.f32 %v5677, %v6051
        %v6053 = vrcp.pop %v5670
        %v6054 = vmul.f32 %v5670, %v6053
        %v6055 = vsub.f32 1.0, %v6054
        %v6056 = vmul.f32 %v6053, %v6055
        %v6057 = vadd.f32 %v6053, %v6056
        %vm6058 = vweird.f32 %v5670
        %vm6059 = vweird.f32 %v6053
        %vm6060 = vmor %vm6058, %vm6059
        %v6061 = vsel %vm6060, %v6053, %v6057
        %v6062 = vand.u32 2147483647, %v5670
        %vm6063 = vcmp.eq.f32.partialorder %v6062, 8.507059e+37
        %v6064 = vand.u32 %v5670, 2147483648
        %v6065 = vor.u32 1.1754944e-38, %v6064
        %v6066 = vsel %vm6063, %v6065, %v6061
        %v6067 = vmul.f32 %v5677, %v6066
        %v6068 = vrcp.pop %v5671
        %v6069 = vmul.f32 %v5671, %v6068
        %v6070 = vsub.f32 1.0, %v6069
        %v6071 = vmul.f32 %v6068, %v6070
        %v6072 = vadd.f32 %v6068, %v6071
        %vm6073 = vweird.f32 %v5671
        %vm6074 = vweird.f32 %v6068
        %vm6075 = vmor %vm6073, %vm6074
        %v6076 = vsel %vm6075, %v6068, %v6072
        %v6077 = vand.u32 2147483647, %v5671
        %vm6078 = vcmp.eq.f32.partialorder %v6077, 8.507059e+37
        %v6079 = vand.u32 %v5671, 2147483648
        %v6080 = vor.u32 1.1754944e-38, %v6079
        %v6081 = vsel %vm6078, %v6080, %v6076
        %v6082 = vmul.f32 %v5677, %v6081
        %v6083 = vrcp.pop %v5672
        %v6084 = vmul.f32 %v5672, %v6083
        %v6085 = vsub.f32 1.0, %v6084
        %v6086 = vmul.f32 %v6083, %v6085
        %v6087 = vadd.f32 %v6083, %v6086
        %vm6088 = vweird.f32 %v5672
        %vm6089 = vweird.f32 %v6083
        %vm6090 = vmor %vm6088, %vm6089
        %v6091 = vsel %vm6090, %v6083, %v6087
        %v6092 = vand.u32 2147483647, %v5672
        %vm6093 = vcmp.eq.f32.partialorder %v6092, 8.507059e+37
        %v6094 = vand.u32 %v5672, 2147483648
        %v6095 = vor.u32 1.1754944e-38, %v6094
        %v6096 = vsel %vm6093, %v6095, %v6091
        %v6097 = vmul.f32 %v5677, %v6096
        %v6098 = vrcp.pop %v5673
        %v6099 = vmul.f32 %v5673, %v6098
        %v6100 = vsub.f32 1.0, %v6099
        %v6101 = vmul.f32 %v6098, %v6100
        %v6102 = vadd.f32 %v6098, %v6101
        %vm6103 = vweird.f32 %v5673
        %vm6104 = vweird.f32 %v6098
        %vm6105 = vmor %vm6103, %vm6104
        %v6106 = vsel %vm6105, %v6098, %v6102
        %v6107 = vand.u32 2147483647, %v5673
        %vm6108 = vcmp.eq.f32.partialorder %v6107, 8.507059e+37
        %v6109 = vand.u32 %v5673, 2147483648
        %v6110 = vor.u32 1.1754944e-38, %v6109
        %v6111 = vsel %vm6108, %v6110, %v6106
        %v6112 = vmul.f32 %v5677, %v6111
        %v6113 = vrcp.pop %v5674
        %v6114 = vmul.f32 %v5674, %v6113
        %v6115 = vsub.f32 1.0, %v6114
        %v6116 = vmul.f32 %v6113, %v6115
        %v6117 = vadd.f32 %v6113, %v6116
        %vm6118 = vweird.f32 %v5674
        %vm6119 = vweird.f32 %v6113
        %vm6120 = vmor %vm6118, %vm6119
        %v6121 = vsel %vm6120, %v6113, %v6117
        %v6122 = vand.u32 2147483647, %v5674
        %vm6123 = vcmp.eq.f32.partialorder %v6122, 8.507059e+37
        %v6124 = vand.u32 %v5674, 2147483648
        %v6125 = vor.u32 1.1754944e-38, %v6124
        %v6126 = vsel %vm6123, %v6125, %v6121
        %v6127 = vmul.f32 %v5677, %v6126
        %v6128 = vrcp.pop %v5675
        %v6129 = vmul.f32 %v5675, %v6128
        %v6130 = vsub.f32 1.0, %v6129
        %v6131 = vmul.f32 %v6128, %v6130
        %v6132 = vadd.f32 %v6128, %v6131
        %vm6133 = vweird.f32 %v5675
        %vm6134 = vweird.f32 %v6128
        %vm6135 = vmor %vm6133, %vm6134
        %v6136 = vsel %vm6135, %v6128, %v6132
        %v6137 = vand.u32 2147483647, %v5675
        %vm6138 = vcmp.eq.f32.partialorder %v6137, 8.507059e+37
        %v6139 = vand.u32 %v5675, 2147483648
        %v6140 = vor.u32 1.1754944e-38, %v6139
        %v6141 = vsel %vm6138, %v6140, %v6136
        %v6142 = vmul.f32 %v5677, %v6141
        %v6143 = vrcp.pop %v5676
        %v6144 = vmul.f32 %v5676, %v6143
        %v6145 = vsub.f32 1.0, %v6144
        %v6146 = vmul.f32 %v6143, %v6145
        %v6147 = vadd.f32 %v6143, %v6146
        %vm6148 = vweird.f32 %v5676
        %vm6149 = vweird.f32 %v6143
        %vm6150 = vmor %vm6148, %vm6149
        %v6151 = vsel %vm6150, %v6143, %v6147
        %v6152 = vand.u32 2147483647, %v5676
        %vm6153 = vcmp.eq.f32.partialorder %v6152, 8.507059e+37
        %v6154 = vand.u32 %v5676, 2147483648
        %v6155 = vor.u32 1.1754944e-38, %v6154
        %v6156 = vsel %vm6153, %v6155, %v6151
        %v6157 = vmul.f32 %v5677, %v6156
        %v6158 = vmul.f32 %v5107, %v5692
        %v6159 = vmul.f32 %v5109, %v5707
        %v6160 = vmul.f32 %v5111, %v5722
        %v6161 = vmul.f32 %v5113, %v5737
        %v6162 = vmul.f32 %v5115, %v5752
        %v6163 = vmul.f32 %v5117, %v5767
        %v6164 = vmul.f32 %v5119, %v5782
        %v6165 = vmul.f32 %v5121, %v5797
        %v6166 = vmul.f32 %v5123, %v5812
        %v6167 = vmul.f32 %v5125, %v5827
        %v6168 = vmul.f32 %v5127, %v5842
        %v6169 = vmul.f32 %v5129, %v5857
        %v6170 = vmul.f32 %v5131, %v5872
        %v6171 = vmul.f32 %v5133, %v5887
        %v6172 = vmul.f32 %v5135, %v5902
        %v6173 = vmul.f32 %v5137, %v5917
        %v6174 = vmul.f32 %v5139, %v5932
        %v6175 = vmul.f32 %v5141, %v5947
        %v6176 = vmul.f32 %v5143, %v5962
        %v6177 = vmul.f32 %v5145, %v5977
        %v6178 = vmul.f32 %v5147, %v5992
        %v6179 = vmul.f32 %v5149, %v6007
        %v6180 = vmul.f32 %v5151, %v6022
        %v6181 = vmul.f32 %v5153, %v6037
        %v6182 = vmul.f32 %v5155, %v6052
        %v6183 = vmul.f32 %v5157, %v6067
        %v6184 = vmul.f32 %v5159, %v6082
        %v6185 = vmul.f32 %v5161, %v6097
        %v6186 = vmul.f32 %v5163, %v6112
        %v6187 = vmul.f32 %v5165, %v6127
        %v6188 = vmul.f32 %v5167, %v6142
        %v6189 = vmul.f32 %v5169, %v6157
        %6222 = vset.pattern.permute.xlu0 0
        %6223 = vperm.xlu0 %6222, %v5692
        %v6224 = vpop.permute.xlu0 %6223
        %6225 = vset.pattern.permute.xlu0 0
        %6226 = vperm.xlu0 %6225, %v5707
        %v6227 = vpop.permute.xlu0 %6226
        %6228 = vset.pattern.permute.xlu0 0
        %6229 = vperm.xlu0 %6228, %v5722
        %v6230 = vpop.permute.xlu0 %6229
        %6231 = vset.pattern.permute.xlu0 0
        %6232 = vperm.xlu0 %6231, %v5737
        %v6233 = vpop.permute.xlu0 %6232
        %6234 = vset.pattern.permute.xlu0 0
        %6235 = vperm.xlu0 %6234, %v5752
        %v6236 = vpop.permute.xlu0 %6235
        %6237 = vset.pattern.permute.xlu0 0
        %6238 = vperm.xlu0 %6237, %v5767
        %v6239 = vpop.permute.xlu0 %6238
        %6240 = vset.pattern.permute.xlu0 0
        %6241 = vperm.xlu0 %6240, %v5782
        %v6242 = vpop.permute.xlu0 %6241
        %6243 = vset.pattern.permute.xlu0 0
        %6244 = vperm.xlu0 %6243, %v5797
        %v6245 = vpop.permute.xlu0 %6244
        %6246 = vset.pattern.permute.xlu0 0
        %6247 = vperm.xlu0 %6246, %v5812
        %v6248 = vpop.permute.xlu0 %6247
        %6249 = vset.pattern.permute.xlu0 0
        %6250 = vperm.xlu0 %6249, %v5827
        %v6251 = vpop.permute.xlu0 %6250
        %6252 = vset.pattern.permute.xlu0 0
        %6253 = vperm.xlu0 %6252, %v5842
        %v6254 = vpop.permute.xlu0 %6253
        %6255 = vset.pattern.permute.xlu0 0
        %6256 = vperm.xlu0 %6255, %v5857
        %v6257 = vpop.permute.xlu0 %6256
        %6258 = vset.pattern.permute.xlu0 0
        %6259 = vperm.xlu0 %6258, %v5872
        %v6260 = vpop.permute.xlu0 %6259
        %6261 = vset.pattern.permute.xlu0 0
        %6262 = vperm.xlu0 %6261, %v5887
        %v6263 = vpop.permute.xlu0 %6262
        %6264 = vset.pattern.permute.xlu0 0
        %6265 = vperm.xlu0 %6264, %v5902
        %v6266 = vpop.permute.xlu0 %6265
        %6267 = vset.pattern.permute.xlu0 0
        %6268 = vperm.xlu0 %6267, %v5917
        %v6269 = vpop.permute.xlu0 %6268
        %6270 = vset.pattern.permute.xlu0 0
        %6271 = vperm.xlu0 %6270, %v5932
        %v6272 = vpop.permute.xlu0 %6271
        %6273 = vset.pattern.permute.xlu0 0
        %6274 = vperm.xlu0 %6273, %v5947
        %v6275 = vpop.permute.xlu0 %6274
        %6276 = vset.pattern.permute.xlu0 0
        %6277 = vperm.xlu0 %6276, %v5962
        %v6278 = vpop.permute.xlu0 %6277
        %6279 = vset.pattern.permute.xlu0 0
        %6280 = vperm.xlu0 %6279, %v5977
        %v6281 = vpop.permute.xlu0 %6280
        %6282 = vset.pattern.permute.xlu0 0
        %6283 = vperm.xlu0 %6282, %v5992
        %v6284 = vpop.permute.xlu0 %6283
        %6285 = vset.pattern.permute.xlu0 0
        %6286 = vperm.xlu0 %6285, %v6007
        %v6287 = vpop.permute.xlu0 %6286
        %6288 = vset.pattern.permute.xlu0 0
        %6289 = vperm.xlu0 %6288, %v6022
        %v6290 = vpop.permute.xlu0 %6289
        %6291 = vset.pattern.permute.xlu0 0
        %6292 = vperm.xlu0 %6291, %v6037
        %v6293 = vpop.permute.xlu0 %6292
        %6294 = vset.pattern.permute.xlu0 0
        %6295 = vperm.xlu0 %6294, %v6052
        %v6296 = vpop.permute.xlu0 %6295
        %6297 = vset.pattern.permute.xlu0 0
        %6298 = vperm.xlu0 %6297, %v6067
        %v6299 = vpop.permute.xlu0 %6298
        %6300 = vset.pattern.permute.xlu0 0
        %6301 = vperm.xlu0 %6300, %v6082
        %v6302 = vpop.permute.xlu0 %6301
        %6303 = vset.pattern.permute.xlu0 0
        %6304 = vperm.xlu0 %6303, %v6097
        %v6305 = vpop.permute.xlu0 %6304
        %6306 = vset.pattern.permute.xlu0 0
        %6307 = vperm.xlu0 %6306, %v6112
        %v6308 = vpop.permute.xlu0 %6307
        %6309 = vset.pattern.permute.xlu0 0
        %6310 = vperm.xlu0 %6309, %v6127
        %v6311 = vpop.permute.xlu0 %6310
        %6312 = vset.pattern.permute.xlu0 0
        %6313 = vperm.xlu0 %6312, %v6142
        %v6314 = vpop.permute.xlu0 %6313
        %6315 = vset.pattern.permute.xlu0 0
        %6316 = vperm.xlu0 %6315, %v6157
        %v6317 = vpop.permute.xlu0 %6316
        %v6318 = vperm.slane %v6224, %v3748
        %v6319 = vperm.slane %v6227, %v4568
        %v6320 = vsel %vm4570, %v6319, %v6318
        %v6321 = vperm.slane %v6230, %v3748
        %v6322 = vperm.slane %v6233, %v4568
        %v6323 = vsel %vm4570, %v6322, %v6321
        %v6324 = vperm.slane %v6236, %v3748
        %v6325 = vperm.slane %v6239, %v4568
        %v6326 = vsel %vm4570, %v6325, %v6324
        %v6327 = vperm.slane %v6242, %v3748
        %v6328 = vperm.slane %v6245, %v4568
        %v6329 = vsel %vm4570, %v6328, %v6327
        %v6330 = vperm.slane %v6248, %v3748
        %v6331 = vperm.slane %v6251, %v4568
        %v6332 = vsel %vm4570, %v6331, %v6330
        %v6333 = vperm.slane %v6254, %v3748
        %v6334 = vperm.slane %v6257, %v4568
        %v6335 = vsel %vm4570, %v6334, %v6333
        %v6336 = vperm.slane %v6260, %v3748
        %v6337 = vperm.slane %v6263, %v4568
        %v6338 = vsel %vm4570, %v6337, %v6336
        %v6339 = vperm.slane %v6266, %v3748
        %v6340 = vperm.slane %v6269, %v4568
        %v6341 = vsel %vm4570, %v6340, %v6339
        %v6342 = vperm.slane %v6272, %v3748
        %v6343 = vperm.slane %v6275, %v4568
        %v6344 = vsel %vm4570, %v6343, %v6342
        %v6345 = vperm.slane %v6278, %v3748
        %v6346 = vperm.slane %v6281, %v4568
        %v6347 = vsel %vm4570, %v6346, %v6345
        %v6348 = vperm.slane %v6284, %v3748
        %v6349 = vperm.slane %v6287, %v4568
        %v6350 = vsel %vm4570, %v6349, %v6348
        %v6351 = vperm.slane %v6290, %v3748
        %v6352 = vperm.slane %v6293, %v4568
        %v6353 = vsel %vm4570, %v6352, %v6351
        %v6354 = vperm.slane %v6296, %v3748
        %v6355 = vperm.slane %v6299, %v4568
        %v6356 = vsel %vm4570, %v6355, %v6354
        %v6357 = vperm.slane %v6302, %v3748
        %v6358 = vperm.slane %v6305, %v4568
        %v6359 = vsel %vm4570, %v6358, %v6357
        %v6360 = vperm.slane %v6308, %v3748
        %v6361 = vperm.slane %v6311, %v4568
        %v6362 = vsel %vm4570, %v6361, %v6360
        %v6363 = vperm.slane %v6314, %v3748
        %v6364 = vperm.slane %v6317, %v4568
        %v6365 = vsel %vm4570, %v6364, %v6363
        %v6366 = vsel %vm4617, %v6323, %v6320
        %v6367 = vsel %vm4619, %v6326, %v6366
        %v6368 = vsel %vm4621, %v6329, %v6367
        %v6369 = vsel %vm4623, %v6332, %v6368
        %v6370 = vsel %vm4625, %v6335, %v6369
        %v6371 = vsel %vm4627, %v6338, %v6370
        %v6372 = vsel %vm4629, %v6341, %v6371
        %v6373 = vsel %vm4617, %v6347, %v6344
        %v6374 = vsel %vm4619, %v6350, %v6373
        %v6375 = vsel %vm4621, %v6353, %v6374
        %v6376 = vsel %vm4623, %v6356, %v6375
        %v6377 = vsel %vm4625, %v6359, %v6376
        %v6378 = vsel %vm4627, %v6362, %v6377
        %v6379 = vsel %vm4629, %v6365, %v6378
        %v6382 = vmul.f32 %v5365, %v6372
        %v6383 = vmul.f32 %v5367, %v6379
        %v6384 = vperm.slane %v6382, 0
        %v6385 = vlaneseq
        %v6386 = vshrl.u32 %v6385, 7
        %6388 = vset.pattern.permute.xlu0 %v6386
        %6389 = vperm.xlu0 %6388, %v6384
        %v6390 = vpop.permute.xlu0 %6389
        %v6391 = vlaneseq
        %v6392 = vshrl.u32 %v6391, 7
        %v6393 = vadd.s32 %v6392, 8
        %6394 = vset.pattern.permute.xlu0 %v6393
        %6395 = vperm.xlu0 %6394, %v6384
        %v6396 = vpop.permute.xlu0 %6395
        %v6397 = vperm.slane %v6382, 1
        %v6398 = vlaneseq
        %v6399 = vshrl.u32 %v6398, 7
        %6401 = vset.pattern.permute.xlu0 %v6399
        %6402 = vperm.xlu0 %6401, %v6397
        %v6403 = vpop.permute.xlu0 %6402
        %v6404 = vlaneseq
        %v6405 = vshrl.u32 %v6404, 7
        %v6406 = vadd.s32 %v6405, 8
        %6407 = vset.pattern.permute.xlu0 %v6406
        %6408 = vperm.xlu0 %6407, %v6397
        %v6409 = vpop.permute.xlu0 %6408
        %v6410 = vperm.slane %v6382, 2
        %v6411 = vlaneseq
        %v6412 = vshrl.u32 %v6411, 7
        %6414 = vset.pattern.permute.xlu0 %v6412
        %6415 = vperm.xlu0 %6414, %v6410
        %v6416 = vpop.permute.xlu0 %6415
        %v6417 = vlaneseq
        %v6418 = vshrl.u32 %v6417, 7
        %v6419 = vadd.s32 %v6418, 8
        %6420 = vset.pattern.permute.xlu0 %v6419
        %6421 = vperm.xlu0 %6420, %v6410
        %v6422 = vpop.permute.xlu0 %6421
        %v6423 = vperm.slane %v6382, 3
        %v6424 = vlaneseq
        %v6425 = vshrl.u32 %v6424, 7
        %6427 = vset.pattern.permute.xlu0 %v6425
        %6428 = vperm.xlu0 %6427, %v6423
        %v6429 = vpop.permute.xlu0 %6428
        %v6430 = vlaneseq
        %v6431 = vshrl.u32 %v6430, 7
        %v6432 = vadd.s32 %v6431, 8
        %6433 = vset.pattern.permute.xlu0 %v6432
        %6434 = vperm.xlu0 %6433, %v6423
        %v6435 = vpop.permute.xlu0 %6434
        %v6436 = vperm.slane %v6382, 4
        %v6437 = vlaneseq
        %v6438 = vshrl.u32 %v6437, 7
        %6440 = vset.pattern.permute.xlu0 %v6438
        %6441 = vperm.xlu0 %6440, %v6436
        %v6442 = vpop.permute.xlu0 %6441
        %v6443 = vlaneseq
        %v6444 = vshrl.u32 %v6443, 7
        %v6445 = vadd.s32 %v6444, 8
        %6446 = vset.pattern.permute.xlu0 %v6445
        %6447 = vperm.xlu0 %6446, %v6436
        %v6448 = vpop.permute.xlu0 %6447
        %v6449 = vperm.slane %v6382, 5
        %v6450 = vlaneseq
        %v6451 = vshrl.u32 %v6450, 7
        %6453 = vset.pattern.permute.xlu0 %v6451
        %6454 = vperm.xlu0 %6453, %v6449
        %v6455 = vpop.permute.xlu0 %6454
        %v6456 = vlaneseq
        %v6457 = vshrl.u32 %v6456, 7
        %v6458 = vadd.s32 %v6457, 8
        %6459 = vset.pattern.permute.xlu0 %v6458
        %6460 = vperm.xlu0 %6459, %v6449
        %v6461 = vpop.permute.xlu0 %6460
        %v6462 = vperm.slane %v6382, 6
        %v6463 = vlaneseq
        %v6464 = vshrl.u32 %v6463, 7
        %6466 = vset.pattern.permute.xlu0 %v6464
        %6467 = vperm.xlu0 %6466, %v6462
        %v6468 = vpop.permute.xlu0 %6467
        %v6469 = vlaneseq
        %v6470 = vshrl.u32 %v6469, 7
        %v6471 = vadd.s32 %v6470, 8
        %6472 = vset.pattern.permute.xlu0 %v6471
        %6473 = vperm.xlu0 %6472, %v6462
        %v6474 = vpop.permute.xlu0 %6473
        %v6475 = vperm.slane %v6382, 7
        %v6476 = vlaneseq
        %v6477 = vshrl.u32 %v6476, 7
        %6479 = vset.pattern.permute.xlu0 %v6477
        %6480 = vperm.xlu0 %6479, %v6475
        %v6481 = vpop.permute.xlu0 %6480
        %v6482 = vlaneseq
        %v6483 = vshrl.u32 %v6482, 7
        %v6484 = vadd.s32 %v6483, 8
        %6485 = vset.pattern.permute.xlu0 %v6484
        %6486 = vperm.xlu0 %6485, %v6475
        %v6487 = vpop.permute.xlu0 %6486
        %v6488 = vperm.slane %v6383, 0
        %v6489 = vlaneseq
        %v6490 = vshrl.u32 %v6489, 7
        %6492 = vset.pattern.permute.xlu0 %v6490
        %6493 = vperm.xlu0 %6492, %v6488
        %v6494 = vpop.permute.xlu0 %6493
        %v6495 = vlaneseq
        %v6496 = vshrl.u32 %v6495, 7
        %v6497 = vadd.s32 %v6496, 8
        %6498 = vset.pattern.permute.xlu0 %v6497
        %6499 = vperm.xlu0 %6498, %v6488
        %v6500 = vpop.permute.xlu0 %6499
        %v6501 = vperm.slane %v6383, 1
        %v6502 = vlaneseq
        %v6503 = vshrl.u32 %v6502, 7
        %6505 = vset.pattern.permute.xlu0 %v6503
        %6506 = vperm.xlu0 %6505, %v6501
        %v6507 = vpop.permute.xlu0 %6506
        %v6508 = vlaneseq
        %v6509 = vshrl.u32 %v6508, 7
        %v6510 = vadd.s32 %v6509, 8
        %6511 = vset.pattern.permute.xlu0 %v6510
        %6512 = vperm.xlu0 %6511, %v6501
        %v6513 = vpop.permute.xlu0 %6512
        %v6514 = vperm.slane %v6383, 2
        %v6515 = vlaneseq
        %v6516 = vshrl.u32 %v6515, 7
        %6518 = vset.pattern.permute.xlu0 %v6516
        %6519 = vperm.xlu0 %6518, %v6514
        %v6520 = vpop.permute.xlu0 %6519
        %v6521 = vlaneseq
        %v6522 = vshrl.u32 %v6521, 7
        %v6523 = vadd.s32 %v6522, 8
        %6524 = vset.pattern.permute.xlu0 %v6523
        %6525 = vperm.xlu0 %6524, %v6514
        %v6526 = vpop.permute.xlu0 %6525
        %v6527 = vperm.slane %v6383, 3
        %v6528 = vlaneseq
        %v6529 = vshrl.u32 %v6528, 7
        %6531 = vset.pattern.permute.xlu0 %v6529
        %6532 = vperm.xlu0 %6531, %v6527
        %v6533 = vpop.permute.xlu0 %6532
        %v6534 = vlaneseq
        %v6535 = vshrl.u32 %v6534, 7
        %v6536 = vadd.s32 %v6535, 8
        %6537 = vset.pattern.permute.xlu0 %v6536
        %6538 = vperm.xlu0 %6537, %v6527
        %v6539 = vpop.permute.xlu0 %6538
        %v6540 = vperm.slane %v6383, 4
        %v6541 = vlaneseq
        %v6542 = vshrl.u32 %v6541, 7
        %6544 = vset.pattern.permute.xlu0 %v6542
        %6545 = vperm.xlu0 %6544, %v6540
        %v6546 = vpop.permute.xlu0 %6545
        %v6547 = vlaneseq
        %v6548 = vshrl.u32 %v6547, 7
        %v6549 = vadd.s32 %v6548, 8
        %6550 = vset.pattern.permute.xlu0 %v6549
        %6551 = vperm.xlu0 %6550, %v6540
        %v6552 = vpop.permute.xlu0 %6551
        %v6553 = vperm.slane %v6383, 5
        %v6554 = vlaneseq
        %v6555 = vshrl.u32 %v6554, 7
        %6557 = vset.pattern.permute.xlu0 %v6555
        %6558 = vperm.xlu0 %6557, %v6553
        %v6559 = vpop.permute.xlu0 %6558
        %v6560 = vlaneseq
        %v6561 = vshrl.u32 %v6560, 7
        %v6562 = vadd.s32 %v6561, 8
        %6563 = vset.pattern.permute.xlu0 %v6562
        %6564 = vperm.xlu0 %6563, %v6553
        %v6565 = vpop.permute.xlu0 %6564
        %v6566 = vperm.slane %v6383, 6
        %v6567 = vlaneseq
        %v6568 = vshrl.u32 %v6567, 7
        %6570 = vset.pattern.permute.xlu0 %v6568
        %6571 = vperm.xlu0 %6570, %v6566
        %v6572 = vpop.permute.xlu0 %6571
        %v6573 = vlaneseq
        %v6574 = vshrl.u32 %v6573, 7
        %v6575 = vadd.s32 %v6574, 8
        %6576 = vset.pattern.permute.xlu0 %v6575
        %6577 = vperm.xlu0 %6576, %v6566
        %v6578 = vpop.permute.xlu0 %6577
        %v6579 = vperm.slane %v6383, 7
        %v6580 = vlaneseq
        %v6581 = vshrl.u32 %v6580, 7
        %6583 = vset.pattern.permute.xlu0 %v6581
        %6584 = vperm.xlu0 %6583, %v6579
        %v6585 = vpop.permute.xlu0 %6584
        %v6586 = vlaneseq
        %v6587 = vshrl.u32 %v6586, 7
        %v6588 = vadd.s32 %v6587, 8
        %6589 = vset.pattern.permute.xlu0 %v6588
        %6590 = vperm.xlu0 %6589, %v6579
        %v6591 = vpop.permute.xlu0 %6590
        %6593 = vset.pattern.permute.xlu0 0
        %6594 = vperm.xlu0 %6593, %v6158
        %v6595 = vpop.permute.xlu0 %6594
        %6598 = vset.pattern.permute.xlu0 0
        %6599 = vperm.xlu0 %6598, %v6159
        %v6600 = vpop.permute.xlu0 %6599
        %6603 = vset.pattern.permute.xlu0 0
        %6604 = vperm.xlu0 %6603, %v6160
        %v6605 = vpop.permute.xlu0 %6604
        %6608 = vset.pattern.permute.xlu0 0
        %6609 = vperm.xlu0 %6608, %v6161
        %v6610 = vpop.permute.xlu0 %6609
        %6613 = vset.pattern.permute.xlu0 0
        %6614 = vperm.xlu0 %6613, %v6162
        %v6615 = vpop.permute.xlu0 %6614
        %6618 = vset.pattern.permute.xlu0 0
        %6619 = vperm.xlu0 %6618, %v6163
        %v6620 = vpop.permute.xlu0 %6619
        %6623 = vset.pattern.permute.xlu0 0
        %6624 = vperm.xlu0 %6623, %v6164
        %v6625 = vpop.permute.xlu0 %6624
        %6628 = vset.pattern.permute.xlu0 0
        %6629 = vperm.xlu0 %6628, %v6165
        %v6630 = vpop.permute.xlu0 %6629
        %6633 = vset.pattern.permute.xlu0 0
        %6634 = vperm.xlu0 %6633, %v6166
        %v6635 = vpop.permute.xlu0 %6634
        %6638 = vset.pattern.permute.xlu0 0
        %6639 = vperm.xlu0 %6638, %v6167
        %v6640 = vpop.permute.xlu0 %6639
        %6643 = vset.pattern.permute.xlu0 0
        %6644 = vperm.xlu0 %6643, %v6168
        %v6645 = vpop.permute.xlu0 %6644
        %6648 = vset.pattern.permute.xlu0 0
        %6649 = vperm.xlu0 %6648, %v6169
        %v6650 = vpop.permute.xlu0 %6649
        %6653 = vset.pattern.permute.xlu0 0
        %6654 = vperm.xlu0 %6653, %v6170
        %v6655 = vpop.permute.xlu0 %6654
        %6658 = vset.pattern.permute.xlu0 0
        %6659 = vperm.xlu0 %6658, %v6171
        %v6660 = vpop.permute.xlu0 %6659
        %6663 = vset.pattern.permute.xlu0 0
        %6664 = vperm.xlu0 %6663, %v6172
        %v6665 = vpop.permute.xlu0 %6664
        %6668 = vset.pattern.permute.xlu0 0
        %6669 = vperm.xlu0 %6668, %v6173
        %v6670 = vpop.permute.xlu0 %6669
        %6673 = vset.pattern.permute.xlu0 0
        %6674 = vperm.xlu0 %6673, %v6174
        %v6675 = vpop.permute.xlu0 %6674
        %6678 = vset.pattern.permute.xlu0 0
        %6679 = vperm.xlu0 %6678, %v6175
        %v6680 = vpop.permute.xlu0 %6679
        %6683 = vset.pattern.permute.xlu0 0
        %6684 = vperm.xlu0 %6683, %v6176
        %v6685 = vpop.permute.xlu0 %6684
        %6688 = vset.pattern.permute.xlu0 0
        %6689 = vperm.xlu0 %6688, %v6177
        %v6690 = vpop.permute.xlu0 %6689
        %6693 = vset.pattern.permute.xlu0 0
        %6694 = vperm.xlu0 %6693, %v6178
        %v6695 = vpop.permute.xlu0 %6694
        %6698 = vset.pattern.permute.xlu0 0
        %6699 = vperm.xlu0 %6698, %v6179
        %v6700 = vpop.permute.xlu0 %6699
        %6703 = vset.pattern.permute.xlu0 0
        %6704 = vperm.xlu0 %6703, %v6180
        %v6705 = vpop.permute.xlu0 %6704
        %6708 = vset.pattern.permute.xlu0 0
        %6709 = vperm.xlu0 %6708, %v6181
        %v6710 = vpop.permute.xlu0 %6709
        %6713 = vset.pattern.permute.xlu0 0
        %6714 = vperm.xlu0 %6713, %v6182
        %v6715 = vpop.permute.xlu0 %6714
        %6718 = vset.pattern.permute.xlu0 0
        %6719 = vperm.xlu0 %6718, %v6183
        %v6720 = vpop.permute.xlu0 %6719
        %6723 = vset.pattern.permute.xlu0 0
        %6724 = vperm.xlu0 %6723, %v6184
        %v6725 = vpop.permute.xlu0 %6724
        %6728 = vset.pattern.permute.xlu0 0
        %6729 = vperm.xlu0 %6728, %v6185
        %v6730 = vpop.permute.xlu0 %6729
        %6733 = vset.pattern.permute.xlu0 0
        %6734 = vperm.xlu0 %6733, %v6186
        %v6735 = vpop.permute.xlu0 %6734
        %6738 = vset.pattern.permute.xlu0 0
        %6739 = vperm.xlu0 %6738, %v6187
        %v6740 = vpop.permute.xlu0 %6739
        %6743 = vset.pattern.permute.xlu0 0
        %6744 = vperm.xlu0 %6743, %v6188
        %v6745 = vpop.permute.xlu0 %6744
        %6748 = vset.pattern.permute.xlu0 0
        %6749 = vperm.xlu0 %6748, %v6189
        %v6750 = vpop.permute.xlu0 %6749
        %v6752 = vmul.f32 %v6595, %v2744
        %v6753 = vmul.f32 %v6600, %v2747
        %v6754 = vmul.f32 %v6605, %v2773
        %v6755 = vmul.f32 %v6610, %v2776
        %v6756 = vmul.f32 %v6615, %v2802
        %v6757 = vmul.f32 %v6620, %v2805
        %v6758 = vmul.f32 %v6625, %v2831
        %v6759 = vmul.f32 %v6630, %v2834
        %v6760 = vmul.f32 %v6635, %v2860
        %v6761 = vmul.f32 %v6640, %v2863
        %v6762 = vmul.f32 %v6645, %v2889
        %v6763 = vmul.f32 %v6650, %v2892
        %v6764 = vmul.f32 %v6655, %v2918
        %v6765 = vmul.f32 %v6660, %v2921
        %v6766 = vmul.f32 %v6665, %v2947
        %v6767 = vmul.f32 %v6670, %v2950
        %v6768 = vmul.f32 %v6675, %v2976
        %v6769 = vmul.f32 %v6680, %v2979
        %v6770 = vmul.f32 %v6685, %v3005
        %v6771 = vmul.f32 %v6690, %v3008
        %v6772 = vmul.f32 %v6695, %v3034
        %v6773 = vmul.f32 %v6700, %v3037
        %v6774 = vmul.f32 %v6705, %v3063
        %v6775 = vmul.f32 %v6710, %v3066
        %v6776 = vmul.f32 %v6715, %v3092
        %v6777 = vmul.f32 %v6720, %v3095
        %v6778 = vmul.f32 %v6725, %v3121
        %v6779 = vmul.f32 %v6730, %v3124
        %v6780 = vmul.f32 %v6735, %v3150
        %v6781 = vmul.f32 %v6740, %v3153
        %v6782 = vmul.f32 %v6745, %v3179
        %v6783 = vmul.f32 %v6750, %v3182
        %v6784 = vrot.slane %v4153, 4
        %v6785 = vsel %vm367, %v6784, %v4095
        %v6786 = vrot.slane %v4095, 4
        %v6787 = vsel %vm367, %v4153, %v6786
        %v6789 = vunpack.c.l.s4 1983009808
        %v6790 = vunpack.c.0.s8 %v6789
        %v6791 = vperm.slane %v6785, %v6790
        %v6793 = vunpack.c.l.s4 1983009808
        %v6794 = vunpack.c.0.s8 %v6793
        %v6795 = vperm.slane %v6787, %v6794
        %v6796 = vrot.slane %v4182, 4
        %v6797 = vsel %vm367, %v6796, %v4124
        %v6798 = vrot.slane %v4124, 4
        %v6799 = vsel %vm367, %v4182, %v6798
        %v6801 = vunpack.c.l.s4 1983009808
        %v6802 = vunpack.c.0.s8 %v6801
        %v6803 = vperm.slane %v6797, %v6802
        %v6805 = vunpack.c.l.s4 1983009808
        %v6806 = vunpack.c.0.s8 %v6805
        %v6807 = vperm.slane %v6799, %v6806
        %v6808 = vrot.slane %v4269, 4
        %v6809 = vsel %vm367, %v6808, %v4211
        %v6810 = vrot.slane %v4211, 4
        %v6811 = vsel %vm367, %v4269, %v6810
        %v6813 = vunpack.c.l.s4 1983009808
        %v6814 = vunpack.c.0.s8 %v6813
        %v6815 = vperm.slane %v6809, %v6814
        %v6817 = vunpack.c.l.s4 1983009808
        %v6818 = vunpack.c.0.s8 %v6817
        %v6819 = vperm.slane %v6811, %v6818
        %v6820 = vrot.slane %v4298, 4
        %v6821 = vsel %vm367, %v6820, %v4240
        %v6822 = vrot.slane %v4240, 4
        %v6823 = vsel %vm367, %v4298, %v6822
        %v6825 = vunpack.c.l.s4 1983009808
        %v6826 = vunpack.c.0.s8 %v6825
        %v6827 = vperm.slane %v6821, %v6826
        %v6829 = vunpack.c.l.s4 1983009808
        %v6830 = vunpack.c.0.s8 %v6829
        %v6831 = vperm.slane %v6823, %v6830
        %v6832 = vrot.slane %v6803, 4
        %v6833 = vsel %vm367, %v6832, %v6791
        %v6834 = vrot.slane %v6791, 4
        %v6835 = vsel %vm367, %v6803, %v6834
        %v6837 = vunpack.c.l.s4 1934713408
        %v6838 = vunpack.c.0.s8 %v6837
        %v6839 = vperm.slane %v6833, %v6838
        %v6841 = vunpack.c.l.s4 1934713408
        %v6842 = vunpack.c.0.s8 %v6841
        %v6843 = vperm.slane %v6835, %v6842
        %v6844 = vrot.slane %v6807, 4
        %v6845 = vsel %vm367, %v6844, %v6795
        %v6846 = vrot.slane %v6795, 4
        %v6847 = vsel %vm367, %v6807, %v6846
        %v6849 = vunpack.c.l.s4 1934713408
        %v6850 = vunpack.c.0.s8 %v6849
        %v6851 = vperm.slane %v6845, %v6850
        %v6853 = vunpack.c.l.s4 1934713408
        %v6854 = vunpack.c.0.s8 %v6853
        %v6855 = vperm.slane %v6847, %v6854
        %v6856 = vrot.slane %v6827, 4
        %v6857 = vsel %vm367, %v6856, %v6815
        %v6858 = vrot.slane %v6815, 4
        %v6859 = vsel %vm367, %v6827, %v6858
        %v6861 = vunpack.c.l.s4 1934713408
        %v6862 = vunpack.c.0.s8 %v6861
        %v6863 = vperm.slane %v6857, %v6862
        %v6865 = vunpack.c.l.s4 1934713408
        %v6866 = vunpack.c.0.s8 %v6865
        %v6867 = vperm.slane %v6859, %v6866
        %v6868 = vrot.slane %v6831, 4
        %v6869 = vsel %vm367, %v6868, %v6819
        %v6870 = vrot.slane %v6819, 4
        %v6871 = vsel %vm367, %v6831, %v6870
        %v6873 = vunpack.c.l.s4 1934713408
        %v6874 = vunpack.c.0.s8 %v6873
        %v6875 = vperm.slane %v6869, %v6874
        %v6877 = vunpack.c.l.s4 1934713408
        %v6878 = vunpack.c.0.s8 %v6877
        %v6879 = vperm.slane %v6871, %v6878
        %v6880 = vrot.slane %v6863, 4
        %v6881 = vsel %vm367, %v6880, %v6839
        %v6882 = vrot.slane %v6839, 4
        %v6883 = vsel %vm367, %v6863, %v6882
        %v6884 = vrot.slane %v6867, 4
        %v6885 = vsel %vm367, %v6884, %v6843
        %v6886 = vrot.slane %v6843, 4
        %v6887 = vsel %vm367, %v6867, %v6886
        %v6888 = vrot.slane %v6875, 4
        %v6889 = vsel %vm367, %v6888, %v6851
        %v6890 = vrot.slane %v6851, 4
        %v6891 = vsel %vm367, %v6875, %v6890
        %v6892 = vrot.slane %v6879, 4
        %v6893 = vsel %vm367, %v6892, %v6855
        %v6894 = vrot.slane %v6855, 4
        %v6895 = vsel %vm367, %v6879, %v6894
        %v6896 = vrot.slane %v4385, 4
        %v6897 = vsel %vm367, %v6896, %v4327
        %v6898 = vrot.slane %v4327, 4
        %v6899 = vsel %vm367, %v4385, %v6898
        %v6901 = vunpack.c.l.s4 1983009808
        %v6902 = vunpack.c.0.s8 %v6901
        %v6903 = vperm.slane %v6897, %v6902
        %v6905 = vunpack.c.l.s4 1983009808
        %v6906 = vunpack.c.0.s8 %v6905
        %v6907 = vperm.slane %v6899, %v6906
        %v6908 = vrot.slane %v4414, 4
        %v6909 = vsel %vm367, %v6908, %v4356
        %v6910 = vrot.slane %v4356, 4
        %v6911 = vsel %vm367, %v4414, %v6910
        %v6913 = vunpack.c.l.s4 1983009808
        %v6914 = vunpack.c.0.s8 %v6913
        %v6915 = vperm.slane %v6909, %v6914
        %v6917 = vunpack.c.l.s4 1983009808
        %v6918 = vunpack.c.0.s8 %v6917
        %v6919 = vperm.slane %v6911, %v6918
        %v6920 = vrot.slane %v4501, 4
        %v6921 = vsel %vm367, %v6920, %v4443
        %v6922 = vrot.slane %v4443, 4
        %v6923 = vsel %vm367, %v4501, %v6922
        %v6925 = vunpack.c.l.s4 1983009808
        %v6926 = vunpack.c.0.s8 %v6925
        %v6927 = vperm.slane %v6921, %v6926
        %v6929 = vunpack.c.l.s4 1983009808
        %v6930 = vunpack.c.0.s8 %v6929
        %v6931 = vperm.slane %v6923, %v6930
        %v6932 = vrot.slane %v4530, 4
        %v6933 = vsel %vm367, %v6932, %v4472
        %v6934 = vrot.slane %v4472, 4
        %v6935 = vsel %vm367, %v4530, %v6934
        %v6937 = vunpack.c.l.s4 1983009808
        %v6938 = vunpack.c.0.s8 %v6937
        %v6939 = vperm.slane %v6933, %v6938
        %v6941 = vunpack.c.l.s4 1983009808
        %v6942 = vunpack.c.0.s8 %v6941
        %v6943 = vperm.slane %v6935, %v6942
        %v6944 = vrot.slane %v6915, 4
        %v6945 = vsel %vm367, %v6944, %v6903
        %v6946 = vrot.slane %v6903, 4
        %v6947 = vsel %vm367, %v6915, %v6946
        %v6949 = vunpack.c.l.s4 1934713408
        %v6950 = vunpack.c.0.s8 %v6949
        %v6951 = vperm.slane %v6945, %v6950
        %v6953 = vunpack.c.l.s4 1934713408
        %v6954 = vunpack.c.0.s8 %v6953
        %v6955 = vperm.slane %v6947, %v6954
        %v6956 = vrot.slane %v6919, 4
        %v6957 = vsel %vm367, %v6956, %v6907
        %v6958 = vrot.slane %v6907, 4
        %v6959 = vsel %vm367, %v6919, %v6958
        %v6961 = vunpack.c.l.s4 1934713408
        %v6962 = vunpack.c.0.s8 %v6961
        %v6963 = vperm.slane %v6957, %v6962
        %v6965 = vunpack.c.l.s4 1934713408
        %v6966 = vunpack.c.0.s8 %v6965
        %v6967 = vperm.slane %v6959, %v6966
        %v6968 = vrot.slane %v6939, 4
        %v6969 = vsel %vm367, %v6968, %v6927
        %v6970 = vrot.slane %v6927, 4
        %v6971 = vsel %vm367, %v6939, %v6970
        %v6973 = vunpack.c.l.s4 1934713408
        %v6974 = vunpack.c.0.s8 %v6973
        %v6975 = vperm.slane %v6969, %v6974
        %v6977 = vunpack.c.l.s4 1934713408
        %v6978 = vunpack.c.0.s8 %v6977
        %v6979 = vperm.slane %v6971, %v6978
        %v6980 = vrot.slane %v6943, 4
        %v6981 = vsel %vm367, %v6980, %v6931
        %v6982 = vrot.slane %v6931, 4
        %v6983 = vsel %vm367, %v6943, %v6982
        %v6985 = vunpack.c.l.s4 1934713408
        %v6986 = vunpack.c.0.s8 %v6985
        %v6987 = vperm.slane %v6981, %v6986
        %v6989 = vunpack.c.l.s4 1934713408
        %v6990 = vunpack.c.0.s8 %v6989
        %v6991 = vperm.slane %v6983, %v6990
        %v6992 = vrot.slane %v6975, 4
        %v6993 = vsel %vm367, %v6992, %v6951
        %v6994 = vrot.slane %v6951, 4
        %v6995 = vsel %vm367, %v6975, %v6994
        %v6996 = vrot.slane %v6979, 4
        %v6997 = vsel %vm367, %v6996, %v6955
        %v6998 = vrot.slane %v6955, 4
        %v6999 = vsel %vm367, %v6979, %v6998
        %v7000 = vrot.slane %v6987, 4
        %v7001 = vsel %vm367, %v7000, %v6963
        %v7002 = vrot.slane %v6963, 4
        %v7003 = vsel %vm367, %v6987, %v7002
        %v7004 = vrot.slane %v6991, 4
        %v7005 = vsel %vm367, %v7004, %v6967
        %v7006 = vrot.slane %v6967, 4
        %v7007 = vsel %vm367, %v6991, %v7006
        %v7008 = vrot.slane %v4156, 4
        %v7009 = vsel %vm367, %v7008, %v4098
        %v7010 = vrot.slane %v4098, 4
        %v7011 = vsel %vm367, %v4156, %v7010
        %v7013 = vunpack.c.l.s4 1983009808
        %v7014 = vunpack.c.0.s8 %v7013
        %v7015 = vperm.slane %v7009, %v7014
        %v7017 = vunpack.c.l.s4 1983009808
        %v7018 = vunpack.c.0.s8 %v7017
        %v7019 = vperm.slane %v7011, %v7018
        %v7020 = vrot.slane %v4185, 4
        %v7021 = vsel %vm367, %v7020, %v4127
        %v7022 = vrot.slane %v4127, 4
        %v7023 = vsel %vm367, %v4185, %v7022
        %v7025 = vunpack.c.l.s4 1983009808
        %v7026 = vunpack.c.0.s8 %v7025
        %v7027 = vperm.slane %v7021, %v7026
        %v7029 = vunpack.c.l.s4 1983009808
        %v7030 = vunpack.c.0.s8 %v7029
        %v7031 = vperm.slane %v7023, %v7030
        %v7032 = vrot.slane %v4272, 4
        %v7033 = vsel %vm367, %v7032, %v4214
        %v7034 = vrot.slane %v4214, 4
        %v7035 = vsel %vm367, %v4272, %v7034
        %v7037 = vunpack.c.l.s4 1983009808
        %v7038 = vunpack.c.0.s8 %v7037
        %v7039 = vperm.slane %v7033, %v7038
        %v7041 = vunpack.c.l.s4 1983009808
        %v7042 = vunpack.c.0.s8 %v7041
        %v7043 = vperm.slane %v7035, %v7042
        %v7044 = vrot.slane %v4301, 4
        %v7045 = vsel %vm367, %v7044, %v4243
        %v7046 = vrot.slane %v4243, 4
        %v7047 = vsel %vm367, %v4301, %v7046
        %v7049 = vunpack.c.l.s4 1983009808
        %v7050 = vunpack.c.0.s8 %v7049
        %v7051 = vperm.slane %v7045, %v7050
        %v7053 = vunpack.c.l.s4 1983009808
        %v7054 = vunpack.c.0.s8 %v7053
        %v7055 = vperm.slane %v7047, %v7054
        %v7056 = vrot.slane %v7027, 4
        %v7057 = vsel %vm367, %v7056, %v7015
        %v7058 = vrot.slane %v7015, 4
        %v7059 = vsel %vm367, %v7027, %v7058
        %v7061 = vunpack.c.l.s4 1934713408
        %v7062 = vunpack.c.0.s8 %v7061
        %v7063 = vperm.slane %v7057, %v7062
        %v7065 = vunpack.c.l.s4 1934713408
        %v7066 = vunpack.c.0.s8 %v7065
        %v7067 = vperm.slane %v7059, %v7066
        %v7068 = vrot.slane %v7031, 4
        %v7069 = vsel %vm367, %v7068, %v7019
        %v7070 = vrot.slane %v7019, 4
        %v7071 = vsel %vm367, %v7031, %v7070
        %v7073 = vunpack.c.l.s4 1934713408
        %v7074 = vunpack.c.0.s8 %v7073
        %v7075 = vperm.slane %v7069, %v7074
        %v7077 = vunpack.c.l.s4 1934713408
        %v7078 = vunpack.c.0.s8 %v7077
        %v7079 = vperm.slane %v7071, %v7078
        %v7080 = vrot.slane %v7051, 4
        %v7081 = vsel %vm367, %v7080, %v7039
        %v7082 = vrot.slane %v7039, 4
        %v7083 = vsel %vm367, %v7051, %v7082
        %v7085 = vunpack.c.l.s4 1934713408
        %v7086 = vunpack.c.0.s8 %v7085
        %v7087 = vperm.slane %v7081, %v7086
        %v7089 = vunpack.c.l.s4 1934713408
        %v7090 = vunpack.c.0.s8 %v7089
        %v7091 = vperm.slane %v7083, %v7090
        %v7092 = vrot.slane %v7055, 4
        %v7093 = vsel %vm367, %v7092, %v7043
        %v7094 = vrot.slane %v7043, 4
        %v7095 = vsel %vm367, %v7055, %v7094
        %v7097 = vunpack.c.l.s4 1934713408
        %v7098 = vunpack.c.0.s8 %v7097
        %v7099 = vperm.slane %v7093, %v7098
        %v7101 = vunpack.c.l.s4 1934713408
        %v7102 = vunpack.c.0.s8 %v7101
        %v7103 = vperm.slane %v7095, %v7102
        %v7104 = vrot.slane %v7087, 4
        %v7105 = vsel %vm367, %v7104, %v7063
        %v7106 = vrot.slane %v7063, 4
        %v7107 = vsel %vm367, %v7087, %v7106
        %v7108 = vrot.slane %v7091, 4
        %v7109 = vsel %vm367, %v7108, %v7067
        %v7110 = vrot.slane %v7067, 4
        %v7111 = vsel %vm367, %v7091, %v7110
        %v7112 = vrot.slane %v7099, 4
        %v7113 = vsel %vm367, %v7112, %v7075
        %v7114 = vrot.slane %v7075, 4
        %v7115 = vsel %vm367, %v7099, %v7114
        %v7116 = vrot.slane %v7103, 4
        %v7117 = vsel %vm367, %v7116, %v7079
        %v7118 = vrot.slane %v7079, 4
        %v7119 = vsel %vm367, %v7103, %v7118
        %v7120 = vrot.slane %v4388, 4
        %v7121 = vsel %vm367, %v7120, %v4330
        %v7122 = vrot.slane %v4330, 4
        %v7123 = vsel %vm367, %v4388, %v7122
        %v7125 = vunpack.c.l.s4 1983009808
        %v7126 = vunpack.c.0.s8 %v7125
        %v7127 = vperm.slane %v7121, %v7126
        %v7129 = vunpack.c.l.s4 1983009808
        %v7130 = vunpack.c.0.s8 %v7129
        %v7131 = vperm.slane %v7123, %v7130
        %v7132 = vrot.slane %v4417, 4
        %v7133 = vsel %vm367, %v7132, %v4359
        %v7134 = vrot.slane %v4359, 4
        %v7135 = vsel %vm367, %v4417, %v7134
        %v7137 = vunpack.c.l.s4 1983009808
        %v7138 = vunpack.c.0.s8 %v7137
        %v7139 = vperm.slane %v7133, %v7138
        %v7141 = vunpack.c.l.s4 1983009808
        %v7142 = vunpack.c.0.s8 %v7141
        %v7143 = vperm.slane %v7135, %v7142
        %v7144 = vrot.slane %v4504, 4
        %v7145 = vsel %vm367, %v7144, %v4446
        %v7146 = vrot.slane %v4446, 4
        %v7147 = vsel %vm367, %v4504, %v7146
        %v7149 = vunpack.c.l.s4 1983009808
        %v7150 = vunpack.c.0.s8 %v7149
        %v7151 = vperm.slane %v7145, %v7150
        %v7153 = vunpack.c.l.s4 1983009808
        %v7154 = vunpack.c.0.s8 %v7153
        %v7155 = vperm.slane %v7147, %v7154
        %v7156 = vrot.slane %v4533, 4
        %v7157 = vsel %vm367, %v7156, %v4475
        %v7158 = vrot.slane %v4475, 4
        %v7159 = vsel %vm367, %v4533, %v7158
        %v7161 = vunpack.c.l.s4 1983009808
        %v7162 = vunpack.c.0.s8 %v7161
        %v7163 = vperm.slane %v7157, %v7162
        %v7165 = vunpack.c.l.s4 1983009808
        %v7166 = vunpack.c.0.s8 %v7165
        %v7167 = vperm.slane %v7159, %v7166
        %v7168 = vrot.slane %v7139, 4
        %v7169 = vsel %vm367, %v7168, %v7127
        %v7170 = vrot.slane %v7127, 4
        %v7171 = vsel %vm367, %v7139, %v7170
        %v7173 = vunpack.c.l.s4 1934713408
        %v7174 = vunpack.c.0.s8 %v7173
        %v7175 = vperm.slane %v7169, %v7174
        %v7177 = vunpack.c.l.s4 1934713408
        %v7178 = vunpack.c.0.s8 %v7177
        %v7179 = vperm.slane %v7171, %v7178
        %v7180 = vrot.slane %v7143, 4
        %v7181 = vsel %vm367, %v7180, %v7131
        %v7182 = vrot.slane %v7131, 4
        %v7183 = vsel %vm367, %v7143, %v7182
        %v7185 = vunpack.c.l.s4 1934713408
        %v7186 = vunpack.c.0.s8 %v7185
        %v7187 = vperm.slane %v7181, %v7186
        %v7189 = vunpack.c.l.s4 1934713408
        %v7190 = vunpack.c.0.s8 %v7189
        %v7191 = vperm.slane %v7183, %v7190
        %v7192 = vrot.slane %v7163, 4
        %v7193 = vsel %vm367, %v7192, %v7151
        %v7194 = vrot.slane %v7151, 4
        %v7195 = vsel %vm367, %v7163, %v7194
        %v7197 = vunpack.c.l.s4 1934713408
        %v7198 = vunpack.c.0.s8 %v7197
        %v7199 = vperm.slane %v7193, %v7198
        %v7201 = vunpack.c.l.s4 1934713408
        %v7202 = vunpack.c.0.s8 %v7201
        %v7203 = vperm.slane %v7195, %v7202
        %v7204 = vrot.slane %v7167, 4
        %v7205 = vsel %vm367, %v7204, %v7155
        %v7206 = vrot.slane %v7155, 4
        %v7207 = vsel %vm367, %v7167, %v7206
        %v7209 = vunpack.c.l.s4 1934713408
        %v7210 = vunpack.c.0.s8 %v7209
        %v7211 = vperm.slane %v7205, %v7210
        %v7213 = vunpack.c.l.s4 1934713408
        %v7214 = vunpack.c.0.s8 %v7213
        %v7215 = vperm.slane %v7207, %v7214
        %v7216 = vrot.slane %v7199, 4
        %v7217 = vsel %vm367, %v7216, %v7175
        %v7218 = vrot.slane %v7175, 4
        %v7219 = vsel %vm367, %v7199, %v7218
        %v7220 = vrot.slane %v7203, 4
        %v7221 = vsel %vm367, %v7220, %v7179
        %v7222 = vrot.slane %v7179, 4
        %v7223 = vsel %vm367, %v7203, %v7222
        %v7224 = vrot.slane %v7211, 4
        %v7225 = vsel %vm367, %v7224, %v7187
        %v7226 = vrot.slane %v7187, 4
        %v7227 = vsel %vm367, %v7211, %v7226
        %v7228 = vrot.slane %v7215, 4
        %v7229 = vsel %vm367, %v7228, %v7191
        %v7230 = vrot.slane %v7191, 4
        %v7231 = vsel %vm367, %v7215, %v7230
        %v7232 = vmul.f32 %v6390, %v6881
        %v7233 = vmul.f32 %v6396, %v6993
        %v7234 = vmul.f32 %v6403, %v6883
        %v7235 = vmul.f32 %v6409, %v6995
        %v7236 = vmul.f32 %v6416, %v6885
        %v7237 = vmul.f32 %v6422, %v6997
        %v7238 = vmul.f32 %v6429, %v6887
        %v7239 = vmul.f32 %v6435, %v6999
        %v7240 = vmul.f32 %v6442, %v6889
        %v7241 = vmul.f32 %v6448, %v7001
        %v7242 = vmul.f32 %v6455, %v6891
        %v7243 = vmul.f32 %v6461, %v7003
        %v7244 = vmul.f32 %v6468, %v6893
        %v7245 = vmul.f32 %v6474, %v7005
        %v7246 = vmul.f32 %v6481, %v6895
        %v7247 = vmul.f32 %v6487, %v7007
        %v7248 = vmul.f32 %v6494, %v7105
        %v7249 = vmul.f32 %v6500, %v7217
        %v7250 = vmul.f32 %v6507, %v7107
        %v7251 = vmul.f32 %v6513, %v7219
        %v7252 = vmul.f32 %v6520, %v7109
        %v7253 = vmul.f32 %v6526, %v7221
        %v7254 = vmul.f32 %v6533, %v7111
        %v7255 = vmul.f32 %v6539, %v7223
        %v7256 = vmul.f32 %v6546, %v7113
        %v7257 = vmul.f32 %v6552, %v7225
        %v7258 = vmul.f32 %v6559, %v7115
        %v7259 = vmul.f32 %v6565, %v7227
        %v7260 = vmul.f32 %v6572, %v7117
        %v7261 = vmul.f32 %v6578, %v7229
        %v7262 = vmul.f32 %v6585, %v7119
        %v7263 = vmul.f32 %v6591, %v7231
        %v7264 = vadd.f32 %v6752, %v7232
        %v7265 = vadd.f32 %v6753, %v7233
        %v7266 = vadd.f32 %v6754, %v7234
        %v7267 = vadd.f32 %v6755, %v7235
        %v7268 = vadd.f32 %v6756, %v7236
        %v7269 = vadd.f32 %v6757, %v7237
        %v7270 = vadd.f32 %v6758, %v7238
        %v7271 = vadd.f32 %v6759, %v7239
        %v7272 = vadd.f32 %v6760, %v7240
        %v7273 = vadd.f32 %v6761, %v7241
        %v7274 = vadd.f32 %v6762, %v7242
        %v7275 = vadd.f32 %v6763, %v7243
        %v7276 = vadd.f32 %v6764, %v7244
        %v7277 = vadd.f32 %v6765, %v7245
        %v7278 = vadd.f32 %v6766, %v7246
        %v7279 = vadd.f32 %v6767, %v7247
        %v7280 = vadd.f32 %v6768, %v7248
        %v7281 = vadd.f32 %v6769, %v7249
        %v7282 = vadd.f32 %v6770, %v7250
        %v7283 = vadd.f32 %v6771, %v7251
        %v7284 = vadd.f32 %v6772, %v7252
        %v7285 = vadd.f32 %v6773, %v7253
        %v7286 = vadd.f32 %v6774, %v7254
        %v7287 = vadd.f32 %v6775, %v7255
        %v7288 = vadd.f32 %v6776, %v7256
        %v7289 = vadd.f32 %v6777, %v7257
        %v7290 = vadd.f32 %v6778, %v7258
        %v7291 = vadd.f32 %v6779, %v7259
        %v7292 = vadd.f32 %v6780, %v7260
        %v7293 = vadd.f32 %v6781, %v7261
        %v7294 = vadd.f32 %v6782, %v7262
        %v7295 = vadd.f32 %v6783, %v7263
        %7296 = vxpose.xlu0.b32.start [1/16] %v7264, 128
        %7297 = vxpose.xlu0.b32.cont [2/16] %v7265, 128
        %7298 = vxpose.xlu0.b32.cont [3/16] %v7266, 128
        %7299 = vxpose.xlu0.b32.cont [4/16] %v7267, 128
        %7300 = vxpose.xlu0.b32.cont [5/16] %v7268, 128
        %7301 = vxpose.xlu0.b32.cont [6/16] %v7269, 128
        %7302 = vxpose.xlu0.b32.cont [7/16] %v7270, 128
        %7303 = vxpose.xlu0.b32.cont [8/16] %v7271, 128
        %7304 = vxpose.xlu0.b32.cont [9/16] %v7272, 128
        %7305 = vxpose.xlu0.b32.cont [10/16] %v7273, 128
        %7306 = vxpose.xlu0.b32.cont [11/16] %v7274, 128
        %7307 = vxpose.xlu0.b32.cont [12/16] %v7275, 128
        %7308 = vxpose.xlu0.b32.cont [13/16] %v7276, 128
        %7309 = vxpose.xlu0.b32.cont [14/16] %v7277, 128
        %7310 = vxpose.xlu0.b32.cont [15/16] %v7278, 128
        %7311 = vxpose.xlu0.b32.end [16/16] %v7279, 128
        %v7312 = vpop.trf.xlu0
        %v7313 = vpop.trf.xlu0
        %v7314 = vpop.trf.xlu0
        %v7315 = vpop.trf.xlu0
        %v7316 = vpop.trf.xlu0
        %v7317 = vpop.trf.xlu0
        %v7318 = vpop.trf.xlu0
        %v7319 = vpop.trf.xlu0
        %v7320 = vpop.trf.xlu0
        %v7321 = vpop.trf.xlu0
        %v7322 = vpop.trf.xlu0
        %v7323 = vpop.trf.xlu0
        %v7324 = vpop.trf.xlu0
        %v7325 = vpop.trf.xlu0
        %v7326 = vpop.trf.xlu0
        %v7327 = vpop.trf.xlu0
        %7328 = vxpose.xlu0.b32.start [1/16] %v7280, 128
        %7329 = vxpose.xlu0.b32.cont [2/16] %v7281, 128
        %7330 = vxpose.xlu0.b32.cont [3/16] %v7282, 128
        %7331 = vxpose.xlu0.b32.cont [4/16] %v7283, 128
        %7332 = vxpose.xlu0.b32.cont [5/16] %v7284, 128
        %7333 = vxpose.xlu0.b32.cont [6/16] %v7285, 128
        %7334 = vxpose.xlu0.b32.cont [7/16] %v7286, 128
        %7335 = vxpose.xlu0.b32.cont [8/16] %v7287, 128
        %7336 = vxpose.xlu0.b32.cont [9/16] %v7288, 128
        %7337 = vxpose.xlu0.b32.cont [10/16] %v7289, 128
        %7338 = vxpose.xlu0.b32.cont [11/16] %v7290, 128
        %7339 = vxpose.xlu0.b32.cont [12/16] %v7291, 128
        %7340 = vxpose.xlu0.b32.cont [13/16] %v7292, 128
        %7341 = vxpose.xlu0.b32.cont [14/16] %v7293, 128
        %7342 = vxpose.xlu0.b32.cont [15/16] %v7294, 128
        %7343 = vxpose.xlu0.b32.end [16/16] %v7295, 128
        %v7344 = vpop.trf.xlu0
        %v7345 = vpop.trf.xlu0
        %v7346 = vpop.trf.xlu0
        %v7347 = vpop.trf.xlu0
        %v7348 = vpop.trf.xlu0
        %v7349 = vpop.trf.xlu0
        %v7350 = vpop.trf.xlu0
        %v7351 = vpop.trf.xlu0
        %v7352 = vpop.trf.xlu0
        %v7353 = vpop.trf.xlu0
        %v7354 = vpop.trf.xlu0
        %v7355 = vpop.trf.xlu0
        %v7356 = vpop.trf.xlu0
        %v7357 = vpop.trf.xlu0
        %v7358 = vpop.trf.xlu0
        %v7359 = vpop.trf.xlu0
        %v7360 = vadd.f32 %v7312, %v217
        %v7361 = vadd.f32 %v7344, %v218
        %7362 = vst [vmem:[%s216] sm:$0xff] %v7360
        %7363 = vst [vmem:[%s216 + $0x8] sm:$0xff] %v7361
        %s7364 = sand.u32 %s119, 1
        %s7365 = scalar_lea.sflag [#allocation5], %s7364
        %s7366 = sand.u32 %s119, 1
        %s7367 = smul.addr %s7366, 16
        %s7368 = scalar_lea.vmem [#allocation6], %s7367
        // Predicated region
        $region41: #{tpu_custom_call.1} parent=35 // pred_check
          %p7369 = pneg %p129
        $region42: #{tpu_custom_call.1} parent=35 // pred_check_branch
          %7371 = sbr.rel (%p7369) target = $region44
        $region43: #{tpu_custom_call.1} parent=35 // pred_region
          %7373 = vsyncadd %s7365, 0
          %s7374 = smul.addr %s22, 2
          %s7375 = smul.addr %s7374, 8
          %s7376 = scalar_lea.hbm %s4, %s7375
          %s7378 = sshll.u32 %s7368, 4
          %s7379 = int_to_ptr.vmem [resolvable:$true] %s7378
          %s7380 = sshll.u32 %s7376, 4
          %s7381 = int_to_ptr.hbm [resolvable:$true] %s7380
          %7383 = dma.vmem_to_hbm [thread:$0]  %s7379, 256, %s7381, %s7365
        $region44: #{tpu_custom_call.1} parent=35 // pred_fallthru
          _
      $region36: #{tpu_custom_call.1} parent=5 // pred_fallthru
        _
      %p7384 = scmp.le.s32.totalorder 2, %s17
      // Predicated region
      $region45: #{tpu_custom_call.1} parent=5 // pred_check
        %p7385 = pneg %p7384
      $region46: #{tpu_custom_call.1} parent=5 // pred_check_branch
        %7387 = sbr.rel (%p7385) target = $region48
      $region47: #{tpu_custom_call.1} parent=5 // pred_region
        %s7388 = ssub.s32 %s17, 2
        // Predicated region
        $region49: #{tpu_custom_call.1} parent=47 // pred_check
          %p7389 = pneg %p135
        $region50: #{tpu_custom_call.1} parent=47 // pred_check_branch
          %7391 = sbr.rel (%p7389) target = $region52
        $region51: #{tpu_custom_call.1} parent=47 // pred_region
          %s7392 = sand.u32 %s120, 1
          %s7393 = scalar_lea.sflag [#allocation5], %s7392
          %s7394 = sand.u32 %s120, 1
          %s7395 = smul.addr %s7394, 16
          %s7396 = scalar_lea.vmem [#allocation6], %s7395
          %7398 = dma.done %s7393, 256
        $region52: #{tpu_custom_call.1} parent=47 // pred_fallthru
          _
      $region48: #{tpu_custom_call.1} parent=5 // pred_fallthru
        _
    $region6: #{tpu_custom_call.1} parent=1 // loop_footer
      %s21 = sadd.s32 1, %s17
    $region7: #{tpu_custom_call.1} parent=1 // loop_footer_branch
      %16 = sbr.rel target = $region3
    $region8: #{tpu_custom_call.1} parent=1 // loop_exit
      _
    %7399 = vsyncpa [#allocation4], 1
    %s7400 = scalar_lea.sflag [#allocation4], 1
    %7401 = vsyncpa %s7400, 1
    %7402 = vsyncpa [#allocation5], 1
    %s7403 = scalar_lea.sflag [#allocation5], 1
    %7404 = vsyncpa %s7403, 1

</llo_original>
